<compile_context>
chip_gen: v6e
topology: v6e:2x2x1
jax: 0.10.0
libtpu: 0.0.40
codegen_flags: <defaults>
</compile_context>

<pallas_src>
import functools
import math

import jax
import jax.numpy as jnp
from jax.experimental import pallas as pl
from jax.experimental.pallas import tpu as pltpu


def _round_up(x, m):
    return (x + m - 1) // m * m


# ---------------------------------------------------------------------------
# Pallas kernel
# ---------------------------------------------------------------------------
def _gemm_bn_kernel(a_ref, b_ref, t_ref, *rest, relu, has_residual, n_k):
    """out = relu?((A @ B_scaled) + bias [+ residual]).

    A/B are bf16 (MXU-native), accumulation is f32.  The BN scale is folded
    into B in the wrapper.  With a single K grid step the dot feeds the
    epilogue directly; otherwise an f32 VMEM scratch accumulates across K
    steps and the epilogue runs on the last one.
    """
    if has_residual:
        r_ref = rest[0]
        rest = rest[1:]
    else:
        r_ref = None
    o_ref = rest[0]

    def epilogue(acc):
        y = acc + t_ref[...]
        if r_ref is not None:
            y = y + r_ref[...].astype(jnp.float32)
        if relu:
            y = jnp.maximum(y, 0.0)
        o_ref[...] = y.astype(o_ref.dtype)

    if n_k == 1:
        epilogue(jnp.dot(a_ref[...], b_ref[...],
                         preferred_element_type=jnp.float32))
    else:
        acc_ref = rest[1]
        k = pl.program_id(2)

        @pl.when(k == 0)
        def _():
            acc_ref[...] = jnp.zeros_like(acc_ref)

        acc_ref[...] += jnp.dot(a_ref[...], b_ref[...],
                                preferred_element_type=jnp.float32)

        @pl.when(k == n_k - 1)
        def _():
            epilogue(acc_ref[...])


# ---------------------------------------------------------------------------
# Tile-size selection
# ---------------------------------------------------------------------------
def _pick_tm(M):
    """bf16 M tile: multiple of 16 (sublane packing); prefer >=2 M blocks so a
    v7x megacore can shard the 'parallel' M axis across both TensorCores even
    when the N grid axis has a single block."""
    Mp = _round_up(M, 16)
    if Mp >= 32:
        tm = min(512, _round_up((Mp + 1) // 2, 16))
    else:
        tm = Mp
    Mp = _round_up(Mp, tm)
    return tm, Mp


def _pick_tk(K, TN):
    """Full-K tile (single K step) whenever the double-buffered bf16 B tile
    stays under a few MiB; otherwise the largest 256-multiple divisor of Kp
    (v6e/v7x MXU contraction depth), capped at 2048."""
    Kp = _round_up(K, 128)
    if Kp * TN * 2 * 2 <= 8 * 1024 * 1024:   # bf16, double-buffered
        return Kp, Kp
    Kp = _round_up(K, 256)
    tk = 256
    for cand in range(256, min(Kp, 2048) + 1, 256):
        if Kp % cand == 0:
            tk = cand
    return tk, Kp


# ---------------------------------------------------------------------------
# Pallas call wrapper
# ---------------------------------------------------------------------------
def matmul_bias_act(a, b, bias, residual, relu):
    """a: (M, K) bf16; b: (K, N) f32 with BN scale already folded in;
    bias: (N,) f32; residual: (M, Np) bf16 or None.
    Returns (M, Np) bf16 with Np = round_up(N, 128); padded lanes are zero."""
    M, K = a.shape
    N = b.shape[1]

    TM, Mp = _pick_tm(M)
    Np = _round_up(N, 128)
    TN = 256 if Np % 256 == 0 else 128
    TK, Kp = _pick_tk(K, TN)
    n_k = Kp // TK

    a_p = a if (Mp == M and Kp == K) else jnp.pad(a, ((0, Mp - M), (0, Kp - K)))
    b_p = jnp.pad(b, ((0, Kp - K), (0, Np - N))).astype(jnp.bfloat16)
    t_p = jnp.pad(bias, (0, Np - N)).reshape(1, Np).astype(jnp.float32)

    has_residual = residual is not None
    operands = [a_p, b_p, t_p]
    in_specs = [
        pl.BlockSpec((TM, TK), lambda i, j, k: (i, k)),
        pl.BlockSpec((TK, TN), lambda i, j, k: (k, j)),
        pl.BlockSpec((1, TN), lambda i, j, k: (0, j)),
    ]
    if has_residual:
        r = residual
        if r.shape[0] != Mp or r.shape[1] != Np:
            r = jnp.pad(r, ((0, Mp - r.shape[0]), (0, Np - r.shape[1])))
        operands.append(r.astype(jnp.bfloat16))
        in_specs.append(pl.BlockSpec((TM, TN), lambda i, j, k: (i, j)))

    scratch = [] if n_k == 1 else [pltpu.VMEM((TM, TN), jnp.float32)]
    kernel = functools.partial(_gemm_bn_kernel, relu=relu,
                               has_residual=has_residual, n_k=n_k)

    out = pl.pallas_call(
        kernel,
        out_shape=jax.ShapeDtypeStruct((Mp, Np), jnp.bfloat16),
        grid_spec=pltpu.PrefetchScalarGridSpec(
            num_scalar_prefetch=0,
            grid=(Mp // TM, Np // TN, n_k),
            in_specs=in_specs,
            out_specs=pl.BlockSpec((TM, TN), lambda i, j, k: (i, j)),
            scratch_shapes=scratch,
        ),
        compiler_params=pltpu.CompilerParams(
            dimension_semantics=("parallel", "parallel", "arbitrary")),
    )(*operands)
    return out[:M]


# ---------------------------------------------------------------------------
# Conv / BN glue (XLA wrapper around the Pallas GEMM)
# ---------------------------------------------------------------------------
def _im2col_nhwc(x, kh, kw, stride, pad):
    """x: (N, H, W, C) bf16 -> patches (N*Ho*Wo, kh*kw*C), tap-major / channel-minor."""
    n, h, w, c = x.shape
    ho = (h + 2 * pad - kh) // stride + 1
    wo = (w + 2 * pad - kw) // stride + 1
    xp = jnp.pad(x, ((0, 0), (pad, pad), (pad, pad), (0, 0)))
    cols = []
    for dy in range(kh):
        for dx in range(kw):
            cols.append(xp[:, dy:dy + stride * ho:stride,
                           dx:dx + stride * wo:stride, :])
    pat = jnp.stack(cols, axis=3)              # (N, Ho, Wo, kh*kw, C)
    return pat.reshape(n * ho * wo, kh * kw * c), ho, wo


def _fold_bn(bn, eps=1e-5):
    scale = bn["gamma"] / jnp.sqrt(bn["var"] + eps)
    bias = bn["beta"] - bn["mean"] * scale
    return scale, bias


def conv_bn_act(x, w, bn, stride, pad, relu, residual=None):
    """x: (N, H, W, Cp) bf16, channel-padded; w: (Cout, Cin, kh, kw) f32.
    Returns (N, Ho, Wo, Coutp) bf16 with Coutp = round_up(Cout, 128)."""
    n, _, _, cp = x.shape
    cout, cin, kh, kw = w.shape
    patches, ho, wo = _im2col_nhwc(x, kh, kw, stride, pad)
    scale, bias = _fold_bn(bn)
    w_p = jnp.pad(w, ((0, 0), (0, cp - cin), (0, 0), (0, 0)))
    # (kh, kw, Cp, Cout) flattened tap-major/channel-minor, BN scale folded in.
    b = w_p.transpose(2, 3, 1, 0).reshape(kh * kw * cp, cout) * scale[None, :]
    r = (residual.reshape(n * ho * wo, residual.shape[3])
         if residual is not None else None)
    out = matmul_bias_act(patches, b, bias, r, relu)
    return out.reshape(n, ho, wo, out.shape[1])


# ---------------------------------------------------------------------------
# BasicBlock forward (dcn=None) + f32 reference + params
# ---------------------------------------------------------------------------
def basic_block_forward(x_nchw, p):
    """conv3x3 -> BN -> ReLU -> conv3x3 -> BN -> (+ residual) -> ReLU.
    NCHW f32 at the boundary; channels-last bf16 channel-padded internally."""
    n, cin, h, w = x_nchw.shape
    cinp = _round_up(cin, 128)
    x = jnp.transpose(x_nchw, (0, 2, 3, 1)).astype(jnp.bfloat16)
    x = jnp.pad(x, ((0, 0), (0, 0), (0, 0), (0, cinp - cin)))

    out = conv_bn_act(x, p["conv1_w"], p["bn1"], p["stride"], 1, relu=True)
    if "down_w" in p:
        residual = conv_bn_act(x, p["down_w"], p["down_bn"], p["stride"], 0,
                               relu=False)
    else:
        residual = x
    out = conv_bn_act(out, p["conv2_w"], p["bn2"], 1, 1, relu=True,
                      residual=residual)

    planes = p["conv2_w"].shape[0]
    return jnp.transpose(out[..., :planes], (0, 3, 1, 2)).astype(jnp.float32)


def _ref_conv_bn(x, w, bn, stride, pad, relu, residual=None):
    wt = jnp.transpose(w, (2, 3, 1, 0))  # HWIO
    y = jax.lax.conv_general_dilated(
        x, wt, window_strides=(stride, stride),
        padding=((pad, pad), (pad, pad)),
        dimension_numbers=("NHWC", "HWIO", "NHWC"))
    scale, bias = _fold_bn(bn)
    y = y * scale + bias
    if residual is not None:
        y = y + residual
    if relu:
        y = jnp.maximum(y, 0.0)
    return y


def basic_block_reference(x_nchw, p):
    x = jnp.transpose(x_nchw, (0, 2, 3, 1)).astype(jnp.float32)
    out = _ref_conv_bn(x, p["conv1_w"], p["bn1"], p["stride"], 1, True)
    if "down_w" in p:
        residual = _ref_conv_bn(x, p["down_w"], p["down_bn"], p["stride"], 0, False)
    else:
        residual = x
    out = _ref_conv_bn(out, p["conv2_w"], p["bn2"], 1, 1, True, residual=residual)
    return jnp.transpose(out, (0, 3, 1, 2))


def _bn_params(key, c):
    k1, k2, k3, k4 = jax.random.split(key, 4)
    return dict(
        gamma=jax.random.uniform(k1, (c,), jnp.float32, 0.5, 1.5),
        beta=jax.random.normal(k2, (c,), jnp.float32) * 0.1,
        mean=jax.random.normal(k3, (c,), jnp.float32) * 0.1,
        var=jax.random.uniform(k4, (c,), jnp.float32, 0.5, 1.5),
    )


def _conv_w(key, cout, cin, kh, kw):
    n = kh * kw * cout
    return jax.random.normal(key, (cout, cin, kh, kw), jnp.float32) * math.sqrt(2.0 / n)


def init_block_params(key, inplanes, planes, stride=1, downsample=False):
    ks = jax.random.split(key, 6)
    p = {
        "conv1_w": _conv_w(ks[0], planes, inplanes, 3, 3),
        "bn1": _bn_params(ks[1], planes),
        "conv2_w": _conv_w(ks[2], planes, planes, 3, 3),
        "bn2": _bn_params(ks[3], planes),
        "stride": stride,
    }
    if downsample or stride != 1 or inplanes != planes:  # BasicBlock.expansion == 1
        p["down_w"] = _conv_w(ks[4], planes, inplanes, 1, 1)
        p["down_bn"] = _bn_params(ks[5], planes)
    return p


if __name__ == "__main__":
    key = jax.random.PRNGKey(0)
    kx, ka, kb = jax.random.split(key, 3)

    # Small shapes consistent with the module: batch=2, 32 channels, 16x16.
    x = jax.random.normal(kx, (2, 32, 16, 16), jnp.float32)  # NCHW

    # (a) default BasicBlock(32, 32): stride 1, identity residual.
    pa = init_block_params(ka, inplanes=32, planes=32, stride=1)
    # (b) ResNet-style BasicBlock(32, 64, stride=2) with 1x1-conv downsample.
    pb = init_block_params(kb, inplanes=32, planes=64, stride=2, downsample=True)

    fwd_a = jax.jit(lambda inp: basic_block_forward(inp, pa))
    fwd_b = jax.jit(lambda inp: basic_block_forward(inp, pb))

    ya = jax.block_until_ready(fwd_a(x))
    yb = jax.block_until_ready(fwd_b(x))

    assert ya.shape == (2, 32, 16, 16), ya.shape
    assert yb.shape == (2, 64, 8, 8), yb.shape
    assert bool(jnp.isfinite(ya).all()) and bool(jnp.isfinite(yb).all())

    # Correctness vs an f32 XLA reference (bf16 MXU inputs -> loose tolerance).
    ra = basic_block_reference(x, pa)
    rb = basic_block_reference(x, pb)
    err_a = float(jnp.max(jnp.abs(ya - ra)))
    err_b = float(jnp.max(jnp.abs(yb - rb)))
    assert err_a < 2e-1 and err_b < 2e-1, (err_a, err_b)

    print("KERNEL_OK")
</pallas_src>

<mosaic_0001>
module attributes {stable_mosaic.version = 11 : i64} {
  func.func @_gemm_bn_kernel(%arg0: i32, %arg1: i32, %arg2: i32, %arg3: memref<256x1152xbf16, #tpu.memory_space<vmem>>, %arg4: memref<1152x128xbf16, #tpu.memory_space<vmem>>, %arg5: memref<1x128xf32, #tpu.memory_space<vmem>>, %arg6: memref<256x128xbf16, #tpu.memory_space<vmem>>) attributes {dimension_semantics = [#tpu.dimension_semantics<parallel>, #tpu.dimension_semantics<parallel>, #tpu.dimension_semantics<arbitrary>], iteration_bounds = array<i64: 2, 1, 1>, scalar_prefetch = 0 : i64, scratch_operands = 0 : i64, tpu.core_type = #tpu.core_type<tc>, window_params = [{transform_indices = @transform_0, window_bounds = array<i64: 256, 1152>}, {transform_indices = @transform_1, window_bounds = array<i64: 1152, 128>}, {transform_indices = @transform_2, window_bounds = array<i64: 1, 128>}, {transform_indices = @transform_3, window_bounds = array<i64: 256, 128>}]} {
    %c0 = arith.constant 0 : index
    %c0_0 = arith.constant 0 : index
    %0 = vector.load %arg3[%c0, %c0_0] : memref<256x1152xbf16, #tpu.memory_space<vmem>>, vector<256x1152xbf16>
    %c0_1 = arith.constant 0 : index
    %c0_2 = arith.constant 0 : index
    %1 = vector.load %arg4[%c0_1, %c0_2] : memref<1152x128xbf16, #tpu.memory_space<vmem>>, vector<1152x128xbf16>
    %cst = arith.constant dense<0.000000e+00> : vector<256x128xf32>
    %2 = tpu.matmul %0, %1, %cst {dimension_numbers = #tpu.dot_dimension_numbers<[1], [0], [0], [1], [0, 0, 1, 1], [], []>} : vector<256x1152xbf16>, vector<1152x128xbf16>, vector<256x128xf32> -> vector<256x128xf32>
    %c0_3 = arith.constant 0 : index
    %c0_4 = arith.constant 0 : index
    %3 = vector.load %arg5[%c0_3, %c0_4] : memref<1x128xf32, #tpu.memory_space<vmem>>, vector<1x128xf32>
    %4 = vector.broadcast %3 : vector<1x128xf32> to vector<256x128xf32>
    %5 = arith.addf %2, %4 : vector<256x128xf32>
    %cst_5 = arith.constant 0.000000e+00 : f32
    %6 = vector.broadcast %cst_5 : f32 to vector<256x128xf32>
    %7 = arith.maximumf %5, %6 : vector<256x128xf32>
    %8 = arith.truncf %7 : vector<256x128xf32> to vector<256x128xbf16>
    %c0_6 = arith.constant 0 : index
    %c0_7 = arith.constant 0 : index
    %9 = vector.load %arg6[%c0_6, %c0_7] : memref<256x128xbf16, #tpu.memory_space<vmem>>, vector<256x128xbf16>
    tpu.vector_store %arg6[%c0_6, %c0_7], %8 {strides = array<i32>} : memref<256x128xbf16, #tpu.memory_space<vmem>>, vector<256x128xbf16>,
    return
  }
  func.func @transform_0(%arg0: i32, %arg1: i32, %arg2: i32) -> (i32, i32) {
    %c0_i32 = arith.constant 0 : i32
    return %arg0, %arg2 : i32, i32
  }
  func.func @transform_1(%arg0: i32, %arg1: i32, %arg2: i32) -> (i32, i32) {
    %c0_i32 = arith.constant 0 : i32
    return %arg2, %arg1 : i32, i32
  }
  func.func @transform_2(%arg0: i32, %arg1: i32, %arg2: i32) -> (i32, i32) {
    %c0_i32 = arith.constant 0 : i32
    %c0_i32_0 = arith.constant 0 : i32
    return %c0_i32, %arg1 : i32, i32
  }
  func.func @transform_3(%arg0: i32, %arg1: i32, %arg2: i32) -> (i32, i32) {
    %c0_i32 = arith.constant 0 : i32
    return %arg0, %arg1 : i32, i32
  }
}

module attributes {stable_mosaic.version = 11 : i64} {
  func.func @_gemm_bn_kernel(%arg0: i32, %arg1: i32, %arg2: i32, %arg3: memref<256x1152xbf16, #tpu.memory_space<vmem>>, %arg4: memref<1152x128xbf16, #tpu.memory_space<vmem>>, %arg5: memref<1x128xf32, #tpu.memory_space<vmem>>, %arg6: memref<256x128xbf16, #tpu.memory_space<vmem>>, %arg7: memref<256x128xbf16, #tpu.memory_space<vmem>>) attributes {dimension_semantics = [#tpu.dimension_semantics<parallel>, #tpu.dimension_semantics<parallel>, #tpu.dimension_semantics<arbitrary>], iteration_bounds = array<i64: 2, 1, 1>, scalar_prefetch = 0 : i64, scratch_operands = 0 : i64, tpu.core_type = #tpu.core_type<tc>, window_params = [{transform_indices = @transform_0, window_bounds = array<i64: 256, 1152>}, {transform_indices = @transform_1, window_bounds = array<i64: 1152, 128>}, {transform_indices = @transform_2, window_bounds = array<i64: 1, 128>}, {transform_indices = @transform_3, window_bounds = array<i64: 256, 128>}, {transform_indices = @transform_4, window_bounds = array<i64: 256, 128>}]} {
    %c0 = arith.constant 0 : index
    %c0_0 = arith.constant 0 : index
    %0 = vector.load %arg3[%c0, %c0_0] : memref<256x1152xbf16, #tpu.memory_space<vmem>>, vector<256x1152xbf16>
    %c0_1 = arith.constant 0 : index
    %c0_2 = arith.constant 0 : index
    %1 = vector.load %arg4[%c0_1, %c0_2] : memref<1152x128xbf16, #tpu.memory_space<vmem>>, vector<1152x128xbf16>
    %cst = arith.constant dense<0.000000e+00> : vector<256x128xf32>
    %2 = tpu.matmul %0, %1, %cst {dimension_numbers = #tpu.dot_dimension_numbers<[1], [0], [0], [1], [0, 0, 1, 1], [], []>} : vector<256x1152xbf16>, vector<1152x128xbf16>, vector<256x128xf32> -> vector<256x128xf32>
    %c0_3 = arith.constant 0 : index
    %c0_4 = arith.constant 0 : index
    %3 = vector.load %arg5[%c0_3, %c0_4] : memref<1x128xf32, #tpu.memory_space<vmem>>, vector<1x128xf32>
    %4 = vector.broadcast %3 : vector<1x128xf32> to vector<256x128xf32>
    %5 = arith.addf %2, %4 : vector<256x128xf32>
    %c0_5 = arith.constant 0 : index
    %c0_6 = arith.constant 0 : index
    %6 = vector.load %arg6[%c0_5, %c0_6] : memref<256x128xbf16, #tpu.memory_space<vmem>>, vector<256x128xbf16>
    %7 = arith.extf %6 : vector<256x128xbf16> to vector<256x128xf32>
    %8 = arith.addf %5, %7 : vector<256x128xf32>
    %cst_7 = arith.constant 0.000000e+00 : f32
    %9 = vector.broadcast %cst_7 : f32 to vector<256x128xf32>
    %10 = arith.maximumf %8, %9 : vector<256x128xf32>
    %11 = arith.truncf %10 : vector<256x128xf32> to vector<256x128xbf16>
    %c0_8 = arith.constant 0 : index
    %c0_9 = arith.constant 0 : index
    %12 = vector.load %arg7[%c0_8, %c0_9] : memref<256x128xbf16, #tpu.memory_space<vmem>>, vector<256x128xbf16>
    tpu.vector_store %arg7[%c0_8, %c0_9], %11 {strides = array<i32>} : memref<256x128xbf16, #tpu.memory_space<vmem>>, vector<256x128xbf16>,
    return
  }
  func.func @transform_0(%arg0: i32, %arg1: i32, %arg2: i32) -> (i32, i32) {
    %c0_i32 = arith.constant 0 : i32
    return %arg0, %arg2 : i32, i32
  }
  func.func @transform_1(%arg0: i32, %arg1: i32, %arg2: i32) -> (i32, i32) {
    %c0_i32 = arith.constant 0 : i32
    return %arg2, %arg1 : i32, i32
  }
  func.func @transform_2(%arg0: i32, %arg1: i32, %arg2: i32) -> (i32, i32) {
    %c0_i32 = arith.constant 0 : i32
    %c0_i32_0 = arith.constant 0 : i32
    return %c0_i32, %arg1 : i32, i32
  }
  func.func @transform_3(%arg0: i32, %arg1: i32, %arg2: i32) -> (i32, i32) {
    %c0_i32 = arith.constant 0 : i32
    return %arg0, %arg1 : i32, i32
  }
  func.func @transform_4(%arg0: i32, %arg1: i32, %arg2: i32) -> (i32, i32) {
    %c0_i32 = arith.constant 0 : i32
    return %arg0, %arg1 : i32, i32
  }
}

</mosaic_0001>

<llo_original>
// kernel: _lambda_.3
$region0: #{_lambda_.3}
  #allocation0 [shape = 'u32[]', space=smem, size = 0x4, offset = 0x4, fixed_abs, tag = 'smem constant byte address 0x4 - core index']
  #allocation1 [shape = 'u32[144,128]{1,0:T(1,128)}', space=vmem, size = 0x12000, scoped, tag = 'internal scratch']
  %s0 = inlined_call_operand.vmem [shape: bf16[512,1152], index: 0, kind: input, shape index: {}]
  %s1 = inlined_call_operand.vmem [shape: bf16[1152,128], index: 1, kind: input, shape index: {}]
  %s2 = inlined_call_operand.vmem [shape: f32[1,128], index: 2, kind: input, shape index: {}]
  %s3 = inlined_call_operand.vmem [shape: bf16[512,128], index: 3, kind: input, shape index: {}]
  %s4 = inlined_call_operand.vmem [shape: bf16[512,128], index: 4, kind: output, shape index: {}]
  %s5 = sld [smem:[#allocation0]]
  $region49: #{_lambda_.3} parent=0
    _
  %s7 = ssub.s32 1, %s5
  %s8 = scalar_select 0, %s7, %s5
  loop: start=0, step=1, limit=4
  $region2: #{_lambda_.3} parent=0 // loop_pre_header
    _
  $region3: #{_lambda_.3} parent=0 // loop_header
    %s10 = sphi 0, %s14
    %p11 = scmp.ge.s32.totalorder %s10, 4
    %s17 = sphi 0, %s36
    %s18 = sphi 0, %s32
    %s19 = sphi 0, %s28
    %s20 = sphi 0, %s17
    %s21 = sphi 0, %s18
    %s22 = sphi 0, %s19
    %s23 = sphi 0, %s20
    %s24 = sphi 0, %s21
    %s25 = sphi 0, %s22
    %s41 = sphi 0, %s43
    %s44 = sphi 0, %s41
    %s45 = sphi 0, %s44
    %s61 = sphi 0, %s45
    %s69 = sphi 0, %s71
    %s72 = sphi 0, %s69
    %s73 = sphi 0, %s72
    %s89 = sphi 0, %s73
    %s95 = sphi 0, %s97
    %s98 = sphi 0, %s95
    %s99 = sphi 0, %s98
    %s115 = sphi 0, %s99
    %s123 = sphi 0, %s125
    %s126 = sphi 0, %s123
    %s127 = sphi 0, %s126
    %s143 = sphi 0, %s127
    %s151 = sphi 0, %s153
    %s154 = sphi 0, %s151
    %s155 = sphi 0, %s154
    %s171 = sphi 0, %s155
  $region4: #{_lambda_.3} parent=0 // loop_header_branch
    %13 = sbr.rel (%p11) target = $region8
  $region5: #{_lambda_.3} parent=0 // loop_body
    %s15 = ssub.s32 %s10, 1
    %s16 = ssub.s32 %s10, 2
    %s26 = sadd.s32 1, %s19
    %p27 = scmp.ge.s32.totalorder %s26, 1
    %s28 = scalar_select %p27, 0, %s26
    %s29 = sadd.s32 1, %s18
    %s30 = scalar_select %p27, %s29, %s18
    %p31 = scmp.ge.s32.totalorder %s30, 1
    %s32 = scalar_select %p31, 0, %s30
    %s33 = sadd.s32 1, %s17
    %s34 = scalar_select %p31, %s33, %s17
    %p35 = scmp.ge.s32.totalorder %s34, 2
    %s36 = scalar_select %p35, 0, %s34
    %s37 = ssub.s32 %s17, %s36
    %s38 = ssub.s32 %s19, %s28
    %s39 = sor.u32 %s37, %s38
    %p40 = scmp.eq.s32.totalorder %s39, 0
    %s42 = sadd.s32 %s41, 1
    %s43 = scalar_select %p40, %s41, %s42
    %p46 = pneg %p40
    %p47 = scmp.eq.s32.totalorder %s10, 1
    %p48 = por %p46, %p47
    %p49 = scmp.ne.s32.totalorder %s41, %s44
    %p50 = scmp.eq.s32.totalorder %s10, 0
    %p51 = por %p49, %p50
    %p52 = scmp.ne.s32.totalorder %s41, %s44
    %p53 = scmp.eq.s32.totalorder %s15, 1
    %p54 = por %p52, %p53
    %p55 = scmp.ne.s32.totalorder %s44, %s45
    %p56 = scmp.eq.s32.totalorder %s15, 0
    %p57 = por %p55, %p56
    %p58 = scmp.ne.s32.totalorder %s44, %s45
    %p59 = scmp.eq.s32.totalorder %s16, 1
    %p60 = por %p58, %p59
    %p62 = scmp.ne.s32.totalorder %s45, %s61
    %p63 = scmp.eq.s32.totalorder %s16, 0
    %p64 = por %p62, %p63
    %s65 = ssub.s32 %s19, %s28
    %s66 = ssub.s32 %s18, %s32
    %s67 = sor.u32 %s65, %s66
    %p68 = scmp.eq.s32.totalorder %s67, 0
    %s70 = sadd.s32 %s69, 1
    %s71 = scalar_select %p68, %s69, %s70
    %p74 = pneg %p68
    %p75 = scmp.eq.s32.totalorder %s10, 1
    %p76 = por %p74, %p75
    %p77 = scmp.ne.s32.totalorder %s69, %s72
    %p78 = scmp.eq.s32.totalorder %s10, 0
    %p79 = por %p77, %p78
    %p80 = scmp.ne.s32.totalorder %s69, %s72
    %p81 = scmp.eq.s32.totalorder %s15, 1
    %p82 = por %p80, %p81
    %p83 = scmp.ne.s32.totalorder %s72, %s73
    %p84 = scmp.eq.s32.totalorder %s15, 0
    %p85 = por %p83, %p84
    %p86 = scmp.ne.s32.totalorder %s72, %s73
    %p87 = scmp.eq.s32.totalorder %s16, 1
    %p88 = por %p86, %p87
    %p90 = scmp.ne.s32.totalorder %s73, %s89
    %p91 = scmp.eq.s32.totalorder %s16, 0
    %p92 = por %p90, %p91
    %s93 = ssub.s32 %s18, %s32
    %p94 = scmp.eq.s32.totalorder %s93, 0
    %s96 = sadd.s32 %s95, 1
    %s97 = scalar_select %p94, %s95, %s96
    %p100 = pneg %p94
    %p101 = scmp.eq.s32.totalorder %s10, 1
    %p102 = por %p100, %p101
    %p103 = scmp.ne.s32.totalorder %s95, %s98
    %p104 = scmp.eq.s32.totalorder %s10, 0
    %p105 = por %p103, %p104
    %p106 = scmp.ne.s32.totalorder %s95, %s98
    %p107 = scmp.eq.s32.totalorder %s15, 1
    %p108 = por %p106, %p107
    %p109 = scmp.ne.s32.totalorder %s98, %s99
    %p110 = scmp.eq.s32.totalorder %s15, 0
    %p111 = por %p109, %p110
    %p112 = scmp.ne.s32.totalorder %s98, %s99
    %p113 = scmp.eq.s32.totalorder %s16, 1
    %p114 = por %p112, %p113
    %p116 = scmp.ne.s32.totalorder %s99, %s115
    %p117 = scmp.eq.s32.totalorder %s16, 0
    %p118 = por %p116, %p117
    %s119 = ssub.s32 %s17, %s36
    %s120 = ssub.s32 %s18, %s32
    %s121 = sor.u32 %s119, %s120
    %p122 = scmp.eq.s32.totalorder %s121, 0
    %s124 = sadd.s32 %s123, 1
    %s125 = scalar_select %p122, %s123, %s124
    %p128 = pneg %p122
    %p129 = scmp.eq.s32.totalorder %s10, 1
    %p130 = por %p128, %p129
    %p131 = scmp.ne.s32.totalorder %s123, %s126
    %p132 = scmp.eq.s32.totalorder %s10, 0
    %p133 = por %p131, %p132
    %p134 = scmp.ne.s32.totalorder %s123, %s126
    %p135 = scmp.eq.s32.totalorder %s15, 1
    %p136 = por %p134, %p135
    %p137 = scmp.ne.s32.totalorder %s126, %s127
    %p138 = scmp.eq.s32.totalorder %s15, 0
    %p139 = por %p137, %p138
    %p140 = scmp.ne.s32.totalorder %s126, %s127
    %p141 = scmp.eq.s32.totalorder %s16, 1
    %p142 = por %p140, %p141
    %p144 = scmp.ne.s32.totalorder %s127, %s143
    %p145 = scmp.eq.s32.totalorder %s16, 0
    %p146 = por %p144, %p145
    %s147 = ssub.s32 %s17, %s36
    %s148 = ssub.s32 %s18, %s32
    %s149 = sor.u32 %s147, %s148
    %p150 = scmp.eq.s32.totalorder %s149, 0
    %s152 = sadd.s32 %s151, 1
    %s153 = scalar_select %p150, %s151, %s152
    %p156 = pneg %p150
    %p157 = scmp.eq.s32.totalorder %s10, 1
    %p158 = por %p156, %p157
    %p159 = scmp.ne.s32.totalorder %s151, %s154
    %p160 = scmp.eq.s32.totalorder %s10, 0
    %p161 = por %p159, %p160
    %p162 = scmp.ne.s32.totalorder %s151, %s154
    %p163 = scmp.eq.s32.totalorder %s15, 1
    %p164 = por %p162, %p163
    %p165 = scmp.ne.s32.totalorder %s154, %s155
    %p166 = scmp.eq.s32.totalorder %s15, 0
    %p167 = por %p165, %p166
    %p168 = scmp.ne.s32.totalorder %s154, %s155
    %p169 = scmp.eq.s32.totalorder %s16, 1
    %p170 = por %p168, %p169
    %p172 = scmp.ne.s32.totalorder %s155, %s171
    %p173 = scmp.eq.s32.totalorder %s16, 0
    %p174 = por %p172, %p173
    %p175 = scmp.le.s32.totalorder 1, %s10
    %p176 = scmp.lt.s32.totalorder %s10, 3
    %p177 = pnand %p175, %p176
    %p178 = pneg %p177
    // Predicated region
    $region9: #{_lambda_.3} parent=5 // pred_check
      _
    $region10: #{_lambda_.3} parent=5 // pred_check_branch
      %180 = sbr.rel (%p177) target = $region12
    $region11: #{_lambda_.3} parent=5 // pred_region
      %s181 = ssub.s32 %s10, 1
      // Predicated region
      $region13: #{_lambda_.3} parent=11 // pred_check
        %p182 = pneg %p85
      $region14: #{_lambda_.3} parent=11 // pred_check_branch
        %184 = sbr.rel (%p182) target = $region16
      $region15: #{_lambda_.3} parent=11 // pred_region
        %s185 = smul.u32 144, %s22
        %p186 = scmp.lt.s32.totalorder %s185, 143
        %s187 = scalar_select %p186, %s185, 143
        %p188 = scmp.lt.s32.totalorder %s21, 0
        %s189 = scalar_select %p188, %s21, 0
        %s190 = sadd.s32 %s189, %s187
        %s191 = smul.addr %s190, 4
        %s192 = scalar_lea.vmem %s1, %s191
        %s193 = smul.u32 144, %s22
      $region16: #{_lambda_.3} parent=11 // pred_fallthru
        _
      // Predicated region
      $region17: #{_lambda_.3} parent=11 // pred_check
        %p194 = pneg %p111
      $region18: #{_lambda_.3} parent=11 // pred_check_branch
        %196 = sbr.rel (%p194) target = $region20
      $region19: #{_lambda_.3} parent=11 // pred_region
        %p197 = scmp.lt.s32.totalorder %s21, 0
        %s198 = scalar_select %p197, %s21, 0
        %s199 = scalar_lea.vmem %s2, %s198
      $region20: #{_lambda_.3} parent=11 // pred_fallthru
        _
    $region12: #{_lambda_.3} parent=5 // pred_fallthru
      _
    %p200 = scmp.lt.s32.totalorder %s10, 2
    // Predicated region
    $region21: #{_lambda_.3} parent=5 // pred_check
      %p201 = pneg %p200
    $region22: #{_lambda_.3} parent=5 // pred_check_branch
      %203 = sbr.rel (%p201) target = $region24
    $region23: #{_lambda_.3} parent=5 // pred_region
      // Predicated region
      $region25: #{_lambda_.3} parent=23 // pred_check
        %p204 = pneg %p51
      $region26: #{_lambda_.3} parent=23 // pred_check_branch
        %206 = sbr.rel (%p204) target = $region28
      $region27: #{_lambda_.3} parent=23 // pred_region
        %s207 = smul.u32 32, %s17
        %s208 = smul.u32 9, %s19
        %p209 = scmp.lt.s32.totalorder %s207, 63
        %s210 = scalar_select %p209, %s207, 63
        %p211 = scmp.lt.s32.totalorder %s208, 8
        %s212 = scalar_select %p211, %s208, 8
        %s213 = smul.addr %s210, 9
        %s214 = sadd.s32 %s212, %s213
        %s215 = smul.addr %s214, 4
        %s216 = scalar_lea.vmem %s0, %s215
        %s217 = smul.u32 32, %s17
        %s218 = smul.u32 9, %s19
      $region28: #{_lambda_.3} parent=23 // pred_fallthru
        _
      // Predicated region
      $region29: #{_lambda_.3} parent=23 // pred_check
        %p219 = pneg %p133
      $region30: #{_lambda_.3} parent=23 // pred_check_branch
        %221 = sbr.rel (%p219) target = $region32
      $region31: #{_lambda_.3} parent=23 // pred_region
        %s222 = smul.u32 32, %s17
        %p223 = scmp.lt.s32.totalorder %s222, 63
        %s224 = scalar_select %p223, %s222, 63
        %p225 = scmp.lt.s32.totalorder %s18, 0
        %s226 = scalar_select %p225, %s18, 0
        %s227 = sadd.s32 %s226, %s224
        %s228 = smul.addr %s227, 4
        %s229 = scalar_lea.vmem %s3, %s228
        %s230 = smul.u32 32, %s17
      $region32: #{_lambda_.3} parent=23 // pred_fallthru
        _
    $region24: #{_lambda_.3} parent=5 // pred_fallthru
      _
    %p231 = scmp.le.s32.totalorder 1, %s10
    %p232 = scmp.lt.s32.totalorder %s10, 3
    %p233 = pnand %p231, %p232
    %p234 = pneg %p233
    // Predicated region
    $region33: #{_lambda_.3} parent=5 // pred_check
      _
    $region34: #{_lambda_.3} parent=5 // pred_check_branch
      %236 = sbr.rel (%p233) target = $region36
    $region35: #{_lambda_.3} parent=5 // pred_region
      %s237 = ssub.s32 %s10, 1
      %s238 = smul.u32 32, %s20
      %s239 = smul.u32 9, %s22
      %p240 = scmp.lt.s32.totalorder %s238, 63
      %s241 = scalar_select %p240, %s238, 63
      %p242 = scmp.lt.s32.totalorder %s239, 8
      %s243 = scalar_select %p242, %s239, 8
      %s244 = smul.addr %s241, 9
      %s245 = sadd.s32 %s243, %s244
      %s246 = smul.addr %s245, 4
      %s247 = scalar_lea.vmem %s0, %s246
      %p248 = pneg %p57
      %p249 = pneg %p54
      %s250 = smul.u32 144, %s22
      %p251 = scmp.lt.s32.totalorder %s250, 143
      %s252 = scalar_select %p251, %s250, 143
      %p253 = scmp.lt.s32.totalorder %s21, 0
      %s254 = scalar_select %p253, %s21, 0
      %s255 = sadd.s32 %s254, %s252
      %s256 = smul.addr %s255, 4
      %s257 = scalar_lea.vmem %s1, %s256
      %p258 = pneg %p85
      %p259 = pneg %p82
      %p260 = scmp.lt.s32.totalorder %s21, 0
      %s261 = scalar_select %p260, %s21, 0
      %s262 = scalar_lea.vmem %s2, %s261
      %p263 = pneg %p111
      %p264 = pneg %p108
      %s265 = smul.u32 32, %s20
      %p266 = scmp.lt.s32.totalorder %s265, 63
      %s267 = scalar_select %p266, %s265, 63
      %p268 = scmp.lt.s32.totalorder %s21, 0
      %s269 = scalar_select %p268, %s21, 0
      %s270 = sadd.s32 %s269, %s267
      %s271 = smul.addr %s270, 4
      %s272 = scalar_lea.vmem %s3, %s271
      %p273 = pneg %p139
      %p274 = pneg %p136
      %p275 = pneg %p167
      %p276 = pneg %p164
      %s277 = smul.u32 32, %s20
      %p278 = scmp.lt.s32.totalorder %s277, 63
      %s279 = scalar_select %p278, %s277, 63
      %p280 = scmp.lt.s32.totalorder %s21, 0
      %s281 = scalar_select %p280, %s21, 0
      %s282 = sadd.s32 %s281, %s279
      %s283 = smul.addr %s282, 4
      %s284 = scalar_lea.vmem %s4, %s283
      %s285 = smul.u32 32, %s20
      %s286 = smul.u32 9, %s22
      %p287 = scmp.lt.s32.totalorder %s285, 63
      %s288 = scalar_select %p287, %s285, 63
      %p289 = scmp.lt.s32.totalorder %s286, 8
      %s290 = scalar_select %p289, %s286, 8
      %s291 = smul.addr %s288, 9
      %s292 = sadd.s32 %s290, %s291
      %s293 = smul.addr %s292, 4
      %s294 = scalar_lea.vmem %s0, %s293
      %s295 = smul.u32 32, %s20
      %s296 = smul.u32 9, %s22
      %s297 = smul.u32 144, %s22
      %p298 = scmp.lt.s32.totalorder %s297, 143
      %s299 = scalar_select %p298, %s297, 143
      %p300 = scmp.lt.s32.totalorder %s21, 0
      %s301 = scalar_select %p300, %s21, 0
      %s302 = sadd.s32 %s301, %s299
      %s303 = smul.addr %s302, 4
      %s304 = scalar_lea.vmem %s1, %s303
      %s305 = smul.u32 144, %s22
      %p306 = scmp.lt.s32.totalorder %s21, 0
      %s307 = scalar_select %p306, %s21, 0
      %s308 = scalar_lea.vmem %s2, %s307
      %s309 = smul.u32 32, %s20
      %p310 = scmp.lt.s32.totalorder %s309, 63
      %s311 = scalar_select %p310, %s309, 63
      %p312 = scmp.lt.s32.totalorder %s21, 0
      %s313 = scalar_select %p312, %s21, 0
      %s314 = sadd.s32 %s313, %s311
      %s315 = smul.addr %s314, 4
      %s316 = scalar_lea.vmem %s3, %s315
      %s317 = smul.u32 32, %s20
      %s318 = smul.u32 32, %s20
      %p319 = scmp.lt.s32.totalorder %s318, 63
      %s320 = scalar_select %p319, %s318, 63
      %p321 = scmp.lt.s32.totalorder %s21, 0
      %s322 = scalar_select %p321, %s21, 0
      %s323 = sadd.s32 %s322, %s320
      %s324 = smul.addr %s323, 4
      %s325 = scalar_lea.vmem %s4, %s324
      %s326 = smul.u32 32, %s20
      %v328 = vld [vmem:[%s294] sm:$0xff]
      %v329 = vld [vmem:[%s294 + $0x8] sm:$0xff]
      %v330 = vld [vmem:[%s294 + $0x10] sm:$0xff]
      %v331 = vld [vmem:[%s294 + $0x18] sm:$0xff]
      %v332 = vld [vmem:[%s294 + $0x20] sm:$0xf]
      %v333 = vld [vmem:[%s294 + $0x24] sm:$0xff]
      %v334 = vld [vmem:[%s294 + $0x2c] sm:$0xff]
      %v335 = vld [vmem:[%s294 + $0x34] sm:$0xff]
      %v336 = vld [vmem:[%s294 + $0x3c] sm:$0xff]
      %v337 = vld [vmem:[%s294 + $0x44] sm:$0xf]
      %v338 = vld [vmem:[%s294 + $0x48] sm:$0xff]
      %v339 = vld [vmem:[%s294 + $0x50] sm:$0xff]
      %v340 = vld [vmem:[%s294 + $0x58] sm:$0xff]
      %v341 = vld [vmem:[%s294 + $0x60] sm:$0xff]
      %v342 = vld [vmem:[%s294 + $0x68] sm:$0xf]
      %v343 = vld [vmem:[%s294 + $0x6c] sm:$0xff]
      %v344 = vld [vmem:[%s294 + $0x74] sm:$0xff]
      %v345 = vld [vmem:[%s294 + $0x7c] sm:$0xff]
      %v346 = vld [vmem:[%s294 + $0x84] sm:$0xff]
      %v347 = vld [vmem:[%s294 + $0x8c] sm:$0xf]
      %v348 = vld [vmem:[%s294 + $0x90] sm:$0xff]
      %v349 = vld [vmem:[%s294 + $0x98] sm:$0xff]
      %v350 = vld [vmem:[%s294 + $0xa0] sm:$0xff]
      %v351 = vld [vmem:[%s294 + $0xa8] sm:$0xff]
      %v352 = vld [vmem:[%s294 + $0xb0] sm:$0xf]
      %v353 = vld [vmem:[%s294 + $0xb4] sm:$0xff]
      %v354 = vld [vmem:[%s294 + $0xbc] sm:$0xff]
      %v355 = vld [vmem:[%s294 + $0xc4] sm:$0xff]
      %v356 = vld [vmem:[%s294 + $0xcc] sm:$0xff]
      %v357 = vld [vmem:[%s294 + $0xd4] sm:$0xf]
      %v358 = vld [vmem:[%s294 + $0xd8] sm:$0xff]
      %v359 = vld [vmem:[%s294 + $0xe0] sm:$0xff]
      %v360 = vld [vmem:[%s294 + $0xe8] sm:$0xff]
      %v361 = vld [vmem:[%s294 + $0xf0] sm:$0xff]
      %v362 = vld [vmem:[%s294 + $0xf8] sm:$0xf]
      %v363 = vld [vmem:[%s294 + $0xfc] sm:$0xff]
      %v364 = vld [vmem:[%s294 + $0x104] sm:$0xff]
      %v365 = vld [vmem:[%s294 + $0x10c] sm:$0xff]
      %v366 = vld [vmem:[%s294 + $0x114] sm:$0xff]
      %v367 = vld [vmem:[%s294 + $0x11c] sm:$0xf]
      %v368 = vld [vmem:[%s294 + $0x120] sm:$0xff]
      %v369 = vld [vmem:[%s294 + $0x128] sm:$0xff]
      %v370 = vld [vmem:[%s294 + $0x130] sm:$0xff]
      %v371 = vld [vmem:[%s294 + $0x138] sm:$0xff]
      %v372 = vld [vmem:[%s294 + $0x140] sm:$0xf]
      %v373 = vld [vmem:[%s294 + $0x144] sm:$0xff]
      %v374 = vld [vmem:[%s294 + $0x14c] sm:$0xff]
      %v375 = vld [vmem:[%s294 + $0x154] sm:$0xff]
      %v376 = vld [vmem:[%s294 + $0x15c] sm:$0xff]
      %v377 = vld [vmem:[%s294 + $0x164] sm:$0xf]
      %v378 = vld [vmem:[%s294 + $0x168] sm:$0xff]
      %v379 = vld [vmem:[%s294 + $0x170] sm:$0xff]
      %v380 = vld [vmem:[%s294 + $0x178] sm:$0xff]
      %v381 = vld [vmem:[%s294 + $0x180] sm:$0xff]
      %v382 = vld [vmem:[%s294 + $0x188] sm:$0xf]
      %v383 = vld [vmem:[%s294 + $0x18c] sm:$0xff]
      %v384 = vld [vmem:[%s294 + $0x194] sm:$0xff]
      %v385 = vld [vmem:[%s294 + $0x19c] sm:$0xff]
      %v386 = vld [vmem:[%s294 + $0x1a4] sm:$0xff]
      %v387 = vld [vmem:[%s294 + $0x1ac] sm:$0xf]
      %v388 = vld [vmem:[%s294 + $0x1b0] sm:$0xff]
      %v389 = vld [vmem:[%s294 + $0x1b8] sm:$0xff]
      %v390 = vld [vmem:[%s294 + $0x1c0] sm:$0xff]
      %v391 = vld [vmem:[%s294 + $0x1c8] sm:$0xff]
      %v392 = vld [vmem:[%s294 + $0x1d0] sm:$0xf]
      %v393 = vld [vmem:[%s294 + $0x1d4] sm:$0xff]
      %v394 = vld [vmem:[%s294 + $0x1dc] sm:$0xff]
      %v395 = vld [vmem:[%s294 + $0x1e4] sm:$0xff]
      %v396 = vld [vmem:[%s294 + $0x1ec] sm:$0xff]
      %v397 = vld [vmem:[%s294 + $0x1f4] sm:$0xf]
      %v398 = vld [vmem:[%s294 + $0x1f8] sm:$0xff]
      %v399 = vld [vmem:[%s294 + $0x200] sm:$0xff]
      %v400 = vld [vmem:[%s294 + $0x208] sm:$0xff]
      %v401 = vld [vmem:[%s294 + $0x210] sm:$0xff]
      %v402 = vld [vmem:[%s294 + $0x218] sm:$0xf]
      %v403 = vld [vmem:[%s294 + $0x21c] sm:$0xff]
      %v404 = vld [vmem:[%s294 + $0x224] sm:$0xff]
      %v405 = vld [vmem:[%s294 + $0x22c] sm:$0xff]
      %v406 = vld [vmem:[%s294 + $0x234] sm:$0xff]
      %v407 = vld [vmem:[%s294 + $0x23c] sm:$0xf]
      %v408 = vld [vmem:[%s294 + $0x240] sm:$0xff]
      %v409 = vld [vmem:[%s294 + $0x248] sm:$0xff]
      %v410 = vld [vmem:[%s294 + $0x250] sm:$0xff]
      %v411 = vld [vmem:[%s294 + $0x258] sm:$0xff]
      %v412 = vld [vmem:[%s294 + $0x260] sm:$0xf]
      %v413 = vld [vmem:[%s294 + $0x264] sm:$0xff]
      %v414 = vld [vmem:[%s294 + $0x26c] sm:$0xff]
      %v415 = vld [vmem:[%s294 + $0x274] sm:$0xff]
      %v416 = vld [vmem:[%s294 + $0x27c] sm:$0xff]
      %v417 = vld [vmem:[%s294 + $0x284] sm:$0xf]
      %v418 = vld [vmem:[%s294 + $0x288] sm:$0xff]
      %v419 = vld [vmem:[%s294 + $0x290] sm:$0xff]
      %v420 = vld [vmem:[%s294 + $0x298] sm:$0xff]
      %v421 = vld [vmem:[%s294 + $0x2a0] sm:$0xff]
      %v422 = vld [vmem:[%s294 + $0x2a8] sm:$0xf]
      %v423 = vld [vmem:[%s294 + $0x2ac] sm:$0xff]
      %v424 = vld [vmem:[%s294 + $0x2b4] sm:$0xff]
      %v425 = vld [vmem:[%s294 + $0x2bc] sm:$0xff]
      %v426 = vld [vmem:[%s294 + $0x2c4] sm:$0xff]
      %v427 = vld [vmem:[%s294 + $0x2cc] sm:$0xf]
      %v428 = vld [vmem:[%s294 + $0x2d0] sm:$0xff]
      %v429 = vld [vmem:[%s294 + $0x2d8] sm:$0xff]
      %v430 = vld [vmem:[%s294 + $0x2e0] sm:$0xff]
      %v431 = vld [vmem:[%s294 + $0x2e8] sm:$0xff]
      %v432 = vld [vmem:[%s294 + $0x2f0] sm:$0xf]
      %v433 = vld [vmem:[%s294 + $0x2f4] sm:$0xff]
      %v434 = vld [vmem:[%s294 + $0x2fc] sm:$0xff]
      %v435 = vld [vmem:[%s294 + $0x304] sm:$0xff]
      %v436 = vld [vmem:[%s294 + $0x30c] sm:$0xff]
      %v437 = vld [vmem:[%s294 + $0x314] sm:$0xf]
      %v438 = vld [vmem:[%s294 + $0x318] sm:$0xff]
      %v439 = vld [vmem:[%s294 + $0x320] sm:$0xff]
      %v440 = vld [vmem:[%s294 + $0x328] sm:$0xff]
      %v441 = vld [vmem:[%s294 + $0x330] sm:$0xff]
      %v442 = vld [vmem:[%s294 + $0x338] sm:$0xf]
      %v443 = vld [vmem:[%s294 + $0x33c] sm:$0xff]
      %v444 = vld [vmem:[%s294 + $0x344] sm:$0xff]
      %v445 = vld [vmem:[%s294 + $0x34c] sm:$0xff]
      %v446 = vld [vmem:[%s294 + $0x354] sm:$0xff]
      %v447 = vld [vmem:[%s294 + $0x35c] sm:$0xf]
      %v448 = vld [vmem:[%s294 + $0x360] sm:$0xff]
      %v449 = vld [vmem:[%s294 + $0x368] sm:$0xff]
      %v450 = vld [vmem:[%s294 + $0x370] sm:$0xff]
      %v451 = vld [vmem:[%s294 + $0x378] sm:$0xff]
      %v452 = vld [vmem:[%s294 + $0x380] sm:$0xf]
      %v453 = vld [vmem:[%s294 + $0x384] sm:$0xff]
      %v454 = vld [vmem:[%s294 + $0x38c] sm:$0xff]
      %v455 = vld [vmem:[%s294 + $0x394] sm:$0xff]
      %v456 = vld [vmem:[%s294 + $0x39c] sm:$0xff]
      %v457 = vld [vmem:[%s294 + $0x3a4] sm:$0xf]
      %v458 = vld [vmem:[%s294 + $0x3a8] sm:$0xff]
      %v459 = vld [vmem:[%s294 + $0x3b0] sm:$0xff]
      %v460 = vld [vmem:[%s294 + $0x3b8] sm:$0xff]
      %v461 = vld [vmem:[%s294 + $0x3c0] sm:$0xff]
      %v462 = vld [vmem:[%s294 + $0x3c8] sm:$0xf]
      %v463 = vld [vmem:[%s294 + $0x3cc] sm:$0xff]
      %v464 = vld [vmem:[%s294 + $0x3d4] sm:$0xff]
      %v465 = vld [vmem:[%s294 + $0x3dc] sm:$0xff]
      %v466 = vld [vmem:[%s294 + $0x3e4] sm:$0xff]
      %v467 = vld [vmem:[%s294 + $0x3ec] sm:$0xf]
      %v468 = vld [vmem:[%s294 + $0x3f0] sm:$0xff]
      %v469 = vld [vmem:[%s294 + $0x3f8] sm:$0xff]
      %v470 = vld [vmem:[%s294 + $0x400] sm:$0xff]
      %v471 = vld [vmem:[%s294 + $0x408] sm:$0xff]
      %v472 = vld [vmem:[%s294 + $0x410] sm:$0xf]
      %v473 = vld [vmem:[%s294 + $0x414] sm:$0xff]
      %v474 = vld [vmem:[%s294 + $0x41c] sm:$0xff]
      %v475 = vld [vmem:[%s294 + $0x424] sm:$0xff]
      %v476 = vld [vmem:[%s294 + $0x42c] sm:$0xff]
      %v477 = vld [vmem:[%s294 + $0x434] sm:$0xf]
      %v478 = vld [vmem:[%s294 + $0x438] sm:$0xff]
      %v479 = vld [vmem:[%s294 + $0x440] sm:$0xff]
      %v480 = vld [vmem:[%s294 + $0x448] sm:$0xff]
      %v481 = vld [vmem:[%s294 + $0x450] sm:$0xff]
      %v482 = vld [vmem:[%s294 + $0x458] sm:$0xf]
      %v483 = vld [vmem:[%s294 + $0x45c] sm:$0xff]
      %v484 = vld [vmem:[%s294 + $0x464] sm:$0xff]
      %v485 = vld [vmem:[%s294 + $0x46c] sm:$0xff]
      %v486 = vld [vmem:[%s294 + $0x474] sm:$0xff]
      %v487 = vld [vmem:[%s294 + $0x47c] sm:$0xf]
      %v488 = vld [vmem:[%s304] sm:$0xf]
      %v489 = vld [vmem:[%s304 + $0x4] sm:$0xf]
      %v490 = vld [vmem:[%s304 + $0x8] sm:$0xf]
      %v491 = vld [vmem:[%s304 + $0xc] sm:$0xf]
      %v492 = vld [vmem:[%s304 + $0x10] sm:$0xf]
      %v493 = vld [vmem:[%s304 + $0x14] sm:$0xf]
      %v494 = vld [vmem:[%s304 + $0x18] sm:$0xf]
      %v495 = vld [vmem:[%s304 + $0x1c] sm:$0xf]
      %v496 = vld [vmem:[%s304 + $0x20] sm:$0xf]
      %v497 = vld [vmem:[%s304 + $0x24] sm:$0xf]
      %v498 = vld [vmem:[%s304 + $0x28] sm:$0xf]
      %v499 = vld [vmem:[%s304 + $0x2c] sm:$0xf]
      %v500 = vld [vmem:[%s304 + $0x30] sm:$0xf]
      %v501 = vld [vmem:[%s304 + $0x34] sm:$0xf]
      %v502 = vld [vmem:[%s304 + $0x38] sm:$0xf]
      %v503 = vld [vmem:[%s304 + $0x3c] sm:$0xf]
      %v504 = vld [vmem:[%s304 + $0x40] sm:$0xf]
      %v505 = vld [vmem:[%s304 + $0x44] sm:$0xf]
      %v506 = vld [vmem:[%s304 + $0x48] sm:$0xf]
      %v507 = vld [vmem:[%s304 + $0x4c] sm:$0xf]
      %v508 = vld [vmem:[%s304 + $0x50] sm:$0xf]
      %v509 = vld [vmem:[%s304 + $0x54] sm:$0xf]
      %v510 = vld [vmem:[%s304 + $0x58] sm:$0xf]
      %v511 = vld [vmem:[%s304 + $0x5c] sm:$0xf]
      %v512 = vld [vmem:[%s304 + $0x60] sm:$0xf]
      %v513 = vld [vmem:[%s304 + $0x64] sm:$0xf]
      %v514 = vld [vmem:[%s304 + $0x68] sm:$0xf]
      %v515 = vld [vmem:[%s304 + $0x6c] sm:$0xf]
      %v516 = vld [vmem:[%s304 + $0x70] sm:$0xf]
      %v517 = vld [vmem:[%s304 + $0x74] sm:$0xf]
      %v518 = vld [vmem:[%s304 + $0x78] sm:$0xf]
      %v519 = vld [vmem:[%s304 + $0x7c] sm:$0xf]
      %v520 = vld [vmem:[%s304 + $0x80] sm:$0xf]
      %v521 = vld [vmem:[%s304 + $0x84] sm:$0xf]
      %v522 = vld [vmem:[%s304 + $0x88] sm:$0xf]
      %v523 = vld [vmem:[%s304 + $0x8c] sm:$0xf]
      %v524 = vld [vmem:[%s304 + $0x90] sm:$0xf]
      %v525 = vld [vmem:[%s304 + $0x94] sm:$0xf]
      %v526 = vld [vmem:[%s304 + $0x98] sm:$0xf]
      %v527 = vld [vmem:[%s304 + $0x9c] sm:$0xf]
      %v528 = vld [vmem:[%s304 + $0xa0] sm:$0xf]
      %v529 = vld [vmem:[%s304 + $0xa4] sm:$0xf]
      %v530 = vld [vmem:[%s304 + $0xa8] sm:$0xf]
      %v531 = vld [vmem:[%s304 + $0xac] sm:$0xf]
      %v532 = vld [vmem:[%s304 + $0xb0] sm:$0xf]
      %v533 = vld [vmem:[%s304 + $0xb4] sm:$0xf]
      %v534 = vld [vmem:[%s304 + $0xb8] sm:$0xf]
      %v535 = vld [vmem:[%s304 + $0xbc] sm:$0xf]
      %v536 = vld [vmem:[%s304 + $0xc0] sm:$0xf]
      %v537 = vld [vmem:[%s304 + $0xc4] sm:$0xf]
      %v538 = vld [vmem:[%s304 + $0xc8] sm:$0xf]
      %v539 = vld [vmem:[%s304 + $0xcc] sm:$0xf]
      %v540 = vld [vmem:[%s304 + $0xd0] sm:$0xf]
      %v541 = vld [vmem:[%s304 + $0xd4] sm:$0xf]
      %v542 = vld [vmem:[%s304 + $0xd8] sm:$0xf]
      %v543 = vld [vmem:[%s304 + $0xdc] sm:$0xf]
      %v544 = vld [vmem:[%s304 + $0xe0] sm:$0xf]
      %v545 = vld [vmem:[%s304 + $0xe4] sm:$0xf]
      %v546 = vld [vmem:[%s304 + $0xe8] sm:$0xf]
      %v547 = vld [vmem:[%s304 + $0xec] sm:$0xf]
      %v548 = vld [vmem:[%s304 + $0xf0] sm:$0xf]
      %v549 = vld [vmem:[%s304 + $0xf4] sm:$0xf]
      %v550 = vld [vmem:[%s304 + $0xf8] sm:$0xf]
      %v551 = vld [vmem:[%s304 + $0xfc] sm:$0xf]
      %v552 = vld [vmem:[%s304 + $0x100] sm:$0xf]
      %v553 = vld [vmem:[%s304 + $0x104] sm:$0xf]
      %v554 = vld [vmem:[%s304 + $0x108] sm:$0xf]
      %v555 = vld [vmem:[%s304 + $0x10c] sm:$0xf]
      %v556 = vld [vmem:[%s304 + $0x110] sm:$0xf]
      %v557 = vld [vmem:[%s304 + $0x114] sm:$0xf]
      %v558 = vld [vmem:[%s304 + $0x118] sm:$0xf]
      %v559 = vld [vmem:[%s304 + $0x11c] sm:$0xf]
      %v560 = vld [vmem:[%s304 + $0x120] sm:$0xf]
      %v561 = vld [vmem:[%s304 + $0x124] sm:$0xf]
      %v562 = vld [vmem:[%s304 + $0x128] sm:$0xf]
      %v563 = vld [vmem:[%s304 + $0x12c] sm:$0xf]
      %v564 = vld [vmem:[%s304 + $0x130] sm:$0xf]
      %v565 = vld [vmem:[%s304 + $0x134] sm:$0xf]
      %v566 = vld [vmem:[%s304 + $0x138] sm:$0xf]
      %v567 = vld [vmem:[%s304 + $0x13c] sm:$0xf]
      %v568 = vld [vmem:[%s304 + $0x140] sm:$0xf]
      %v569 = vld [vmem:[%s304 + $0x144] sm:$0xf]
      %v570 = vld [vmem:[%s304 + $0x148] sm:$0xf]
      %v571 = vld [vmem:[%s304 + $0x14c] sm:$0xf]
      %v572 = vld [vmem:[%s304 + $0x150] sm:$0xf]
      %v573 = vld [vmem:[%s304 + $0x154] sm:$0xf]
      %v574 = vld [vmem:[%s304 + $0x158] sm:$0xf]
      %v575 = vld [vmem:[%s304 + $0x15c] sm:$0xf]
      %v576 = vld [vmem:[%s304 + $0x160] sm:$0xf]
      %v577 = vld [vmem:[%s304 + $0x164] sm:$0xf]
      %v578 = vld [vmem:[%s304 + $0x168] sm:$0xf]
      %v579 = vld [vmem:[%s304 + $0x16c] sm:$0xf]
      %v580 = vld [vmem:[%s304 + $0x170] sm:$0xf]
      %v581 = vld [vmem:[%s304 + $0x174] sm:$0xf]
      %v582 = vld [vmem:[%s304 + $0x178] sm:$0xf]
      %v583 = vld [vmem:[%s304 + $0x17c] sm:$0xf]
      %v584 = vld [vmem:[%s304 + $0x180] sm:$0xf]
      %v585 = vld [vmem:[%s304 + $0x184] sm:$0xf]
      %v586 = vld [vmem:[%s304 + $0x188] sm:$0xf]
      %v587 = vld [vmem:[%s304 + $0x18c] sm:$0xf]
      %v588 = vld [vmem:[%s304 + $0x190] sm:$0xf]
      %v589 = vld [vmem:[%s304 + $0x194] sm:$0xf]
      %v590 = vld [vmem:[%s304 + $0x198] sm:$0xf]
      %v591 = vld [vmem:[%s304 + $0x19c] sm:$0xf]
      %v592 = vld [vmem:[%s304 + $0x1a0] sm:$0xf]
      %v593 = vld [vmem:[%s304 + $0x1a4] sm:$0xf]
      %v594 = vld [vmem:[%s304 + $0x1a8] sm:$0xf]
      %v595 = vld [vmem:[%s304 + $0x1ac] sm:$0xf]
      %v596 = vld [vmem:[%s304 + $0x1b0] sm:$0xf]
      %v597 = vld [vmem:[%s304 + $0x1b4] sm:$0xf]
      %v598 = vld [vmem:[%s304 + $0x1b8] sm:$0xf]
      %v599 = vld [vmem:[%s304 + $0x1bc] sm:$0xf]
      %v600 = vld [vmem:[%s304 + $0x1c0] sm:$0xf]
      %v601 = vld [vmem:[%s304 + $0x1c4] sm:$0xf]
      %v602 = vld [vmem:[%s304 + $0x1c8] sm:$0xf]
      %v603 = vld [vmem:[%s304 + $0x1cc] sm:$0xf]
      %v604 = vld [vmem:[%s304 + $0x1d0] sm:$0xf]
      %v605 = vld [vmem:[%s304 + $0x1d4] sm:$0xf]
      %v606 = vld [vmem:[%s304 + $0x1d8] sm:$0xf]
      %v607 = vld [vmem:[%s304 + $0x1dc] sm:$0xf]
      %v608 = vld [vmem:[%s304 + $0x1e0] sm:$0xf]
      %v609 = vld [vmem:[%s304 + $0x1e4] sm:$0xf]
      %v610 = vld [vmem:[%s304 + $0x1e8] sm:$0xf]
      %v611 = vld [vmem:[%s304 + $0x1ec] sm:$0xf]
      %v612 = vld [vmem:[%s304 + $0x1f0] sm:$0xf]
      %v613 = vld [vmem:[%s304 + $0x1f4] sm:$0xf]
      %v614 = vld [vmem:[%s304 + $0x1f8] sm:$0xf]
      %v615 = vld [vmem:[%s304 + $0x1fc] sm:$0xf]
      %v616 = vld [vmem:[%s304 + $0x200] sm:$0xf]
      %v617 = vld [vmem:[%s304 + $0x204] sm:$0xf]
      %v618 = vld [vmem:[%s304 + $0x208] sm:$0xf]
      %v619 = vld [vmem:[%s304 + $0x20c] sm:$0xf]
      %v620 = vld [vmem:[%s304 + $0x210] sm:$0xf]
      %v621 = vld [vmem:[%s304 + $0x214] sm:$0xf]
      %v622 = vld [vmem:[%s304 + $0x218] sm:$0xf]
      %v623 = vld [vmem:[%s304 + $0x21c] sm:$0xf]
      %v624 = vld [vmem:[%s304 + $0x220] sm:$0xf]
      %v625 = vld [vmem:[%s304 + $0x224] sm:$0xf]
      %v626 = vld [vmem:[%s304 + $0x228] sm:$0xf]
      %v627 = vld [vmem:[%s304 + $0x22c] sm:$0xf]
      %v628 = vld [vmem:[%s304 + $0x230] sm:$0xf]
      %v629 = vld [vmem:[%s304 + $0x234] sm:$0xf]
      %v630 = vld [vmem:[%s304 + $0x238] sm:$0xf]
      %v631 = vld [vmem:[%s304 + $0x23c] sm:$0xf]
      %v632 = vld [vmem:[%s308] sm:$0x1]
      %v634 = vlaneseq
      %v635 = vshrl.u32 %v634, 7
      %v636 = vsub.s32 0, %v635
      %v637 = vrot.slane %v632, %v636
      %v799 = vunpack.c.l.b16 %v328
      %v800 = vunpack.c.h.b16 %v328
      %v801 = vunpack.c.l.b16 %v329
      %v802 = vunpack.c.h.b16 %v329
      %v803 = vunpack.c.l.b16 %v330
      %v804 = vunpack.c.h.b16 %v330
      %v805 = vunpack.c.l.b16 %v331
      %v806 = vunpack.c.h.b16 %v331
      %v807 = vunpack.c.l.b16 %v332
      %v808 = vunpack.c.l.b16 %v333
      %v809 = vunpack.c.h.b16 %v333
      %v810 = vunpack.c.l.b16 %v334
      %v811 = vunpack.c.h.b16 %v334
      %v812 = vunpack.c.l.b16 %v335
      %v813 = vunpack.c.h.b16 %v335
      %v814 = vunpack.c.l.b16 %v336
      %v815 = vunpack.c.h.b16 %v336
      %v816 = vunpack.c.l.b16 %v337
      %v817 = vunpack.c.l.b16 %v338
      %v818 = vunpack.c.h.b16 %v338
      %v819 = vunpack.c.l.b16 %v339
      %v820 = vunpack.c.h.b16 %v339
      %v821 = vunpack.c.l.b16 %v340
      %v822 = vunpack.c.h.b16 %v340
      %v823 = vunpack.c.l.b16 %v341
      %v824 = vunpack.c.h.b16 %v341
      %v825 = vunpack.c.l.b16 %v342
      %v826 = vunpack.c.l.b16 %v343
      %v827 = vunpack.c.h.b16 %v343
      %v828 = vunpack.c.l.b16 %v344
      %v829 = vunpack.c.h.b16 %v344
      %v830 = vunpack.c.l.b16 %v345
      %v831 = vunpack.c.h.b16 %v345
      %v832 = vunpack.c.l.b16 %v346
      %v833 = vunpack.c.h.b16 %v346
      %v834 = vunpack.c.l.b16 %v347
      %v835 = vunpack.c.l.b16 %v348
      %v836 = vunpack.c.h.b16 %v348
      %v837 = vunpack.c.l.b16 %v349
      %v838 = vunpack.c.h.b16 %v349
      %v839 = vunpack.c.l.b16 %v350
      %v840 = vunpack.c.h.b16 %v350
      %v841 = vunpack.c.l.b16 %v351
      %v842 = vunpack.c.h.b16 %v351
      %v843 = vunpack.c.l.b16 %v352
      %v844 = vunpack.c.l.b16 %v353
      %v845 = vunpack.c.h.b16 %v353
      %v846 = vunpack.c.l.b16 %v354
      %v847 = vunpack.c.h.b16 %v354
      %v848 = vunpack.c.l.b16 %v355
      %v849 = vunpack.c.h.b16 %v355
      %v850 = vunpack.c.l.b16 %v356
      %v851 = vunpack.c.h.b16 %v356
      %v852 = vunpack.c.l.b16 %v357
      %v853 = vunpack.c.l.b16 %v358
      %v854 = vunpack.c.h.b16 %v358
      %v855 = vunpack.c.l.b16 %v359
      %v856 = vunpack.c.h.b16 %v359
      %v857 = vunpack.c.l.b16 %v360
      %v858 = vunpack.c.h.b16 %v360
      %v859 = vunpack.c.l.b16 %v361
      %v860 = vunpack.c.h.b16 %v361
      %v861 = vunpack.c.l.b16 %v362
      %v862 = vunpack.c.l.b16 %v363
      %v863 = vunpack.c.h.b16 %v363
      %v864 = vunpack.c.l.b16 %v364
      %v865 = vunpack.c.h.b16 %v364
      %v866 = vunpack.c.l.b16 %v365
      %v867 = vunpack.c.h.b16 %v365
      %v868 = vunpack.c.l.b16 %v366
      %v869 = vunpack.c.h.b16 %v366
      %v870 = vunpack.c.l.b16 %v367
      %v871 = vunpack.c.l.b16 %v368
      %v872 = vunpack.c.h.b16 %v368
      %v873 = vunpack.c.l.b16 %v369
      %v874 = vunpack.c.h.b16 %v369
      %v875 = vunpack.c.l.b16 %v370
      %v876 = vunpack.c.h.b16 %v370
      %v877 = vunpack.c.l.b16 %v371
      %v878 = vunpack.c.h.b16 %v371
      %v879 = vunpack.c.l.b16 %v372
      %v880 = vunpack.c.l.b16 %v373
      %v881 = vunpack.c.h.b16 %v373
      %v882 = vunpack.c.l.b16 %v374
      %v883 = vunpack.c.h.b16 %v374
      %v884 = vunpack.c.l.b16 %v375
      %v885 = vunpack.c.h.b16 %v375
      %v886 = vunpack.c.l.b16 %v376
      %v887 = vunpack.c.h.b16 %v376
      %v888 = vunpack.c.l.b16 %v377
      %v889 = vunpack.c.l.b16 %v378
      %v890 = vunpack.c.h.b16 %v378
      %v891 = vunpack.c.l.b16 %v379
      %v892 = vunpack.c.h.b16 %v379
      %v893 = vunpack.c.l.b16 %v380
      %v894 = vunpack.c.h.b16 %v380
      %v895 = vunpack.c.l.b16 %v381
      %v896 = vunpack.c.h.b16 %v381
      %v897 = vunpack.c.l.b16 %v382
      %v898 = vunpack.c.l.b16 %v383
      %v899 = vunpack.c.h.b16 %v383
      %v900 = vunpack.c.l.b16 %v384
      %v901 = vunpack.c.h.b16 %v384
      %v902 = vunpack.c.l.b16 %v385
      %v903 = vunpack.c.h.b16 %v385
      %v904 = vunpack.c.l.b16 %v386
      %v905 = vunpack.c.h.b16 %v386
      %v906 = vunpack.c.l.b16 %v387
      %v907 = vunpack.c.l.b16 %v388
      %v908 = vunpack.c.h.b16 %v388
      %v909 = vunpack.c.l.b16 %v389
      %v910 = vunpack.c.h.b16 %v389
      %v911 = vunpack.c.l.b16 %v390
      %v912 = vunpack.c.h.b16 %v390
      %v913 = vunpack.c.l.b16 %v391
      %v914 = vunpack.c.h.b16 %v391
      %v915 = vunpack.c.l.b16 %v392
      %v916 = vunpack.c.l.b16 %v393
      %v917 = vunpack.c.h.b16 %v393
      %v918 = vunpack.c.l.b16 %v394
      %v919 = vunpack.c.h.b16 %v394
      %v920 = vunpack.c.l.b16 %v395
      %v921 = vunpack.c.h.b16 %v395
      %v922 = vunpack.c.l.b16 %v396
      %v923 = vunpack.c.h.b16 %v396
      %v924 = vunpack.c.l.b16 %v397
      %v925 = vunpack.c.l.b16 %v398
      %v926 = vunpack.c.h.b16 %v398
      %v927 = vunpack.c.l.b16 %v399
      %v928 = vunpack.c.h.b16 %v399
      %v929 = vunpack.c.l.b16 %v400
      %v930 = vunpack.c.h.b16 %v400
      %v931 = vunpack.c.l.b16 %v401
      %v932 = vunpack.c.h.b16 %v401
      %v933 = vunpack.c.l.b16 %v402
      %v934 = vunpack.c.l.b16 %v403
      %v935 = vunpack.c.h.b16 %v403
      %v936 = vunpack.c.l.b16 %v404
      %v937 = vunpack.c.h.b16 %v404
      %v938 = vunpack.c.l.b16 %v405
      %v939 = vunpack.c.h.b16 %v405
      %v940 = vunpack.c.l.b16 %v406
      %v941 = vunpack.c.h.b16 %v406
      %v942 = vunpack.c.l.b16 %v407
      %v943 = vunpack.c.l.b16 %v408
      %v944 = vunpack.c.h.b16 %v408
      %v945 = vunpack.c.l.b16 %v409
      %v946 = vunpack.c.h.b16 %v409
      %v947 = vunpack.c.l.b16 %v410
      %v948 = vunpack.c.h.b16 %v410
      %v949 = vunpack.c.l.b16 %v411
      %v950 = vunpack.c.h.b16 %v411
      %v951 = vunpack.c.l.b16 %v412
      %v952 = vunpack.c.l.b16 %v413
      %v953 = vunpack.c.h.b16 %v413
      %v954 = vunpack.c.l.b16 %v414
      %v955 = vunpack.c.h.b16 %v414
      %v956 = vunpack.c.l.b16 %v415
      %v957 = vunpack.c.h.b16 %v415
      %v958 = vunpack.c.l.b16 %v416
      %v959 = vunpack.c.h.b16 %v416
      %v960 = vunpack.c.l.b16 %v417
      %v961 = vunpack.c.l.b16 %v418
      %v962 = vunpack.c.h.b16 %v418
      %v963 = vunpack.c.l.b16 %v419
      %v964 = vunpack.c.h.b16 %v419
      %v965 = vunpack.c.l.b16 %v420
      %v966 = vunpack.c.h.b16 %v420
      %v967 = vunpack.c.l.b16 %v421
      %v968 = vunpack.c.h.b16 %v421
      %v969 = vunpack.c.l.b16 %v422
      %v970 = vunpack.c.l.b16 %v423
      %v971 = vunpack.c.h.b16 %v423
      %v972 = vunpack.c.l.b16 %v424
      %v973 = vunpack.c.h.b16 %v424
      %v974 = vunpack.c.l.b16 %v425
      %v975 = vunpack.c.h.b16 %v425
      %v976 = vunpack.c.l.b16 %v426
      %v977 = vunpack.c.h.b16 %v426
      %v978 = vunpack.c.l.b16 %v427
      %v979 = vunpack.c.l.b16 %v428
      %v980 = vunpack.c.h.b16 %v428
      %v981 = vunpack.c.l.b16 %v429
      %v982 = vunpack.c.h.b16 %v429
      %v983 = vunpack.c.l.b16 %v430
      %v984 = vunpack.c.h.b16 %v430
      %v985 = vunpack.c.l.b16 %v431
      %v986 = vunpack.c.h.b16 %v431
      %v987 = vunpack.c.l.b16 %v432
      %v988 = vunpack.c.l.b16 %v433
      %v989 = vunpack.c.h.b16 %v433
      %v990 = vunpack.c.l.b16 %v434
      %v991 = vunpack.c.h.b16 %v434
      %v992 = vunpack.c.l.b16 %v435
      %v993 = vunpack.c.h.b16 %v435
      %v994 = vunpack.c.l.b16 %v436
      %v995 = vunpack.c.h.b16 %v436
      %v996 = vunpack.c.l.b16 %v437
      %v997 = vunpack.c.l.b16 %v438
      %v998 = vunpack.c.h.b16 %v438
      %v999 = vunpack.c.l.b16 %v439
      %v1000 = vunpack.c.h.b16 %v439
      %v1001 = vunpack.c.l.b16 %v440
      %v1002 = vunpack.c.h.b16 %v440
      %v1003 = vunpack.c.l.b16 %v441
      %v1004 = vunpack.c.h.b16 %v441
      %v1005 = vunpack.c.l.b16 %v442
      %v1006 = vunpack.c.l.b16 %v443
      %v1007 = vunpack.c.h.b16 %v443
      %v1008 = vunpack.c.l.b16 %v444
      %v1009 = vunpack.c.h.b16 %v444
      %v1010 = vunpack.c.l.b16 %v445
      %v1011 = vunpack.c.h.b16 %v445
      %v1012 = vunpack.c.l.b16 %v446
      %v1013 = vunpack.c.h.b16 %v446
      %v1014 = vunpack.c.l.b16 %v447
      %v1015 = vunpack.c.l.b16 %v448
      %v1016 = vunpack.c.h.b16 %v448
      %v1017 = vunpack.c.l.b16 %v449
      %v1018 = vunpack.c.h.b16 %v449
      %v1019 = vunpack.c.l.b16 %v450
      %v1020 = vunpack.c.h.b16 %v450
      %v1021 = vunpack.c.l.b16 %v451
      %v1022 = vunpack.c.h.b16 %v451
      %v1023 = vunpack.c.l.b16 %v452
      %v1024 = vunpack.c.l.b16 %v453
      %v1025 = vunpack.c.h.b16 %v453
      %v1026 = vunpack.c.l.b16 %v454
      %v1027 = vunpack.c.h.b16 %v454
      %v1028 = vunpack.c.l.b16 %v455
      %v1029 = vunpack.c.h.b16 %v455
      %v1030 = vunpack.c.l.b16 %v456
      %v1031 = vunpack.c.h.b16 %v456
      %v1032 = vunpack.c.l.b16 %v457
      %v1033 = vunpack.c.l.b16 %v458
      %v1034 = vunpack.c.h.b16 %v458
      %v1035 = vunpack.c.l.b16 %v459
      %v1036 = vunpack.c.h.b16 %v459
      %v1037 = vunpack.c.l.b16 %v460
      %v1038 = vunpack.c.h.b16 %v460
      %v1039 = vunpack.c.l.b16 %v461
      %v1040 = vunpack.c.h.b16 %v461
      %v1041 = vunpack.c.l.b16 %v462
      %v1042 = vunpack.c.l.b16 %v463
      %v1043 = vunpack.c.h.b16 %v463
      %v1044 = vunpack.c.l.b16 %v464
      %v1045 = vunpack.c.h.b16 %v464
      %v1046 = vunpack.c.l.b16 %v465
      %v1047 = vunpack.c.h.b16 %v465
      %v1048 = vunpack.c.l.b16 %v466
      %v1049 = vunpack.c.h.b16 %v466
      %v1050 = vunpack.c.l.b16 %v467
      %v1051 = vunpack.c.l.b16 %v468
      %v1052 = vunpack.c.h.b16 %v468
      %v1053 = vunpack.c.l.b16 %v469
      %v1054 = vunpack.c.h.b16 %v469
      %v1055 = vunpack.c.l.b16 %v470
      %v1056 = vunpack.c.h.b16 %v470
      %v1057 = vunpack.c.l.b16 %v471
      %v1058 = vunpack.c.h.b16 %v471
      %v1059 = vunpack.c.l.b16 %v472
      %v1060 = vunpack.c.l.b16 %v473
      %v1061 = vunpack.c.h.b16 %v473
      %v1062 = vunpack.c.l.b16 %v474
      %v1063 = vunpack.c.h.b16 %v474
      %v1064 = vunpack.c.l.b16 %v475
      %v1065 = vunpack.c.h.b16 %v475
      %v1066 = vunpack.c.l.b16 %v476
      %v1067 = vunpack.c.h.b16 %v476
      %v1068 = vunpack.c.l.b16 %v477
      %v1069 = vunpack.c.l.b16 %v478
      %v1070 = vunpack.c.h.b16 %v478
      %v1071 = vunpack.c.l.b16 %v479
      %v1072 = vunpack.c.h.b16 %v479
      %v1073 = vunpack.c.l.b16 %v480
      %v1074 = vunpack.c.h.b16 %v480
      %v1075 = vunpack.c.l.b16 %v481
      %v1076 = vunpack.c.h.b16 %v481
      %v1077 = vunpack.c.l.b16 %v482
      %v1078 = vunpack.c.l.b16 %v483
      %v1079 = vunpack.c.h.b16 %v483
      %v1080 = vunpack.c.l.b16 %v484
      %v1081 = vunpack.c.h.b16 %v484
      %v1082 = vunpack.c.l.b16 %v485
      %v1083 = vunpack.c.h.b16 %v485
      %v1084 = vunpack.c.l.b16 %v486
      %v1085 = vunpack.c.h.b16 %v486
      %v1086 = vunpack.c.l.b16 %v487
      %v1087 = vpack.c.b16 %v808, %v799
      %v1088 = vpack.c.b16 %v809, %v800
      %v1089 = vpack.c.b16 %v810, %v801
      %v1090 = vpack.c.b16 %v811, %v802
      %v1091 = vpack.c.b16 %v812, %v803
      %v1092 = vpack.c.b16 %v813, %v804
      %v1093 = vpack.c.b16 %v814, %v805
      %v1094 = vpack.c.b16 %v815, %v806
      %v1095 = vpack.c.b16 %v816, %v807
      %v1096 = vpack.c.b16 %v826, %v817
      %v1097 = vpack.c.b16 %v827, %v818
      %v1098 = vpack.c.b16 %v828, %v819
      %v1099 = vpack.c.b16 %v829, %v820
      %v1100 = vpack.c.b16 %v830, %v821
      %v1101 = vpack.c.b16 %v831, %v822
      %v1102 = vpack.c.b16 %v832, %v823
      %v1103 = vpack.c.b16 %v833, %v824
      %v1104 = vpack.c.b16 %v834, %v825
      %v1105 = vpack.c.b16 %v844, %v835
      %v1106 = vpack.c.b16 %v845, %v836
      %v1107 = vpack.c.b16 %v846, %v837
      %v1108 = vpack.c.b16 %v847, %v838
      %v1109 = vpack.c.b16 %v848, %v839
      %v1110 = vpack.c.b16 %v849, %v840
      %v1111 = vpack.c.b16 %v850, %v841
      %v1112 = vpack.c.b16 %v851, %v842
      %v1113 = vpack.c.b16 %v852, %v843
      %v1114 = vpack.c.b16 %v862, %v853
      %v1115 = vpack.c.b16 %v863, %v854
      %v1116 = vpack.c.b16 %v864, %v855
      %v1117 = vpack.c.b16 %v865, %v856
      %v1118 = vpack.c.b16 %v866, %v857
      %v1119 = vpack.c.b16 %v867, %v858
      %v1120 = vpack.c.b16 %v868, %v859
      %v1121 = vpack.c.b16 %v869, %v860
      %v1122 = vpack.c.b16 %v870, %v861
      %v1123 = vpack.c.b16 %v880, %v871
      %v1124 = vpack.c.b16 %v881, %v872
      %v1125 = vpack.c.b16 %v882, %v873
      %v1126 = vpack.c.b16 %v883, %v874
      %v1127 = vpack.c.b16 %v884, %v875
      %v1128 = vpack.c.b16 %v885, %v876
      %v1129 = vpack.c.b16 %v886, %v877
      %v1130 = vpack.c.b16 %v887, %v878
      %v1131 = vpack.c.b16 %v888, %v879
      %v1132 = vpack.c.b16 %v898, %v889
      %v1133 = vpack.c.b16 %v899, %v890
      %v1134 = vpack.c.b16 %v900, %v891
      %v1135 = vpack.c.b16 %v901, %v892
      %v1136 = vpack.c.b16 %v902, %v893
      %v1137 = vpack.c.b16 %v903, %v894
      %v1138 = vpack.c.b16 %v904, %v895
      %v1139 = vpack.c.b16 %v905, %v896
      %v1140 = vpack.c.b16 %v906, %v897
      %v1141 = vpack.c.b16 %v916, %v907
      %v1142 = vpack.c.b16 %v917, %v908
      %v1143 = vpack.c.b16 %v918, %v909
      %v1144 = vpack.c.b16 %v919, %v910
      %v1145 = vpack.c.b16 %v920, %v911
      %v1146 = vpack.c.b16 %v921, %v912
      %v1147 = vpack.c.b16 %v922, %v913
      %v1148 = vpack.c.b16 %v923, %v914
      %v1149 = vpack.c.b16 %v924, %v915
      %v1150 = vpack.c.b16 %v934, %v925
      %v1151 = vpack.c.b16 %v935, %v926
      %v1152 = vpack.c.b16 %v936, %v927
      %v1153 = vpack.c.b16 %v937, %v928
      %v1154 = vpack.c.b16 %v938, %v929
      %v1155 = vpack.c.b16 %v939, %v930
      %v1156 = vpack.c.b16 %v940, %v931
      %v1157 = vpack.c.b16 %v941, %v932
      %v1158 = vpack.c.b16 %v942, %v933
      %v1159 = vpack.c.b16 %v952, %v943
      %v1160 = vpack.c.b16 %v953, %v944
      %v1161 = vpack.c.b16 %v954, %v945
      %v1162 = vpack.c.b16 %v955, %v946
      %v1163 = vpack.c.b16 %v956, %v947
      %v1164 = vpack.c.b16 %v957, %v948
      %v1165 = vpack.c.b16 %v958, %v949
      %v1166 = vpack.c.b16 %v959, %v950
      %v1167 = vpack.c.b16 %v960, %v951
      %v1168 = vpack.c.b16 %v970, %v961
      %v1169 = vpack.c.b16 %v971, %v962
      %v1170 = vpack.c.b16 %v972, %v963
      %v1171 = vpack.c.b16 %v973, %v964
      %v1172 = vpack.c.b16 %v974, %v965
      %v1173 = vpack.c.b16 %v975, %v966
      %v1174 = vpack.c.b16 %v976, %v967
      %v1175 = vpack.c.b16 %v977, %v968
      %v1176 = vpack.c.b16 %v978, %v969
      %v1177 = vpack.c.b16 %v988, %v979
      %v1178 = vpack.c.b16 %v989, %v980
      %v1179 = vpack.c.b16 %v990, %v981
      %v1180 = vpack.c.b16 %v991, %v982
      %v1181 = vpack.c.b16 %v992, %v983
      %v1182 = vpack.c.b16 %v993, %v984
      %v1183 = vpack.c.b16 %v994, %v985
      %v1184 = vpack.c.b16 %v995, %v986
      %v1185 = vpack.c.b16 %v996, %v987
      %v1186 = vpack.c.b16 %v1006, %v997
      %v1187 = vpack.c.b16 %v1007, %v998
      %v1188 = vpack.c.b16 %v1008, %v999
      %v1189 = vpack.c.b16 %v1009, %v1000
      %v1190 = vpack.c.b16 %v1010, %v1001
      %v1191 = vpack.c.b16 %v1011, %v1002
      %v1192 = vpack.c.b16 %v1012, %v1003
      %v1193 = vpack.c.b16 %v1013, %v1004
      %v1194 = vpack.c.b16 %v1014, %v1005
      %v1195 = vpack.c.b16 %v1024, %v1015
      %v1196 = vpack.c.b16 %v1025, %v1016
      %v1197 = vpack.c.b16 %v1026, %v1017
      %v1198 = vpack.c.b16 %v1027, %v1018
      %v1199 = vpack.c.b16 %v1028, %v1019
      %v1200 = vpack.c.b16 %v1029, %v1020
      %v1201 = vpack.c.b16 %v1030, %v1021
      %v1202 = vpack.c.b16 %v1031, %v1022
      %v1203 = vpack.c.b16 %v1032, %v1023
      %v1204 = vpack.c.b16 %v1042, %v1033
      %v1205 = vpack.c.b16 %v1043, %v1034
      %v1206 = vpack.c.b16 %v1044, %v1035
      %v1207 = vpack.c.b16 %v1045, %v1036
      %v1208 = vpack.c.b16 %v1046, %v1037
      %v1209 = vpack.c.b16 %v1047, %v1038
      %v1210 = vpack.c.b16 %v1048, %v1039
      %v1211 = vpack.c.b16 %v1049, %v1040
      %v1212 = vpack.c.b16 %v1050, %v1041
      %v1213 = vpack.c.b16 %v1060, %v1051
      %v1214 = vpack.c.b16 %v1061, %v1052
      %v1215 = vpack.c.b16 %v1062, %v1053
      %v1216 = vpack.c.b16 %v1063, %v1054
      %v1217 = vpack.c.b16 %v1064, %v1055
      %v1218 = vpack.c.b16 %v1065, %v1056
      %v1219 = vpack.c.b16 %v1066, %v1057
      %v1220 = vpack.c.b16 %v1067, %v1058
      %v1221 = vpack.c.b16 %v1068, %v1059
      %v1222 = vpack.c.b16 %v1078, %v1069
      %v1223 = vpack.c.b16 %v1079, %v1070
      %v1224 = vpack.c.b16 %v1080, %v1071
      %v1225 = vpack.c.b16 %v1081, %v1072
      %v1226 = vpack.c.b16 %v1082, %v1073
      %v1227 = vpack.c.b16 %v1083, %v1074
      %v1228 = vpack.c.b16 %v1084, %v1075
      %v1229 = vpack.c.b16 %v1085, %v1076
      %v1230 = vpack.c.b16 %v1086, %v1077
      %v1519 = vunpack.c.l.b16 %v488
      %v1520 = vunpack.c.l.b16 %v489
      %v1521 = vunpack.c.l.b16 %v490
      %v1522 = vunpack.c.l.b16 %v491
      %v1523 = vunpack.c.l.b16 %v492
      %v1524 = vunpack.c.l.b16 %v493
      %v1525 = vunpack.c.l.b16 %v494
      %v1526 = vunpack.c.l.b16 %v495
      %v1527 = vunpack.c.l.b16 %v496
      %v1528 = vunpack.c.l.b16 %v497
      %v1529 = vunpack.c.l.b16 %v498
      %v1530 = vunpack.c.l.b16 %v499
      %v1531 = vunpack.c.l.b16 %v500
      %v1532 = vunpack.c.l.b16 %v501
      %v1533 = vunpack.c.l.b16 %v502
      %v1534 = vunpack.c.l.b16 %v503
      %v1535 = vunpack.c.l.b16 %v504
      %v1536 = vunpack.c.l.b16 %v505
      %v1537 = vunpack.c.l.b16 %v506
      %v1538 = vunpack.c.l.b16 %v507
      %v1539 = vunpack.c.l.b16 %v508
      %v1540 = vunpack.c.l.b16 %v509
      %v1541 = vunpack.c.l.b16 %v510
      %v1542 = vunpack.c.l.b16 %v511
      %v1543 = vunpack.c.l.b16 %v512
      %v1544 = vunpack.c.l.b16 %v513
      %v1545 = vunpack.c.l.b16 %v514
      %v1546 = vunpack.c.l.b16 %v515
      %v1547 = vunpack.c.l.b16 %v516
      %v1548 = vunpack.c.l.b16 %v517
      %v1549 = vunpack.c.l.b16 %v518
      %v1550 = vunpack.c.l.b16 %v519
      %v1551 = vunpack.c.l.b16 %v520
      %v1552 = vunpack.c.l.b16 %v521
      %v1553 = vunpack.c.l.b16 %v522
      %v1554 = vunpack.c.l.b16 %v523
      %v1555 = vunpack.c.l.b16 %v524
      %v1556 = vunpack.c.l.b16 %v525
      %v1557 = vunpack.c.l.b16 %v526
      %v1558 = vunpack.c.l.b16 %v527
      %v1559 = vunpack.c.l.b16 %v528
      %v1560 = vunpack.c.l.b16 %v529
      %v1561 = vunpack.c.l.b16 %v530
      %v1562 = vunpack.c.l.b16 %v531
      %v1563 = vunpack.c.l.b16 %v532
      %v1564 = vunpack.c.l.b16 %v533
      %v1565 = vunpack.c.l.b16 %v534
      %v1566 = vunpack.c.l.b16 %v535
      %v1567 = vunpack.c.l.b16 %v536
      %v1568 = vunpack.c.l.b16 %v537
      %v1569 = vunpack.c.l.b16 %v538
      %v1570 = vunpack.c.l.b16 %v539
      %v1571 = vunpack.c.l.b16 %v540
      %v1572 = vunpack.c.l.b16 %v541
      %v1573 = vunpack.c.l.b16 %v542
      %v1574 = vunpack.c.l.b16 %v543
      %v1575 = vunpack.c.l.b16 %v544
      %v1576 = vunpack.c.l.b16 %v545
      %v1577 = vunpack.c.l.b16 %v546
      %v1578 = vunpack.c.l.b16 %v547
      %v1579 = vunpack.c.l.b16 %v548
      %v1580 = vunpack.c.l.b16 %v549
      %v1581 = vunpack.c.l.b16 %v550
      %v1582 = vunpack.c.l.b16 %v551
      %v1583 = vunpack.c.l.b16 %v552
      %v1584 = vunpack.c.l.b16 %v553
      %v1585 = vunpack.c.l.b16 %v554
      %v1586 = vunpack.c.l.b16 %v555
      %v1587 = vunpack.c.l.b16 %v556
      %v1588 = vunpack.c.l.b16 %v557
      %v1589 = vunpack.c.l.b16 %v558
      %v1590 = vunpack.c.l.b16 %v559
      %v1591 = vunpack.c.l.b16 %v560
      %v1592 = vunpack.c.l.b16 %v561
      %v1593 = vunpack.c.l.b16 %v562
      %v1594 = vunpack.c.l.b16 %v563
      %v1595 = vunpack.c.l.b16 %v564
      %v1596 = vunpack.c.l.b16 %v565
      %v1597 = vunpack.c.l.b16 %v566
      %v1598 = vunpack.c.l.b16 %v567
      %v1599 = vunpack.c.l.b16 %v568
      %v1600 = vunpack.c.l.b16 %v569
      %v1601 = vunpack.c.l.b16 %v570
      %v1602 = vunpack.c.l.b16 %v571
      %v1603 = vunpack.c.l.b16 %v572
      %v1604 = vunpack.c.l.b16 %v573
      %v1605 = vunpack.c.l.b16 %v574
      %v1606 = vunpack.c.l.b16 %v575
      %v1607 = vunpack.c.l.b16 %v576
      %v1608 = vunpack.c.l.b16 %v577
      %v1609 = vunpack.c.l.b16 %v578
      %v1610 = vunpack.c.l.b16 %v579
      %v1611 = vunpack.c.l.b16 %v580
      %v1612 = vunpack.c.l.b16 %v581
      %v1613 = vunpack.c.l.b16 %v582
      %v1614 = vunpack.c.l.b16 %v583
      %v1615 = vunpack.c.l.b16 %v584
      %v1616 = vunpack.c.l.b16 %v585
      %v1617 = vunpack.c.l.b16 %v586
      %v1618 = vunpack.c.l.b16 %v587
      %v1619 = vunpack.c.l.b16 %v588
      %v1620 = vunpack.c.l.b16 %v589
      %v1621 = vunpack.c.l.b16 %v590
      %v1622 = vunpack.c.l.b16 %v591
      %v1623 = vunpack.c.l.b16 %v592
      %v1624 = vunpack.c.l.b16 %v593
      %v1625 = vunpack.c.l.b16 %v594
      %v1626 = vunpack.c.l.b16 %v595
      %v1627 = vunpack.c.l.b16 %v596
      %v1628 = vunpack.c.l.b16 %v597
      %v1629 = vunpack.c.l.b16 %v598
      %v1630 = vunpack.c.l.b16 %v599
      %v1631 = vunpack.c.l.b16 %v600
      %v1632 = vunpack.c.l.b16 %v601
      %v1633 = vunpack.c.l.b16 %v602
      %v1634 = vunpack.c.l.b16 %v603
      %v1635 = vunpack.c.l.b16 %v604
      %v1636 = vunpack.c.l.b16 %v605
      %v1637 = vunpack.c.l.b16 %v606
      %v1638 = vunpack.c.l.b16 %v607
      %v1639 = vunpack.c.l.b16 %v608
      %v1640 = vunpack.c.l.b16 %v609
      %v1641 = vunpack.c.l.b16 %v610
      %v1642 = vunpack.c.l.b16 %v611
      %v1643 = vunpack.c.l.b16 %v612
      %v1644 = vunpack.c.l.b16 %v613
      %v1645 = vunpack.c.l.b16 %v614
      %v1646 = vunpack.c.l.b16 %v615
      %v1647 = vunpack.c.l.b16 %v616
      %v1648 = vunpack.c.l.b16 %v617
      %v1649 = vunpack.c.l.b16 %v618
      %v1650 = vunpack.c.l.b16 %v619
      %v1651 = vunpack.c.l.b16 %v620
      %v1652 = vunpack.c.l.b16 %v621
      %v1653 = vunpack.c.l.b16 %v622
      %v1654 = vunpack.c.l.b16 %v623
      %v1655 = vunpack.c.l.b16 %v624
      %v1656 = vunpack.c.l.b16 %v625
      %v1657 = vunpack.c.l.b16 %v626
      %v1658 = vunpack.c.l.b16 %v627
      %v1659 = vunpack.c.l.b16 %v628
      %v1660 = vunpack.c.l.b16 %v629
      %v1661 = vunpack.c.l.b16 %v630
      %v1662 = vunpack.c.l.b16 %v631
      %v1663 = vpack.c.b16 %v1520, %v1519
      %v1664 = vpack.c.b16 %v1522, %v1521
      %v1665 = vpack.c.b16 %v1524, %v1523
      %v1666 = vpack.c.b16 %v1526, %v1525
      %v1667 = vpack.c.b16 %v1528, %v1527
      %v1668 = vpack.c.b16 %v1530, %v1529
      %v1669 = vpack.c.b16 %v1532, %v1531
      %v1670 = vpack.c.b16 %v1534, %v1533
      %v1671 = vpack.c.b16 %v1536, %v1535
      %v1672 = vpack.c.b16 %v1538, %v1537
      %v1673 = vpack.c.b16 %v1540, %v1539
      %v1674 = vpack.c.b16 %v1542, %v1541
      %v1675 = vpack.c.b16 %v1544, %v1543
      %v1676 = vpack.c.b16 %v1546, %v1545
      %v1677 = vpack.c.b16 %v1548, %v1547
      %v1678 = vpack.c.b16 %v1550, %v1549
      %v1679 = vpack.c.b16 %v1552, %v1551
      %v1680 = vpack.c.b16 %v1554, %v1553
      %v1681 = vpack.c.b16 %v1556, %v1555
      %v1682 = vpack.c.b16 %v1558, %v1557
      %v1683 = vpack.c.b16 %v1560, %v1559
      %v1684 = vpack.c.b16 %v1562, %v1561
      %v1685 = vpack.c.b16 %v1564, %v1563
      %v1686 = vpack.c.b16 %v1566, %v1565
      %v1687 = vpack.c.b16 %v1568, %v1567
      %v1688 = vpack.c.b16 %v1570, %v1569
      %v1689 = vpack.c.b16 %v1572, %v1571
      %v1690 = vpack.c.b16 %v1574, %v1573
      %v1691 = vpack.c.b16 %v1576, %v1575
      %v1692 = vpack.c.b16 %v1578, %v1577
      %v1693 = vpack.c.b16 %v1580, %v1579
      %v1694 = vpack.c.b16 %v1582, %v1581
      %v1695 = vpack.c.b16 %v1584, %v1583
      %v1696 = vpack.c.b16 %v1586, %v1585
      %v1697 = vpack.c.b16 %v1588, %v1587
      %v1698 = vpack.c.b16 %v1590, %v1589
      %v1699 = vpack.c.b16 %v1592, %v1591
      %v1700 = vpack.c.b16 %v1594, %v1593
      %v1701 = vpack.c.b16 %v1596, %v1595
      %v1702 = vpack.c.b16 %v1598, %v1597
      %v1703 = vpack.c.b16 %v1600, %v1599
      %v1704 = vpack.c.b16 %v1602, %v1601
      %v1705 = vpack.c.b16 %v1604, %v1603
      %v1706 = vpack.c.b16 %v1606, %v1605
      %v1707 = vpack.c.b16 %v1608, %v1607
      %v1708 = vpack.c.b16 %v1610, %v1609
      %v1709 = vpack.c.b16 %v1612, %v1611
      %v1710 = vpack.c.b16 %v1614, %v1613
      %v1711 = vpack.c.b16 %v1616, %v1615
      %v1712 = vpack.c.b16 %v1618, %v1617
      %v1713 = vpack.c.b16 %v1620, %v1619
      %v1714 = vpack.c.b16 %v1622, %v1621
      %v1715 = vpack.c.b16 %v1624, %v1623
      %v1716 = vpack.c.b16 %v1626, %v1625
      %v1717 = vpack.c.b16 %v1628, %v1627
      %v1718 = vpack.c.b16 %v1630, %v1629
      %v1719 = vpack.c.b16 %v1632, %v1631
      %v1720 = vpack.c.b16 %v1634, %v1633
      %v1721 = vpack.c.b16 %v1636, %v1635
      %v1722 = vpack.c.b16 %v1638, %v1637
      %v1723 = vpack.c.b16 %v1640, %v1639
      %v1724 = vpack.c.b16 %v1642, %v1641
      %v1725 = vpack.c.b16 %v1644, %v1643
      %v1726 = vpack.c.b16 %v1646, %v1645
      %v1727 = vpack.c.b16 %v1648, %v1647
      %v1728 = vpack.c.b16 %v1650, %v1649
      %v1729 = vpack.c.b16 %v1652, %v1651
      %v1730 = vpack.c.b16 %v1654, %v1653
      %v1731 = vpack.c.b16 %v1656, %v1655
      %v1732 = vpack.c.b16 %v1658, %v1657
      %v1733 = vpack.c.b16 %v1660, %v1659
      %v1734 = vpack.c.b16 %v1662, %v1661
      %1807 = vmatprep.subr.bf16.mxu0 0
      %1808 = vmatpush1.bf16.msra.mxu0 %v1670
      %1809 = vmatprep.subr.bf16.mxu0 0
      %1810 = vmatpush1.bf16.msra.mxu0 %v1669
      %1811 = vmatprep.subr.bf16.mxu0 0
      %1812 = vmatpush1.bf16.msra.mxu0 %v1668
      %1813 = vmatprep.subr.bf16.mxu0 0
      %1814 = vmatpush1.bf16.msra.mxu0 %v1667
      %1815 = vmatprep.subr.bf16.mxu0 0
      %1816 = vmatpush1.bf16.msra.mxu0 %v1666
      %1817 = vmatprep.subr.bf16.mxu0 0
      %1818 = vmatpush1.bf16.msra.mxu0 %v1665
      %1819 = vmatprep.subr.bf16.mxu0 0
      %1820 = vmatpush1.bf16.msra.mxu0 %v1664
      %1821 = vmatprep.subr.bf16.mxu0 0
      %1822 = vmatpush1.bf16.msra.mxu0 %v1663
      %1823 = vmatprep.subr.bf16.mxu0 0
      %1824 = vmatpush2.bf16.msra.mxu0 %v1678
      %1825 = vmatprep.subr.bf16.mxu0 0
      %1826 = vmatpush2.bf16.msra.mxu0 %v1677
      %1827 = vmatprep.subr.bf16.mxu0 0
      %1828 = vmatpush2.bf16.msra.mxu0 %v1676
      %1829 = vmatprep.subr.bf16.mxu0 0
      %1830 = vmatpush2.bf16.msra.mxu0 %v1675
      %1831 = vmatprep.subr.bf16.mxu0 0
      %1832 = vmatpush2.bf16.msra.mxu0 %v1674
      %1833 = vmatprep.subr.bf16.mxu0 0
      %1834 = vmatpush2.bf16.msra.mxu0 %v1673
      %1835 = vmatprep.subr.bf16.mxu0 0
      %1836 = vmatpush2.bf16.msra.mxu0 %v1672
      %1837 = vmatprep.subr.bf16.mxu0 0
      %1838 = vmatpush2.bf16.msra.mxu0 %v1671
      %1839 = vmatprep.mubr.bf16.mxu0 %v1088
      %1840 = vmatmul.mubr.bf16.gmra.mxu0 %v1087
      %v1841 = vpop.f32.mrf.mxu0
      %v1842 = vadd.f32 %v637, %v1841
      %v1843 = vpop.f32.mrf.mxu0
      %v1844 = vpop.f32.mrf.mxu0
      %v1845 = vadd.f32 %v637, %v1844
      %v1846 = vpop.f32.mrf.mxu0
      %1847 = vmatprep.mubr.bf16.mxu0 %v1097
      %1848 = vmatmul.mubr.bf16.gmra.mxu0 %v1096
      %v1849 = vpop.f32.mrf.mxu0
      %v1850 = vadd.f32 %v637, %v1849
      %v1851 = vpop.f32.mrf.mxu0
      %v1852 = vpop.f32.mrf.mxu0
      %v1853 = vadd.f32 %v637, %v1852
      %v1854 = vpop.f32.mrf.mxu0
      %1855 = vmatprep.mubr.bf16.mxu0 %v1106
      %1856 = vmatmul.mubr.bf16.gmra.mxu0 %v1105
      %v1857 = vpop.f32.mrf.mxu0
      %v1858 = vadd.f32 %v637, %v1857
      %v1859 = vpop.f32.mrf.mxu0
      %v1860 = vpop.f32.mrf.mxu0
      %v1861 = vadd.f32 %v637, %v1860
      %v1862 = vpop.f32.mrf.mxu0
      %1863 = vmatprep.mubr.bf16.mxu0 %v1115
      %1864 = vmatmul.mubr.bf16.gmra.mxu0 %v1114
      %v1865 = vpop.f32.mrf.mxu0
      %v1866 = vadd.f32 %v637, %v1865
      %v1867 = vpop.f32.mrf.mxu0
      %v1868 = vpop.f32.mrf.mxu0
      %v1869 = vadd.f32 %v637, %v1868
      %v1870 = vpop.f32.mrf.mxu0
      %1871 = vmatprep.mubr.bf16.mxu0 %v1124
      %1872 = vmatmul.mubr.bf16.gmra.mxu0 %v1123
      %v1873 = vpop.f32.mrf.mxu0
      %v1874 = vadd.f32 %v637, %v1873
      %v1875 = vpop.f32.mrf.mxu0
      %v1876 = vpop.f32.mrf.mxu0
      %v1877 = vadd.f32 %v637, %v1876
      %v1878 = vpop.f32.mrf.mxu0
      %1879 = vmatprep.mubr.bf16.mxu0 %v1133
      %1880 = vmatmul.mubr.bf16.gmra.mxu0 %v1132
      %v1881 = vpop.f32.mrf.mxu0
      %v1882 = vadd.f32 %v637, %v1881
      %v1883 = vpop.f32.mrf.mxu0
      %v1884 = vpop.f32.mrf.mxu0
      %v1885 = vadd.f32 %v637, %v1884
      %v1886 = vpop.f32.mrf.mxu0
      %1887 = vmatprep.mubr.bf16.mxu0 %v1142
      %1888 = vmatmul.mubr.bf16.gmra.mxu0 %v1141
      %v1889 = vpop.f32.mrf.mxu0
      %v1890 = vadd.f32 %v637, %v1889
      %v1891 = vpop.f32.mrf.mxu0
      %v1892 = vpop.f32.mrf.mxu0
      %v1893 = vadd.f32 %v637, %v1892
      %v1894 = vpop.f32.mrf.mxu0
      %1895 = vmatprep.mubr.bf16.mxu0 %v1151
      %1896 = vmatmul.mubr.bf16.gmra.mxu0 %v1150
      %v1897 = vpop.f32.mrf.mxu0
      %v1898 = vadd.f32 %v637, %v1897
      %v1899 = vpop.f32.mrf.mxu0
      %v1900 = vpop.f32.mrf.mxu0
      %v1901 = vadd.f32 %v637, %v1900
      %v1902 = vpop.f32.mrf.mxu0
      %1903 = vmatprep.mubr.bf16.mxu0 %v1160
      %1904 = vmatmul.mubr.bf16.gmra.mxu0 %v1159
      %v1905 = vpop.f32.mrf.mxu0
      %v1906 = vadd.f32 %v637, %v1905
      %v1907 = vpop.f32.mrf.mxu0
      %v1908 = vpop.f32.mrf.mxu0
      %v1909 = vadd.f32 %v637, %v1908
      %v1910 = vpop.f32.mrf.mxu0
      %1911 = vmatprep.mubr.bf16.mxu0 %v1169
      %1912 = vmatmul.mubr.bf16.gmra.mxu0 %v1168
      %v1913 = vpop.f32.mrf.mxu0
      %v1914 = vadd.f32 %v637, %v1913
      %v1915 = vpop.f32.mrf.mxu0
      %v1916 = vpop.f32.mrf.mxu0
      %v1917 = vadd.f32 %v637, %v1916
      %v1918 = vpop.f32.mrf.mxu0
      %1919 = vmatprep.mubr.bf16.mxu0 %v1178
      %1920 = vmatmul.mubr.bf16.gmra.mxu0 %v1177
      %v1921 = vpop.f32.mrf.mxu0
      %v1922 = vadd.f32 %v637, %v1921
      %v1923 = vpop.f32.mrf.mxu0
      %v1924 = vpop.f32.mrf.mxu0
      %v1925 = vadd.f32 %v637, %v1924
      %v1926 = vpop.f32.mrf.mxu0
      %1927 = vmatprep.mubr.bf16.mxu0 %v1187
      %1928 = vmatmul.mubr.bf16.gmra.mxu0 %v1186
      %v1929 = vpop.f32.mrf.mxu0
      %v1930 = vadd.f32 %v637, %v1929
      %v1931 = vpop.f32.mrf.mxu0
      %v1932 = vpop.f32.mrf.mxu0
      %v1933 = vadd.f32 %v637, %v1932
      %v1934 = vpop.f32.mrf.mxu0
      %1935 = vmatprep.mubr.bf16.mxu0 %v1196
      %1936 = vmatmul.mubr.bf16.gmra.mxu0 %v1195
      %v1937 = vpop.f32.mrf.mxu0
      %v1938 = vadd.f32 %v637, %v1937
      %v1939 = vpop.f32.mrf.mxu0
      %v1940 = vpop.f32.mrf.mxu0
      %v1941 = vadd.f32 %v637, %v1940
      %v1942 = vpop.f32.mrf.mxu0
      %1943 = vmatprep.mubr.bf16.mxu0 %v1205
      %1944 = vmatmul.mubr.bf16.gmra.mxu0 %v1204
      %v1945 = vpop.f32.mrf.mxu0
      %v1946 = vadd.f32 %v637, %v1945
      %v1947 = vpop.f32.mrf.mxu0
      %v1948 = vpop.f32.mrf.mxu0
      %v1949 = vadd.f32 %v637, %v1948
      %v1950 = vpop.f32.mrf.mxu0
      %1951 = vmatprep.mubr.bf16.mxu0 %v1214
      %1952 = vmatmul.mubr.bf16.gmra.mxu0 %v1213
      %v1953 = vpop.f32.mrf.mxu0
      %v1954 = vadd.f32 %v637, %v1953
      %v1955 = vpop.f32.mrf.mxu0
      %v1956 = vpop.f32.mrf.mxu0
      %v1957 = vadd.f32 %v637, %v1956
      %v1958 = vpop.f32.mrf.mxu0
      %1959 = vmatprep.mubr.bf16.mxu0 %v1223
      %1960 = vmatmul.mubr.bf16.gmra.mxu0 %v1222
      %v1961 = vpop.f32.mrf.mxu0
      %v1962 = vadd.f32 %v637, %v1961
      %v1963 = vpop.f32.mrf.mxu0
      %v1964 = vpop.f32.mrf.mxu0
      %v1965 = vadd.f32 %v637, %v1964
      %v1966 = vpop.f32.mrf.mxu0
      %1967 = vdwg.mxu0
      %1968 = vmatprep.subr.bf16.mxu0 0
      %1969 = vmatpush1.bf16.msra.mxu0 %v1686
      %1970 = vmatprep.subr.bf16.mxu0 0
      %1971 = vmatpush1.bf16.msra.mxu0 %v1685
      %1972 = vmatprep.subr.bf16.mxu0 0
      %1973 = vmatpush1.bf16.msra.mxu0 %v1684
      %1974 = vmatprep.subr.bf16.mxu0 0
      %1975 = vmatpush1.bf16.msra.mxu0 %v1683
      %1976 = vmatprep.subr.bf16.mxu0 0
      %1977 = vmatpush1.bf16.msra.mxu0 %v1682
      %1978 = vmatprep.subr.bf16.mxu0 0
      %1979 = vmatpush1.bf16.msra.mxu0 %v1681
      %1980 = vmatprep.subr.bf16.mxu0 0
      %1981 = vmatpush1.bf16.msra.mxu0 %v1680
      %1982 = vmatprep.subr.bf16.mxu0 0
      %1983 = vmatpush1.bf16.msra.mxu0 %v1679
      %1984 = vmatprep.subr.bf16.mxu0 0
      %1985 = vmatpush2.bf16.msra.mxu0 %v1694
      %1986 = vmatprep.subr.bf16.mxu0 0
      %1987 = vmatpush2.bf16.msra.mxu0 %v1693
      %1988 = vmatprep.subr.bf16.mxu0 0
      %1989 = vmatpush2.bf16.msra.mxu0 %v1692
      %1990 = vmatprep.subr.bf16.mxu0 0
      %1991 = vmatpush2.bf16.msra.mxu0 %v1691
      %1992 = vmatprep.subr.bf16.mxu0 0
      %1993 = vmatpush2.bf16.msra.mxu0 %v1690
      %1994 = vmatprep.subr.bf16.mxu0 0
      %1995 = vmatpush2.bf16.msra.mxu0 %v1689
      %1996 = vmatprep.subr.bf16.mxu0 0
      %1997 = vmatpush2.bf16.msra.mxu0 %v1688
      %1998 = vmatprep.subr.bf16.mxu0 0
      %1999 = vmatpush2.bf16.msra.mxu0 %v1687
      %2000 = vmatprep.mubr.bf16.mxu0 %v1090
      %2001 = vmatmul.mubr.bf16.gmra.mxu0 %v1089
      %v2002 = vpop.f32.mrf.mxu0
      %v2003 = vadd.f32 %v1842, %v2002
      %v2004 = vpop.f32.mrf.mxu0
      %v2005 = vpop.f32.mrf.mxu0
      %v2006 = vadd.f32 %v1845, %v2005
      %v2007 = vpop.f32.mrf.mxu0
      %2008 = vmatprep.mubr.bf16.mxu0 %v1099
      %2009 = vmatmul.mubr.bf16.gmra.mxu0 %v1098
      %v2010 = vpop.f32.mrf.mxu0
      %v2011 = vadd.f32 %v1850, %v2010
      %v2012 = vpop.f32.mrf.mxu0
      %v2013 = vpop.f32.mrf.mxu0
      %v2014 = vadd.f32 %v1853, %v2013
      %v2015 = vpop.f32.mrf.mxu0
      %2016 = vmatprep.mubr.bf16.mxu0 %v1108
      %2017 = vmatmul.mubr.bf16.gmra.mxu0 %v1107
      %v2018 = vpop.f32.mrf.mxu0
      %v2019 = vadd.f32 %v1858, %v2018
      %v2020 = vpop.f32.mrf.mxu0
      %v2021 = vpop.f32.mrf.mxu0
      %v2022 = vadd.f32 %v1861, %v2021
      %v2023 = vpop.f32.mrf.mxu0
      %2024 = vmatprep.mubr.bf16.mxu0 %v1117
      %2025 = vmatmul.mubr.bf16.gmra.mxu0 %v1116
      %v2026 = vpop.f32.mrf.mxu0
      %v2027 = vadd.f32 %v1866, %v2026
      %v2028 = vpop.f32.mrf.mxu0
      %v2029 = vpop.f32.mrf.mxu0
      %v2030 = vadd.f32 %v1869, %v2029
      %v2031 = vpop.f32.mrf.mxu0
      %2032 = vmatprep.mubr.bf16.mxu0 %v1126
      %2033 = vmatmul.mubr.bf16.gmra.mxu0 %v1125
      %v2034 = vpop.f32.mrf.mxu0
      %v2035 = vadd.f32 %v1874, %v2034
      %v2036 = vpop.f32.mrf.mxu0
      %v2037 = vpop.f32.mrf.mxu0
      %v2038 = vadd.f32 %v1877, %v2037
      %v2039 = vpop.f32.mrf.mxu0
      %2040 = vmatprep.mubr.bf16.mxu0 %v1135
      %2041 = vmatmul.mubr.bf16.gmra.mxu0 %v1134
      %v2042 = vpop.f32.mrf.mxu0
      %v2043 = vadd.f32 %v1882, %v2042
      %v2044 = vpop.f32.mrf.mxu0
      %v2045 = vpop.f32.mrf.mxu0
      %v2046 = vadd.f32 %v1885, %v2045
      %v2047 = vpop.f32.mrf.mxu0
      %2048 = vmatprep.mubr.bf16.mxu0 %v1144
      %2049 = vmatmul.mubr.bf16.gmra.mxu0 %v1143
      %v2050 = vpop.f32.mrf.mxu0
      %v2051 = vadd.f32 %v1890, %v2050
      %v2052 = vpop.f32.mrf.mxu0
      %v2053 = vpop.f32.mrf.mxu0
      %v2054 = vadd.f32 %v1893, %v2053
      %v2055 = vpop.f32.mrf.mxu0
      %2056 = vmatprep.mubr.bf16.mxu0 %v1153
      %2057 = vmatmul.mubr.bf16.gmra.mxu0 %v1152
      %v2058 = vpop.f32.mrf.mxu0
      %v2059 = vadd.f32 %v1898, %v2058
      %v2060 = vpop.f32.mrf.mxu0
      %v2061 = vpop.f32.mrf.mxu0
      %v2062 = vadd.f32 %v1901, %v2061
      %v2063 = vpop.f32.mrf.mxu0
      %2064 = vmatprep.mubr.bf16.mxu0 %v1162
      %2065 = vmatmul.mubr.bf16.gmra.mxu0 %v1161
      %v2066 = vpop.f32.mrf.mxu0
      %v2067 = vadd.f32 %v1906, %v2066
      %v2068 = vpop.f32.mrf.mxu0
      %v2069 = vpop.f32.mrf.mxu0
      %v2070 = vadd.f32 %v1909, %v2069
      %v2071 = vpop.f32.mrf.mxu0
      %2072 = vmatprep.mubr.bf16.mxu0 %v1171
      %2073 = vmatmul.mubr.bf16.gmra.mxu0 %v1170
      %v2074 = vpop.f32.mrf.mxu0
      %v2075 = vadd.f32 %v1914, %v2074
      %v2076 = vpop.f32.mrf.mxu0
      %v2077 = vpop.f32.mrf.mxu0
      %v2078 = vadd.f32 %v1917, %v2077
      %v2079 = vpop.f32.mrf.mxu0
      %2080 = vmatprep.mubr.bf16.mxu0 %v1180
      %2081 = vmatmul.mubr.bf16.gmra.mxu0 %v1179
      %v2082 = vpop.f32.mrf.mxu0
      %v2083 = vadd.f32 %v1922, %v2082
      %v2084 = vpop.f32.mrf.mxu0
      %v2085 = vpop.f32.mrf.mxu0
      %v2086 = vadd.f32 %v1925, %v2085
      %v2087 = vpop.f32.mrf.mxu0
      %2088 = vmatprep.mubr.bf16.mxu0 %v1189
      %2089 = vmatmul.mubr.bf16.gmra.mxu0 %v1188
      %v2090 = vpop.f32.mrf.mxu0
      %v2091 = vadd.f32 %v1930, %v2090
      %v2092 = vpop.f32.mrf.mxu0
      %v2093 = vpop.f32.mrf.mxu0
      %v2094 = vadd.f32 %v1933, %v2093
      %v2095 = vpop.f32.mrf.mxu0
      %2096 = vmatprep.mubr.bf16.mxu0 %v1198
      %2097 = vmatmul.mubr.bf16.gmra.mxu0 %v1197
      %v2098 = vpop.f32.mrf.mxu0
      %v2099 = vadd.f32 %v1938, %v2098
      %v2100 = vpop.f32.mrf.mxu0
      %v2101 = vpop.f32.mrf.mxu0
      %v2102 = vadd.f32 %v1941, %v2101
      %v2103 = vpop.f32.mrf.mxu0
      %2104 = vmatprep.mubr.bf16.mxu0 %v1207
      %2105 = vmatmul.mubr.bf16.gmra.mxu0 %v1206
      %v2106 = vpop.f32.mrf.mxu0
      %v2107 = vadd.f32 %v1946, %v2106
      %v2108 = vpop.f32.mrf.mxu0
      %v2109 = vpop.f32.mrf.mxu0
      %v2110 = vadd.f32 %v1949, %v2109
      %v2111 = vpop.f32.mrf.mxu0
      %2112 = vmatprep.mubr.bf16.mxu0 %v1216
      %2113 = vmatmul.mubr.bf16.gmra.mxu0 %v1215
      %v2114 = vpop.f32.mrf.mxu0
      %v2115 = vadd.f32 %v1954, %v2114
      %v2116 = vpop.f32.mrf.mxu0
      %v2117 = vpop.f32.mrf.mxu0
      %v2118 = vadd.f32 %v1957, %v2117
      %v2119 = vpop.f32.mrf.mxu0
      %2120 = vmatprep.mubr.bf16.mxu0 %v1225
      %2121 = vmatmul.mubr.bf16.gmra.mxu0 %v1224
      %v2122 = vpop.f32.mrf.mxu0
      %v2123 = vadd.f32 %v1962, %v2122
      %v2124 = vpop.f32.mrf.mxu0
      %v2125 = vpop.f32.mrf.mxu0
      %v2126 = vadd.f32 %v1965, %v2125
      %v2127 = vpop.f32.mrf.mxu0
      %2128 = vdwg.mxu0
      %2129 = vmatprep.subr.bf16.mxu0 0
      %2130 = vmatpush1.bf16.msra.mxu0 %v1702
      %2131 = vmatprep.subr.bf16.mxu0 0
      %2132 = vmatpush1.bf16.msra.mxu0 %v1701
      %2133 = vmatprep.subr.bf16.mxu0 0
      %2134 = vmatpush1.bf16.msra.mxu0 %v1700
      %2135 = vmatprep.subr.bf16.mxu0 0
      %2136 = vmatpush1.bf16.msra.mxu0 %v1699
      %2137 = vmatprep.subr.bf16.mxu0 0
      %2138 = vmatpush1.bf16.msra.mxu0 %v1698
      %2139 = vmatprep.subr.bf16.mxu0 0
      %2140 = vmatpush1.bf16.msra.mxu0 %v1697
      %2141 = vmatprep.subr.bf16.mxu0 0
      %2142 = vmatpush1.bf16.msra.mxu0 %v1696
      %2143 = vmatprep.subr.bf16.mxu0 0
      %2144 = vmatpush1.bf16.msra.mxu0 %v1695
      %2145 = vmatprep.subr.bf16.mxu0 0
      %2146 = vmatpush2.bf16.msra.mxu0 %v1710
      %2147 = vmatprep.subr.bf16.mxu0 0
      %2148 = vmatpush2.bf16.msra.mxu0 %v1709
      %2149 = vmatprep.subr.bf16.mxu0 0
      %2150 = vmatpush2.bf16.msra.mxu0 %v1708
      %2151 = vmatprep.subr.bf16.mxu0 0
      %2152 = vmatpush2.bf16.msra.mxu0 %v1707
      %2153 = vmatprep.subr.bf16.mxu0 0
      %2154 = vmatpush2.bf16.msra.mxu0 %v1706
      %2155 = vmatprep.subr.bf16.mxu0 0
      %2156 = vmatpush2.bf16.msra.mxu0 %v1705
      %2157 = vmatprep.subr.bf16.mxu0 0
      %2158 = vmatpush2.bf16.msra.mxu0 %v1704
      %2159 = vmatprep.subr.bf16.mxu0 0
      %2160 = vmatpush2.bf16.msra.mxu0 %v1703
      %2161 = vmatprep.mubr.bf16.mxu0 %v1092
      %2162 = vmatmul.mubr.bf16.gmra.mxu0 %v1091
      %v2163 = vpop.f32.mrf.mxu0
      %v2164 = vadd.f32 %v2003, %v2163
      %v2165 = vpop.f32.mrf.mxu0
      %v2166 = vpop.f32.mrf.mxu0
      %v2167 = vadd.f32 %v2006, %v2166
      %v2168 = vpop.f32.mrf.mxu0
      %2169 = vmatprep.mubr.bf16.mxu0 %v1101
      %2170 = vmatmul.mubr.bf16.gmra.mxu0 %v1100
      %v2171 = vpop.f32.mrf.mxu0
      %v2172 = vadd.f32 %v2011, %v2171
      %v2173 = vpop.f32.mrf.mxu0
      %v2174 = vpop.f32.mrf.mxu0
      %v2175 = vadd.f32 %v2014, %v2174
      %v2176 = vpop.f32.mrf.mxu0
      %2177 = vmatprep.mubr.bf16.mxu0 %v1110
      %2178 = vmatmul.mubr.bf16.gmra.mxu0 %v1109
      %v2179 = vpop.f32.mrf.mxu0
      %v2180 = vadd.f32 %v2019, %v2179
      %v2181 = vpop.f32.mrf.mxu0
      %v2182 = vpop.f32.mrf.mxu0
      %v2183 = vadd.f32 %v2022, %v2182
      %v2184 = vpop.f32.mrf.mxu0
      %2185 = vmatprep.mubr.bf16.mxu0 %v1119
      %2186 = vmatmul.mubr.bf16.gmra.mxu0 %v1118
      %v2187 = vpop.f32.mrf.mxu0
      %v2188 = vadd.f32 %v2027, %v2187
      %v2189 = vpop.f32.mrf.mxu0
      %v2190 = vpop.f32.mrf.mxu0
      %v2191 = vadd.f32 %v2030, %v2190
      %v2192 = vpop.f32.mrf.mxu0
      %2193 = vmatprep.mubr.bf16.mxu0 %v1128
      %2194 = vmatmul.mubr.bf16.gmra.mxu0 %v1127
      %v2195 = vpop.f32.mrf.mxu0
      %v2196 = vadd.f32 %v2035, %v2195
      %v2197 = vpop.f32.mrf.mxu0
      %v2198 = vpop.f32.mrf.mxu0
      %v2199 = vadd.f32 %v2038, %v2198
      %v2200 = vpop.f32.mrf.mxu0
      %2201 = vmatprep.mubr.bf16.mxu0 %v1137
      %2202 = vmatmul.mubr.bf16.gmra.mxu0 %v1136
      %v2203 = vpop.f32.mrf.mxu0
      %v2204 = vadd.f32 %v2043, %v2203
      %v2205 = vpop.f32.mrf.mxu0
      %v2206 = vpop.f32.mrf.mxu0
      %v2207 = vadd.f32 %v2046, %v2206
      %v2208 = vpop.f32.mrf.mxu0
      %2209 = vmatprep.mubr.bf16.mxu0 %v1146
      %2210 = vmatmul.mubr.bf16.gmra.mxu0 %v1145
      %v2211 = vpop.f32.mrf.mxu0
      %v2212 = vadd.f32 %v2051, %v2211
      %v2213 = vpop.f32.mrf.mxu0
      %v2214 = vpop.f32.mrf.mxu0
      %v2215 = vadd.f32 %v2054, %v2214
      %v2216 = vpop.f32.mrf.mxu0
      %2217 = vmatprep.mubr.bf16.mxu0 %v1155
      %2218 = vmatmul.mubr.bf16.gmra.mxu0 %v1154
      %v2219 = vpop.f32.mrf.mxu0
      %v2220 = vadd.f32 %v2059, %v2219
      %v2221 = vpop.f32.mrf.mxu0
      %v2222 = vpop.f32.mrf.mxu0
      %v2223 = vadd.f32 %v2062, %v2222
      %v2224 = vpop.f32.mrf.mxu0
      %2225 = vmatprep.mubr.bf16.mxu0 %v1164
      %2226 = vmatmul.mubr.bf16.gmra.mxu0 %v1163
      %v2227 = vpop.f32.mrf.mxu0
      %v2228 = vadd.f32 %v2067, %v2227
      %v2229 = vpop.f32.mrf.mxu0
      %v2230 = vpop.f32.mrf.mxu0
      %v2231 = vadd.f32 %v2070, %v2230
      %v2232 = vpop.f32.mrf.mxu0
      %2233 = vmatprep.mubr.bf16.mxu0 %v1173
      %2234 = vmatmul.mubr.bf16.gmra.mxu0 %v1172
      %v2235 = vpop.f32.mrf.mxu0
      %v2236 = vadd.f32 %v2075, %v2235
      %v2237 = vpop.f32.mrf.mxu0
      %v2238 = vpop.f32.mrf.mxu0
      %v2239 = vadd.f32 %v2078, %v2238
      %v2240 = vpop.f32.mrf.mxu0
      %2241 = vmatprep.mubr.bf16.mxu0 %v1182
      %2242 = vmatmul.mubr.bf16.gmra.mxu0 %v1181
      %v2243 = vpop.f32.mrf.mxu0
      %v2244 = vadd.f32 %v2083, %v2243
      %v2245 = vpop.f32.mrf.mxu0
      %v2246 = vpop.f32.mrf.mxu0
      %v2247 = vadd.f32 %v2086, %v2246
      %v2248 = vpop.f32.mrf.mxu0
      %2249 = vmatprep.mubr.bf16.mxu0 %v1191
      %2250 = vmatmul.mubr.bf16.gmra.mxu0 %v1190
      %v2251 = vpop.f32.mrf.mxu0
      %v2252 = vadd.f32 %v2091, %v2251
      %v2253 = vpop.f32.mrf.mxu0
      %v2254 = vpop.f32.mrf.mxu0
      %v2255 = vadd.f32 %v2094, %v2254
      %v2256 = vpop.f32.mrf.mxu0
      %2257 = vmatprep.mubr.bf16.mxu0 %v1200
      %2258 = vmatmul.mubr.bf16.gmra.mxu0 %v1199
      %v2259 = vpop.f32.mrf.mxu0
      %v2260 = vadd.f32 %v2099, %v2259
      %v2261 = vpop.f32.mrf.mxu0
      %v2262 = vpop.f32.mrf.mxu0
      %v2263 = vadd.f32 %v2102, %v2262
      %v2264 = vpop.f32.mrf.mxu0
      %2265 = vmatprep.mubr.bf16.mxu0 %v1209
      %2266 = vmatmul.mubr.bf16.gmra.mxu0 %v1208
      %v2267 = vpop.f32.mrf.mxu0
      %v2268 = vadd.f32 %v2107, %v2267
      %v2269 = vpop.f32.mrf.mxu0
      %v2270 = vpop.f32.mrf.mxu0
      %v2271 = vadd.f32 %v2110, %v2270
      %v2272 = vpop.f32.mrf.mxu0
      %2273 = vmatprep.mubr.bf16.mxu0 %v1218
      %2274 = vmatmul.mubr.bf16.gmra.mxu0 %v1217
      %v2275 = vpop.f32.mrf.mxu0
      %v2276 = vadd.f32 %v2115, %v2275
      %v2277 = vpop.f32.mrf.mxu0
      %v2278 = vpop.f32.mrf.mxu0
      %v2279 = vadd.f32 %v2118, %v2278
      %v2280 = vpop.f32.mrf.mxu0
      %2281 = vmatprep.mubr.bf16.mxu0 %v1227
      %2282 = vmatmul.mubr.bf16.gmra.mxu0 %v1226
      %v2283 = vpop.f32.mrf.mxu0
      %v2284 = vadd.f32 %v2123, %v2283
      %v2285 = vpop.f32.mrf.mxu0
      %v2286 = vpop.f32.mrf.mxu0
      %v2287 = vadd.f32 %v2126, %v2286
      %v2288 = vpop.f32.mrf.mxu0
      %2289 = vdwg.mxu0
      %2290 = vmatprep.subr.bf16.mxu0 0
      %2291 = vmatpush1.bf16.msra.mxu0 %v1718
      %2292 = vmatprep.subr.bf16.mxu0 0
      %2293 = vmatpush1.bf16.msra.mxu0 %v1717
      %2294 = vmatprep.subr.bf16.mxu0 0
      %2295 = vmatpush1.bf16.msra.mxu0 %v1716
      %2296 = vmatprep.subr.bf16.mxu0 0
      %2297 = vmatpush1.bf16.msra.mxu0 %v1715
      %2298 = vmatprep.subr.bf16.mxu0 0
      %2299 = vmatpush1.bf16.msra.mxu0 %v1714
      %2300 = vmatprep.subr.bf16.mxu0 0
      %2301 = vmatpush1.bf16.msra.mxu0 %v1713
      %2302 = vmatprep.subr.bf16.mxu0 0
      %2303 = vmatpush1.bf16.msra.mxu0 %v1712
      %2304 = vmatprep.subr.bf16.mxu0 0
      %2305 = vmatpush1.bf16.msra.mxu0 %v1711
      %2306 = vmatprep.subr.bf16.mxu0 0
      %2307 = vmatpush2.bf16.msra.mxu0 %v1726
      %2308 = vmatprep.subr.bf16.mxu0 0
      %2309 = vmatpush2.bf16.msra.mxu0 %v1725
      %2310 = vmatprep.subr.bf16.mxu0 0
      %2311 = vmatpush2.bf16.msra.mxu0 %v1724
      %2312 = vmatprep.subr.bf16.mxu0 0
      %2313 = vmatpush2.bf16.msra.mxu0 %v1723
      %2314 = vmatprep.subr.bf16.mxu0 0
      %2315 = vmatpush2.bf16.msra.mxu0 %v1722
      %2316 = vmatprep.subr.bf16.mxu0 0
      %2317 = vmatpush2.bf16.msra.mxu0 %v1721
      %2318 = vmatprep.subr.bf16.mxu0 0
      %2319 = vmatpush2.bf16.msra.mxu0 %v1720
      %2320 = vmatprep.subr.bf16.mxu0 0
      %2321 = vmatpush2.bf16.msra.mxu0 %v1719
      %2322 = vmatprep.mubr.bf16.mxu0 %v1094
      %2323 = vmatmul.mubr.bf16.gmra.mxu0 %v1093
      %v2324 = vpop.f32.mrf.mxu0
      %v2325 = vadd.f32 %v2164, %v2324
      %v2326 = vpop.f32.mrf.mxu0
      %v2327 = vpop.f32.mrf.mxu0
      %v2328 = vadd.f32 %v2167, %v2327
      %v2329 = vpop.f32.mrf.mxu0
      %2330 = vmatprep.mubr.bf16.mxu0 %v1103
      %2331 = vmatmul.mubr.bf16.gmra.mxu0 %v1102
      %v2332 = vpop.f32.mrf.mxu0
      %v2333 = vadd.f32 %v2172, %v2332
      %v2334 = vpop.f32.mrf.mxu0
      %v2335 = vpop.f32.mrf.mxu0
      %v2336 = vadd.f32 %v2175, %v2335
      %v2337 = vpop.f32.mrf.mxu0
      %2338 = vmatprep.mubr.bf16.mxu0 %v1112
      %2339 = vmatmul.mubr.bf16.gmra.mxu0 %v1111
      %v2340 = vpop.f32.mrf.mxu0
      %v2341 = vadd.f32 %v2180, %v2340
      %v2342 = vpop.f32.mrf.mxu0
      %v2343 = vpop.f32.mrf.mxu0
      %v2344 = vadd.f32 %v2183, %v2343
      %v2345 = vpop.f32.mrf.mxu0
      %2346 = vmatprep.mubr.bf16.mxu0 %v1121
      %2347 = vmatmul.mubr.bf16.gmra.mxu0 %v1120
      %v2348 = vpop.f32.mrf.mxu0
      %v2349 = vadd.f32 %v2188, %v2348
      %v2350 = vpop.f32.mrf.mxu0
      %v2351 = vpop.f32.mrf.mxu0
      %v2352 = vadd.f32 %v2191, %v2351
      %v2353 = vpop.f32.mrf.mxu0
      %2354 = vmatprep.mubr.bf16.mxu0 %v1130
      %2355 = vmatmul.mubr.bf16.gmra.mxu0 %v1129
      %v2356 = vpop.f32.mrf.mxu0
      %v2357 = vadd.f32 %v2196, %v2356
      %v2358 = vpop.f32.mrf.mxu0
      %v2359 = vpop.f32.mrf.mxu0
      %v2360 = vadd.f32 %v2199, %v2359
      %v2361 = vpop.f32.mrf.mxu0
      %2362 = vmatprep.mubr.bf16.mxu0 %v1139
      %2363 = vmatmul.mubr.bf16.gmra.mxu0 %v1138
      %v2364 = vpop.f32.mrf.mxu0
      %v2365 = vadd.f32 %v2204, %v2364
      %v2366 = vpop.f32.mrf.mxu0
      %v2367 = vpop.f32.mrf.mxu0
      %v2368 = vadd.f32 %v2207, %v2367
      %v2369 = vpop.f32.mrf.mxu0
      %2370 = vmatprep.mubr.bf16.mxu0 %v1148
      %2371 = vmatmul.mubr.bf16.gmra.mxu0 %v1147
      %v2372 = vpop.f32.mrf.mxu0
      %v2373 = vadd.f32 %v2212, %v2372
      %v2374 = vpop.f32.mrf.mxu0
      %v2375 = vpop.f32.mrf.mxu0
      %v2376 = vadd.f32 %v2215, %v2375
      %v2377 = vpop.f32.mrf.mxu0
      %2378 = vmatprep.mubr.bf16.mxu0 %v1157
      %2379 = vmatmul.mubr.bf16.gmra.mxu0 %v1156
      %v2380 = vpop.f32.mrf.mxu0
      %v2381 = vadd.f32 %v2220, %v2380
      %v2382 = vpop.f32.mrf.mxu0
      %v2383 = vpop.f32.mrf.mxu0
      %v2384 = vadd.f32 %v2223, %v2383
      %v2385 = vpop.f32.mrf.mxu0
      %2386 = vmatprep.mubr.bf16.mxu0 %v1166
      %2387 = vmatmul.mubr.bf16.gmra.mxu0 %v1165
      %v2388 = vpop.f32.mrf.mxu0
      %v2389 = vadd.f32 %v2228, %v2388
      %v2390 = vpop.f32.mrf.mxu0
      %v2391 = vpop.f32.mrf.mxu0
      %v2392 = vadd.f32 %v2231, %v2391
      %v2393 = vpop.f32.mrf.mxu0
      %2394 = vmatprep.mubr.bf16.mxu0 %v1175
      %2395 = vmatmul.mubr.bf16.gmra.mxu0 %v1174
      %v2396 = vpop.f32.mrf.mxu0
      %v2397 = vadd.f32 %v2236, %v2396
      %v2398 = vpop.f32.mrf.mxu0
      %v2399 = vpop.f32.mrf.mxu0
      %v2400 = vadd.f32 %v2239, %v2399
      %v2401 = vpop.f32.mrf.mxu0
      %2402 = vmatprep.mubr.bf16.mxu0 %v1184
      %2403 = vmatmul.mubr.bf16.gmra.mxu0 %v1183
      %v2404 = vpop.f32.mrf.mxu0
      %v2405 = vadd.f32 %v2244, %v2404
      %v2406 = vpop.f32.mrf.mxu0
      %v2407 = vpop.f32.mrf.mxu0
      %v2408 = vadd.f32 %v2247, %v2407
      %v2409 = vpop.f32.mrf.mxu0
      %2410 = vmatprep.mubr.bf16.mxu0 %v1193
      %2411 = vmatmul.mubr.bf16.gmra.mxu0 %v1192
      %v2412 = vpop.f32.mrf.mxu0
      %v2413 = vadd.f32 %v2252, %v2412
      %v2414 = vpop.f32.mrf.mxu0
      %v2415 = vpop.f32.mrf.mxu0
      %v2416 = vadd.f32 %v2255, %v2415
      %v2417 = vpop.f32.mrf.mxu0
      %2418 = vmatprep.mubr.bf16.mxu0 %v1202
      %2419 = vmatmul.mubr.bf16.gmra.mxu0 %v1201
      %v2420 = vpop.f32.mrf.mxu0
      %v2421 = vadd.f32 %v2260, %v2420
      %v2422 = vpop.f32.mrf.mxu0
      %v2423 = vpop.f32.mrf.mxu0
      %v2424 = vadd.f32 %v2263, %v2423
      %v2425 = vpop.f32.mrf.mxu0
      %2426 = vmatprep.mubr.bf16.mxu0 %v1211
      %2427 = vmatmul.mubr.bf16.gmra.mxu0 %v1210
      %v2428 = vpop.f32.mrf.mxu0
      %v2429 = vadd.f32 %v2268, %v2428
      %v2430 = vpop.f32.mrf.mxu0
      %v2431 = vpop.f32.mrf.mxu0
      %v2432 = vadd.f32 %v2271, %v2431
      %v2433 = vpop.f32.mrf.mxu0
      %2434 = vmatprep.mubr.bf16.mxu0 %v1220
      %2435 = vmatmul.mubr.bf16.gmra.mxu0 %v1219
      %v2436 = vpop.f32.mrf.mxu0
      %v2437 = vadd.f32 %v2276, %v2436
      %v2438 = vpop.f32.mrf.mxu0
      %v2439 = vpop.f32.mrf.mxu0
      %v2440 = vadd.f32 %v2279, %v2439
      %v2441 = vpop.f32.mrf.mxu0
      %2442 = vmatprep.mubr.bf16.mxu0 %v1229
      %2443 = vmatmul.mubr.bf16.gmra.mxu0 %v1228
      %v2444 = vpop.f32.mrf.mxu0
      %v2445 = vadd.f32 %v2284, %v2444
      %v2446 = vpop.f32.mrf.mxu0
      %v2447 = vpop.f32.mrf.mxu0
      %v2448 = vadd.f32 %v2287, %v2447
      %v2449 = vpop.f32.mrf.mxu0
      %2450 = vdwg.mxu0
      %2451 = vmatprep.subr.bf16.mxu0 0
      %2452 = vmatpush1.bf16.msra.mxu0 %v1734
      %2453 = vmatprep.subr.bf16.mxu0 0
      %2454 = vmatpush1.bf16.msra.mxu0 %v1733
      %2455 = vmatprep.subr.bf16.mxu0 0
      %2456 = vmatpush1.bf16.msra.mxu0 %v1732
      %2457 = vmatprep.subr.bf16.mxu0 0
      %2458 = vmatpush1.bf16.msra.mxu0 %v1731
      %2459 = vmatprep.subr.bf16.mxu0 0
      %2460 = vmatpush1.bf16.msra.mxu0 %v1730
      %2461 = vmatprep.subr.bf16.mxu0 0
      %2462 = vmatpush1.bf16.msra.mxu0 %v1729
      %2463 = vmatprep.subr.bf16.mxu0 0
      %2464 = vmatpush1.bf16.msra.mxu0 %v1728
      %2465 = vmatprep.subr.bf16.mxu0 0
      %2466 = vmatpush1.bf16.msra.mxu0 %v1727
      %2467 = vmatprep.subr.bf16.mxu0 0
      %2468 = vmatpush2.bf16.msra.mxu0 0
      %2469 = vmatprep.subr.bf16.mxu0 0
      %2470 = vmatpush2.bf16.msra.mxu0 0
      %2471 = vmatprep.subr.bf16.mxu0 0
      %2472 = vmatpush2.bf16.msra.mxu0 0
      %2473 = vmatprep.subr.bf16.mxu0 0
      %2474 = vmatpush2.bf16.msra.mxu0 0
      %2475 = vmatprep.subr.bf16.mxu0 0
      %2476 = vmatpush2.bf16.msra.mxu0 0
      %2477 = vmatprep.subr.bf16.mxu0 0
      %2478 = vmatpush2.bf16.msra.mxu0 0
      %2479 = vmatprep.subr.bf16.mxu0 0
      %2480 = vmatpush2.bf16.msra.mxu0 0
      %2481 = vmatprep.subr.bf16.mxu0 0
      %2482 = vmatpush2.bf16.msra.mxu0 0
      %2483 = vmatprep.mubr.bf16.mxu0 0
      %2484 = vmatmul.mubr.bf16.gmra.mxu0 %v1095
      %v2485 = vpop.f32.mrf.mxu0
      %v2486 = vadd.f32 %v2325, %v2485
      %v2487 = vpop.f32.mrf.mxu0
      %v2488 = vpop.f32.mrf.mxu0
      %v2489 = vadd.f32 %v2328, %v2488
      %v2490 = vpop.f32.mrf.mxu0
      %2491 = vmatprep.mubr.bf16.mxu0 0
      %2492 = vmatmul.mubr.bf16.gmra.mxu0 %v1104
      %v2493 = vpop.f32.mrf.mxu0
      %v2494 = vadd.f32 %v2333, %v2493
      %v2495 = vpop.f32.mrf.mxu0
      %v2496 = vpop.f32.mrf.mxu0
      %v2497 = vadd.f32 %v2336, %v2496
      %v2498 = vpop.f32.mrf.mxu0
      %2499 = vmatprep.mubr.bf16.mxu0 0
      %2500 = vmatmul.mubr.bf16.gmra.mxu0 %v1113
      %v2501 = vpop.f32.mrf.mxu0
      %v2502 = vadd.f32 %v2341, %v2501
      %v2503 = vpop.f32.mrf.mxu0
      %v2504 = vpop.f32.mrf.mxu0
      %v2505 = vadd.f32 %v2344, %v2504
      %v2506 = vpop.f32.mrf.mxu0
      %2507 = vmatprep.mubr.bf16.mxu0 0
      %2508 = vmatmul.mubr.bf16.gmra.mxu0 %v1122
      %v2509 = vpop.f32.mrf.mxu0
      %v2510 = vadd.f32 %v2349, %v2509
      %v2511 = vpop.f32.mrf.mxu0
      %v2512 = vpop.f32.mrf.mxu0
      %v2513 = vadd.f32 %v2352, %v2512
      %v2514 = vpop.f32.mrf.mxu0
      %2515 = vmatprep.mubr.bf16.mxu0 0
      %2516 = vmatmul.mubr.bf16.gmra.mxu0 %v1131
      %v2517 = vpop.f32.mrf.mxu0
      %v2518 = vadd.f32 %v2357, %v2517
      %v2519 = vpop.f32.mrf.mxu0
      %v2520 = vpop.f32.mrf.mxu0
      %v2521 = vadd.f32 %v2360, %v2520
      %v2522 = vpop.f32.mrf.mxu0
      %2523 = vmatprep.mubr.bf16.mxu0 0
      %2524 = vmatmul.mubr.bf16.gmra.mxu0 %v1140
      %v2525 = vpop.f32.mrf.mxu0
      %v2526 = vadd.f32 %v2365, %v2525
      %v2527 = vpop.f32.mrf.mxu0
      %v2528 = vpop.f32.mrf.mxu0
      %v2529 = vadd.f32 %v2368, %v2528
      %v2530 = vpop.f32.mrf.mxu0
      %2531 = vmatprep.mubr.bf16.mxu0 0
      %2532 = vmatmul.mubr.bf16.gmra.mxu0 %v1149
      %v2533 = vpop.f32.mrf.mxu0
      %v2534 = vadd.f32 %v2373, %v2533
      %v2535 = vpop.f32.mrf.mxu0
      %v2536 = vpop.f32.mrf.mxu0
      %v2537 = vadd.f32 %v2376, %v2536
      %v2538 = vpop.f32.mrf.mxu0
      %2539 = vmatprep.mubr.bf16.mxu0 0
      %2540 = vmatmul.mubr.bf16.gmra.mxu0 %v1158
      %v2541 = vpop.f32.mrf.mxu0
      %v2542 = vadd.f32 %v2381, %v2541
      %v2543 = vpop.f32.mrf.mxu0
      %v2544 = vpop.f32.mrf.mxu0
      %v2545 = vadd.f32 %v2384, %v2544
      %v2546 = vpop.f32.mrf.mxu0
      %2547 = vmatprep.mubr.bf16.mxu0 0
      %2548 = vmatmul.mubr.bf16.gmra.mxu0 %v1167
      %v2549 = vpop.f32.mrf.mxu0
      %v2550 = vadd.f32 %v2389, %v2549
      %v2551 = vpop.f32.mrf.mxu0
      %v2552 = vpop.f32.mrf.mxu0
      %v2553 = vadd.f32 %v2392, %v2552
      %v2554 = vpop.f32.mrf.mxu0
      %2555 = vmatprep.mubr.bf16.mxu0 0
      %2556 = vmatmul.mubr.bf16.gmra.mxu0 %v1176
      %v2557 = vpop.f32.mrf.mxu0
      %v2558 = vadd.f32 %v2397, %v2557
      %v2559 = vpop.f32.mrf.mxu0
      %v2560 = vpop.f32.mrf.mxu0
      %v2561 = vadd.f32 %v2400, %v2560
      %v2562 = vpop.f32.mrf.mxu0
      %2563 = vmatprep.mubr.bf16.mxu0 0
      %2564 = vmatmul.mubr.bf16.gmra.mxu0 %v1185
      %v2565 = vpop.f32.mrf.mxu0
      %v2566 = vadd.f32 %v2405, %v2565
      %v2567 = vpop.f32.mrf.mxu0
      %v2568 = vpop.f32.mrf.mxu0
      %v2569 = vadd.f32 %v2408, %v2568
      %v2570 = vpop.f32.mrf.mxu0
      %2571 = vmatprep.mubr.bf16.mxu0 0
      %2572 = vmatmul.mubr.bf16.gmra.mxu0 %v1194
      %v2573 = vpop.f32.mrf.mxu0
      %v2574 = vadd.f32 %v2413, %v2573
      %v2575 = vpop.f32.mrf.mxu0
      %v2576 = vpop.f32.mrf.mxu0
      %v2577 = vadd.f32 %v2416, %v2576
      %v2578 = vpop.f32.mrf.mxu0
      %2579 = vmatprep.mubr.bf16.mxu0 0
      %2580 = vmatmul.mubr.bf16.gmra.mxu0 %v1203
      %v2581 = vpop.f32.mrf.mxu0
      %v2582 = vadd.f32 %v2421, %v2581
      %v2583 = vpop.f32.mrf.mxu0
      %v2584 = vpop.f32.mrf.mxu0
      %v2585 = vadd.f32 %v2424, %v2584
      %v2586 = vpop.f32.mrf.mxu0
      %2587 = vmatprep.mubr.bf16.mxu0 0
      %2588 = vmatmul.mubr.bf16.gmra.mxu0 %v1212
      %v2589 = vpop.f32.mrf.mxu0
      %v2590 = vadd.f32 %v2429, %v2589
      %v2591 = vpop.f32.mrf.mxu0
      %v2592 = vpop.f32.mrf.mxu0
      %v2593 = vadd.f32 %v2432, %v2592
      %v2594 = vpop.f32.mrf.mxu0
      %2595 = vmatprep.mubr.bf16.mxu0 0
      %2596 = vmatmul.mubr.bf16.gmra.mxu0 %v1221
      %v2597 = vpop.f32.mrf.mxu0
      %v2598 = vadd.f32 %v2437, %v2597
      %v2599 = vpop.f32.mrf.mxu0
      %v2600 = vpop.f32.mrf.mxu0
      %v2601 = vadd.f32 %v2440, %v2600
      %v2602 = vpop.f32.mrf.mxu0
      %2603 = vmatprep.mubr.bf16.mxu0 0
      %2604 = vmatmul.mubr.bf16.gmra.mxu0 %v1230
      %v2605 = vpop.f32.mrf.mxu0
      %v2606 = vadd.f32 %v2445, %v2605
      %v2607 = vpop.f32.mrf.mxu0
      %v2608 = vpop.f32.mrf.mxu0
      %v2609 = vadd.f32 %v2448, %v2608
      %v2610 = vpop.f32.mrf.mxu0
      %2611 = vdwg.mxu0
      %v2612 = vld [vmem:[%s316] sm:$0xf]
      %v2613 = vld [vmem:[%s316 + $0x4] sm:$0xf]
      %v2614 = vld [vmem:[%s316 + $0x8] sm:$0xf]
      %v2615 = vld [vmem:[%s316 + $0xc] sm:$0xf]
      %v2616 = vld [vmem:[%s316 + $0x10] sm:$0xf]
      %v2617 = vld [vmem:[%s316 + $0x14] sm:$0xf]
      %v2618 = vld [vmem:[%s316 + $0x18] sm:$0xf]
      %v2619 = vld [vmem:[%s316 + $0x1c] sm:$0xf]
      %v2620 = vld [vmem:[%s316 + $0x20] sm:$0xf]
      %v2621 = vld [vmem:[%s316 + $0x24] sm:$0xf]
      %v2622 = vld [vmem:[%s316 + $0x28] sm:$0xf]
      %v2623 = vld [vmem:[%s316 + $0x2c] sm:$0xf]
      %v2624 = vld [vmem:[%s316 + $0x30] sm:$0xf]
      %v2625 = vld [vmem:[%s316 + $0x34] sm:$0xf]
      %v2626 = vld [vmem:[%s316 + $0x38] sm:$0xf]
      %v2627 = vld [vmem:[%s316 + $0x3c] sm:$0xf]
      %v2628 = vld [vmem:[%s316 + $0x40] sm:$0xf]
      %v2629 = vld [vmem:[%s316 + $0x44] sm:$0xf]
      %v2630 = vld [vmem:[%s316 + $0x48] sm:$0xf]
      %v2631 = vld [vmem:[%s316 + $0x4c] sm:$0xf]
      %v2632 = vld [vmem:[%s316 + $0x50] sm:$0xf]
      %v2633 = vld [vmem:[%s316 + $0x54] sm:$0xf]
      %v2634 = vld [vmem:[%s316 + $0x58] sm:$0xf]
      %v2635 = vld [vmem:[%s316 + $0x5c] sm:$0xf]
      %v2636 = vld [vmem:[%s316 + $0x60] sm:$0xf]
      %v2637 = vld [vmem:[%s316 + $0x64] sm:$0xf]
      %v2638 = vld [vmem:[%s316 + $0x68] sm:$0xf]
      %v2639 = vld [vmem:[%s316 + $0x6c] sm:$0xf]
      %v2640 = vld [vmem:[%s316 + $0x70] sm:$0xf]
      %v2641 = vld [vmem:[%s316 + $0x74] sm:$0xf]
      %v2642 = vld [vmem:[%s316 + $0x78] sm:$0xf]
      %v2643 = vld [vmem:[%s316 + $0x7c] sm:$0xf]
      %v2644 = vunpack.c.l.bf16 %v2612
      %v2645 = vunpack.c.l.bf16 %v2613
      %v2646 = vunpack.c.l.bf16 %v2614
      %v2647 = vunpack.c.l.bf16 %v2615
      %v2648 = vunpack.c.l.bf16 %v2616
      %v2649 = vunpack.c.l.bf16 %v2617
      %v2650 = vunpack.c.l.bf16 %v2618
      %v2651 = vunpack.c.l.bf16 %v2619
      %v2652 = vunpack.c.l.bf16 %v2620
      %v2653 = vunpack.c.l.bf16 %v2621
      %v2654 = vunpack.c.l.bf16 %v2622
      %v2655 = vunpack.c.l.bf16 %v2623
      %v2656 = vunpack.c.l.bf16 %v2624
      %v2657 = vunpack.c.l.bf16 %v2625
      %v2658 = vunpack.c.l.bf16 %v2626
      %v2659 = vunpack.c.l.bf16 %v2627
      %v2660 = vunpack.c.l.bf16 %v2628
      %v2661 = vunpack.c.l.bf16 %v2629
      %v2662 = vunpack.c.l.bf16 %v2630
      %v2663 = vunpack.c.l.bf16 %v2631
      %v2664 = vunpack.c.l.bf16 %v2632
      %v2665 = vunpack.c.l.bf16 %v2633
      %v2666 = vunpack.c.l.bf16 %v2634
      %v2667 = vunpack.c.l.bf16 %v2635
      %v2668 = vunpack.c.l.bf16 %v2636
      %v2669 = vunpack.c.l.bf16 %v2637
      %v2670 = vunpack.c.l.bf16 %v2638
      %v2671 = vunpack.c.l.bf16 %v2639
      %v2672 = vunpack.c.l.bf16 %v2640
      %v2673 = vunpack.c.l.bf16 %v2641
      %v2674 = vunpack.c.l.bf16 %v2642
      %v2675 = vunpack.c.l.bf16 %v2643
      %v2676 = vadd.f32 %v2486, %v2644
      %v2677 = vadd.f32 %v2489, %v2645
      %v2678 = vadd.f32 %v2494, %v2646
      %v2679 = vadd.f32 %v2497, %v2647
      %v2680 = vadd.f32 %v2502, %v2648
      %v2681 = vadd.f32 %v2505, %v2649
      %v2682 = vadd.f32 %v2510, %v2650
      %v2683 = vadd.f32 %v2513, %v2651
      %v2684 = vadd.f32 %v2518, %v2652
      %v2685 = vadd.f32 %v2521, %v2653
      %v2686 = vadd.f32 %v2526, %v2654
      %v2687 = vadd.f32 %v2529, %v2655
      %v2688 = vadd.f32 %v2534, %v2656
      %v2689 = vadd.f32 %v2537, %v2657
      %v2690 = vadd.f32 %v2542, %v2658
      %v2691 = vadd.f32 %v2545, %v2659
      %v2692 = vadd.f32 %v2550, %v2660
      %v2693 = vadd.f32 %v2553, %v2661
      %v2694 = vadd.f32 %v2558, %v2662
      %v2695 = vadd.f32 %v2561, %v2663
      %v2696 = vadd.f32 %v2566, %v2664
      %v2697 = vadd.f32 %v2569, %v2665
      %v2698 = vadd.f32 %v2574, %v2666
      %v2699 = vadd.f32 %v2577, %v2667
      %v2700 = vadd.f32 %v2582, %v2668
      %v2701 = vadd.f32 %v2585, %v2669
      %v2702 = vadd.f32 %v2590, %v2670
      %v2703 = vadd.f32 %v2593, %v2671
      %v2704 = vadd.f32 %v2598, %v2672
      %v2705 = vadd.f32 %v2601, %v2673
      %v2706 = vadd.f32 %v2606, %v2674
      %v2707 = vadd.f32 %v2609, %v2675
      %v2708 = vmax.f32 %v2676, 0.0
      %v2709 = vmax.f32 %v2677, 0.0
      %v2710 = vmax.f32 %v2678, 0.0
      %v2711 = vmax.f32 %v2679, 0.0
      %v2712 = vmax.f32 %v2680, 0.0
      %v2713 = vmax.f32 %v2681, 0.0
      %v2714 = vmax.f32 %v2682, 0.0
      %v2715 = vmax.f32 %v2683, 0.0
      %v2716 = vmax.f32 %v2684, 0.0
      %v2717 = vmax.f32 %v2685, 0.0
      %v2718 = vmax.f32 %v2686, 0.0
      %v2719 = vmax.f32 %v2687, 0.0
      %v2720 = vmax.f32 %v2688, 0.0
      %v2721 = vmax.f32 %v2689, 0.0
      %v2722 = vmax.f32 %v2690, 0.0
      %v2723 = vmax.f32 %v2691, 0.0
      %v2724 = vmax.f32 %v2692, 0.0
      %v2725 = vmax.f32 %v2693, 0.0
      %v2726 = vmax.f32 %v2694, 0.0
      %v2727 = vmax.f32 %v2695, 0.0
      %v2728 = vmax.f32 %v2696, 0.0
      %v2729 = vmax.f32 %v2697, 0.0
      %v2730 = vmax.f32 %v2698, 0.0
      %v2731 = vmax.f32 %v2699, 0.0
      %v2732 = vmax.f32 %v2700, 0.0
      %v2733 = vmax.f32 %v2701, 0.0
      %v2734 = vmax.f32 %v2702, 0.0
      %v2735 = vmax.f32 %v2703, 0.0
      %v2736 = vmax.f32 %v2704, 0.0
      %v2737 = vmax.f32 %v2705, 0.0
      %v2738 = vmax.f32 %v2706, 0.0
      %v2739 = vmax.f32 %v2707, 0.0
      %v2740 = vpack.c.bf16 %v2709, %v2708
      %v2741 = vpack.c.bf16 %v2711, %v2710
      %v2742 = vpack.c.bf16 %v2713, %v2712
      %v2743 = vpack.c.bf16 %v2715, %v2714
      %v2744 = vpack.c.bf16 %v2717, %v2716
      %v2745 = vpack.c.bf16 %v2719, %v2718
      %v2746 = vpack.c.bf16 %v2721, %v2720
      %v2747 = vpack.c.bf16 %v2723, %v2722
      %v2748 = vpack.c.bf16 %v2725, %v2724
      %v2749 = vpack.c.bf16 %v2727, %v2726
      %v2750 = vpack.c.bf16 %v2729, %v2728
      %v2751 = vpack.c.bf16 %v2731, %v2730
      %v2752 = vpack.c.bf16 %v2733, %v2732
      %v2753 = vpack.c.bf16 %v2735, %v2734
      %v2754 = vpack.c.bf16 %v2737, %v2736
      %v2755 = vpack.c.bf16 %v2739, %v2738
      %v2772 = vunpack.c.l.b16 %v2740
      %v2773 = vunpack.c.h.b16 %v2740
      %v2774 = vunpack.c.l.b16 %v2741
      %v2775 = vunpack.c.h.b16 %v2741
      %v2776 = vunpack.c.l.b16 %v2742
      %v2777 = vunpack.c.h.b16 %v2742
      %v2778 = vunpack.c.l.b16 %v2743
      %v2779 = vunpack.c.h.b16 %v2743
      %v2780 = vunpack.c.l.b16 %v2744
      %v2781 = vunpack.c.h.b16 %v2744
      %v2782 = vunpack.c.l.b16 %v2745
      %v2783 = vunpack.c.h.b16 %v2745
      %v2784 = vunpack.c.l.b16 %v2746
      %v2785 = vunpack.c.h.b16 %v2746
      %v2786 = vunpack.c.l.b16 %v2747
      %v2787 = vunpack.c.h.b16 %v2747
      %v2788 = vunpack.c.l.b16 %v2748
      %v2789 = vunpack.c.h.b16 %v2748
      %v2790 = vunpack.c.l.b16 %v2749
      %v2791 = vunpack.c.h.b16 %v2749
      %v2792 = vunpack.c.l.b16 %v2750
      %v2793 = vunpack.c.h.b16 %v2750
      %v2794 = vunpack.c.l.b16 %v2751
      %v2795 = vunpack.c.h.b16 %v2751
      %v2796 = vunpack.c.l.b16 %v2752
      %v2797 = vunpack.c.h.b16 %v2752
      %v2798 = vunpack.c.l.b16 %v2753
      %v2799 = vunpack.c.h.b16 %v2753
      %v2800 = vunpack.c.l.b16 %v2754
      %v2801 = vunpack.c.h.b16 %v2754
      %v2802 = vunpack.c.l.b16 %v2755
      %v2803 = vunpack.c.h.b16 %v2755
      %v2804 = vpack.c.b16 %v2772, %v2772
      %v2805 = vpack.c.b16 %v2773, %v2773
      %v2806 = vpack.c.b16 %v2774, %v2774
      %v2807 = vpack.c.b16 %v2775, %v2775
      %v2808 = vpack.c.b16 %v2776, %v2776
      %v2809 = vpack.c.b16 %v2777, %v2777
      %v2810 = vpack.c.b16 %v2778, %v2778
      %v2811 = vpack.c.b16 %v2779, %v2779
      %v2812 = vpack.c.b16 %v2780, %v2780
      %v2813 = vpack.c.b16 %v2781, %v2781
      %v2814 = vpack.c.b16 %v2782, %v2782
      %v2815 = vpack.c.b16 %v2783, %v2783
      %v2816 = vpack.c.b16 %v2784, %v2784
      %v2817 = vpack.c.b16 %v2785, %v2785
      %v2818 = vpack.c.b16 %v2786, %v2786
      %v2819 = vpack.c.b16 %v2787, %v2787
      %v2820 = vpack.c.b16 %v2788, %v2788
      %v2821 = vpack.c.b16 %v2789, %v2789
      %v2822 = vpack.c.b16 %v2790, %v2790
      %v2823 = vpack.c.b16 %v2791, %v2791
      %v2824 = vpack.c.b16 %v2792, %v2792
      %v2825 = vpack.c.b16 %v2793, %v2793
      %v2826 = vpack.c.b16 %v2794, %v2794
      %v2827 = vpack.c.b16 %v2795, %v2795
      %v2828 = vpack.c.b16 %v2796, %v2796
      %v2829 = vpack.c.b16 %v2797, %v2797
      %v2830 = vpack.c.b16 %v2798, %v2798
      %v2831 = vpack.c.b16 %v2799, %v2799
      %v2832 = vpack.c.b16 %v2800, %v2800
      %v2833 = vpack.c.b16 %v2801, %v2801
      %v2834 = vpack.c.b16 %v2802, %v2802
      %v2835 = vpack.c.b16 %v2803, %v2803
      %2868 = vst [vmem:[%s325] sm:$0xf] %v2804
      %2869 = vst [vmem:[%s325 + $0x4] sm:$0xf] %v2805
      %2870 = vst [vmem:[%s325 + $0x8] sm:$0xf] %v2806
      %2871 = vst [vmem:[%s325 + $0xc] sm:$0xf] %v2807
      %2872 = vst [vmem:[%s325 + $0x10] sm:$0xf] %v2808
      %2873 = vst [vmem:[%s325 + $0x14] sm:$0xf] %v2809
      %2874 = vst [vmem:[%s325 + $0x18] sm:$0xf] %v2810
      %2875 = vst [vmem:[%s325 + $0x1c] sm:$0xf] %v2811
      %2876 = vst [vmem:[%s325 + $0x20] sm:$0xf] %v2812
      %2877 = vst [vmem:[%s325 + $0x24] sm:$0xf] %v2813
      %2878 = vst [vmem:[%s325 + $0x28] sm:$0xf] %v2814
      %2879 = vst [vmem:[%s325 + $0x2c] sm:$0xf] %v2815
      %2880 = vst [vmem:[%s325 + $0x30] sm:$0xf] %v2816
      %2881 = vst [vmem:[%s325 + $0x34] sm:$0xf] %v2817
      %2882 = vst [vmem:[%s325 + $0x38] sm:$0xf] %v2818
      %2883 = vst [vmem:[%s325 + $0x3c] sm:$0xf] %v2819
      %2884 = vst [vmem:[%s325 + $0x40] sm:$0xf] %v2820
      %2885 = vst [vmem:[%s325 + $0x44] sm:$0xf] %v2821
      %2886 = vst [vmem:[%s325 + $0x48] sm:$0xf] %v2822
      %2887 = vst [vmem:[%s325 + $0x4c] sm:$0xf] %v2823
      %2888 = vst [vmem:[%s325 + $0x50] sm:$0xf] %v2824
      %2889 = vst [vmem:[%s325 + $0x54] sm:$0xf] %v2825
      %2890 = vst [vmem:[%s325 + $0x58] sm:$0xf] %v2826
      %2891 = vst [vmem:[%s325 + $0x5c] sm:$0xf] %v2827
      %2892 = vst [vmem:[%s325 + $0x60] sm:$0xf] %v2828
      %2893 = vst [vmem:[%s325 + $0x64] sm:$0xf] %v2829
      %2894 = vst [vmem:[%s325 + $0x68] sm:$0xf] %v2830
      %2895 = vst [vmem:[%s325 + $0x6c] sm:$0xf] %v2831
      %2896 = vst [vmem:[%s325 + $0x70] sm:$0xf] %v2832
      %2897 = vst [vmem:[%s325 + $0x74] sm:$0xf] %v2833
      %2898 = vst [vmem:[%s325 + $0x78] sm:$0xf] %v2834
      %2899 = vst [vmem:[%s325 + $0x7c] sm:$0xf] %v2835
      %s2900 = smul.u32 32, %s20
      %p2901 = scmp.lt.s32.totalorder %s2900, 63
      %s2902 = scalar_select %p2901, %s2900, 63
      %p2903 = scmp.lt.s32.totalorder %s21, 0
      %s2904 = scalar_select %p2903, %s21, 0
      %s2905 = sadd.s32 %s2904, %s2902
      %s2906 = smul.addr %s2905, 4
      %s2907 = scalar_lea.vmem %s4, %s2906
      // Predicated region
      $region37: #{_lambda_.3} parent=35 // pred_check
        %p2908 = pneg %p164
      $region38: #{_lambda_.3} parent=35 // pred_check_branch
        %2910 = sbr.rel (%p2908) target = $region40
      $region39: #{_lambda_.3} parent=35 // pred_region
        %s2911 = smul.u32 32, %s20
      $region40: #{_lambda_.3} parent=35 // pred_fallthru
        _
    $region36: #{_lambda_.3} parent=5 // pred_fallthru
      _
    %p2912 = scmp.le.s32.totalorder 2, %s10
    // Predicated region
    $region41: #{_lambda_.3} parent=5 // pred_check
      %p2913 = pneg %p2912
    $region42: #{_lambda_.3} parent=5 // pred_check_branch
      %2915 = sbr.rel (%p2913) target = $region44
    $region43: #{_lambda_.3} parent=5 // pred_region
      %s2916 = ssub.s32 %s10, 2
      // Predicated region
      $region45: #{_lambda_.3} parent=43 // pred_check
        %p2917 = pneg %p170
      $region46: #{_lambda_.3} parent=43 // pred_check_branch
        %2919 = sbr.rel (%p2917) target = $region48
      $region47: #{_lambda_.3} parent=43 // pred_region
        %s2920 = smul.u32 32, %s23
        %p2921 = scmp.lt.s32.totalorder %s2920, 63
        %s2922 = scalar_select %p2921, %s2920, 63
        %p2923 = scmp.lt.s32.totalorder %s24, 0
        %s2924 = scalar_select %p2923, %s24, 0
        %s2925 = sadd.s32 %s2924, %s2922
        %s2926 = smul.addr %s2925, 4
        %s2927 = scalar_lea.vmem %s4, %s2926
      $region48: #{_lambda_.3} parent=43 // pred_fallthru
        _
    $region44: #{_lambda_.3} parent=5 // pred_fallthru
      _
  $region6: #{_lambda_.3} parent=0 // loop_footer
    %s14 = sadd.s32 1, %s10
  $region7: #{_lambda_.3} parent=0 // loop_footer_branch
    %9 = sbr.rel target = $region3
  $region8: #{_lambda_.3} parent=0 // loop_exit
    _

// kernel: _lambda_.2
$region0: #{_lambda_.2}
  #allocation0 [shape = 'u32[]', space=smem, size = 0x4, offset = 0x4, fixed_abs, tag = 'smem constant byte address 0x4 - core index']
  #allocation1 [shape = 'u32[144,128]{1,0:T(1,128)}', space=vmem, size = 0x12000, scoped, tag = 'internal scratch']
  %s0 = inlined_call_operand.vmem [shape: bf16[512,1152], index: 0, kind: input, shape index: {}]
  %s1 = inlined_call_operand.vmem [shape: bf16[1152,128], index: 1, kind: input, shape index: {}]
  %s2 = inlined_call_operand.vmem [shape: f32[1,128], index: 2, kind: input, shape index: {}]
  %s3 = inlined_call_operand.vmem [shape: bf16[512,128], index: 3, kind: output, shape index: {}]
  %s4 = sld [smem:[#allocation0]]
  $region45: #{_lambda_.2} parent=0
    _
  %s6 = ssub.s32 1, %s4
  %s7 = scalar_select 0, %s6, %s4
  loop: start=0, step=1, limit=4
  $region2: #{_lambda_.2} parent=0 // loop_pre_header
    _
  $region3: #{_lambda_.2} parent=0 // loop_header
    %s9 = sphi 0, %s13
    %p10 = scmp.ge.s32.totalorder %s9, 4
    %s16 = sphi 0, %s35
    %s17 = sphi 0, %s31
    %s18 = sphi 0, %s27
    %s19 = sphi 0, %s16
    %s20 = sphi 0, %s17
    %s21 = sphi 0, %s18
    %s22 = sphi 0, %s19
    %s23 = sphi 0, %s20
    %s24 = sphi 0, %s21
    %s40 = sphi 0, %s42
    %s43 = sphi 0, %s40
    %s44 = sphi 0, %s43
    %s60 = sphi 0, %s44
    %s68 = sphi 0, %s70
    %s71 = sphi 0, %s68
    %s72 = sphi 0, %s71
    %s88 = sphi 0, %s72
    %s94 = sphi 0, %s96
    %s97 = sphi 0, %s94
    %s98 = sphi 0, %s97
    %s114 = sphi 0, %s98
    %s122 = sphi 0, %s124
    %s125 = sphi 0, %s122
    %s126 = sphi 0, %s125
    %s142 = sphi 0, %s126
  $region4: #{_lambda_.2} parent=0 // loop_header_branch
    %12 = sbr.rel (%p10) target = $region8
  $region5: #{_lambda_.2} parent=0 // loop_body
    %s14 = ssub.s32 %s9, 1
    %s15 = ssub.s32 %s9, 2
    %s25 = sadd.s32 1, %s18
    %p26 = scmp.ge.s32.totalorder %s25, 1
    %s27 = scalar_select %p26, 0, %s25
    %s28 = sadd.s32 1, %s17
    %s29 = scalar_select %p26, %s28, %s17
    %p30 = scmp.ge.s32.totalorder %s29, 1
    %s31 = scalar_select %p30, 0, %s29
    %s32 = sadd.s32 1, %s16
    %s33 = scalar_select %p30, %s32, %s16
    %p34 = scmp.ge.s32.totalorder %s33, 2
    %s35 = scalar_select %p34, 0, %s33
    %s36 = ssub.s32 %s16, %s35
    %s37 = ssub.s32 %s18, %s27
    %s38 = sor.u32 %s36, %s37
    %p39 = scmp.eq.s32.totalorder %s38, 0
    %s41 = sadd.s32 %s40, 1
    %s42 = scalar_select %p39, %s40, %s41
    %p45 = pneg %p39
    %p46 = scmp.eq.s32.totalorder %s9, 1
    %p47 = por %p45, %p46
    %p48 = scmp.ne.s32.totalorder %s40, %s43
    %p49 = scmp.eq.s32.totalorder %s9, 0
    %p50 = por %p48, %p49
    %p51 = scmp.ne.s32.totalorder %s40, %s43
    %p52 = scmp.eq.s32.totalorder %s14, 1
    %p53 = por %p51, %p52
    %p54 = scmp.ne.s32.totalorder %s43, %s44
    %p55 = scmp.eq.s32.totalorder %s14, 0
    %p56 = por %p54, %p55
    %p57 = scmp.ne.s32.totalorder %s43, %s44
    %p58 = scmp.eq.s32.totalorder %s15, 1
    %p59 = por %p57, %p58
    %p61 = scmp.ne.s32.totalorder %s44, %s60
    %p62 = scmp.eq.s32.totalorder %s15, 0
    %p63 = por %p61, %p62
    %s64 = ssub.s32 %s18, %s27
    %s65 = ssub.s32 %s17, %s31
    %s66 = sor.u32 %s64, %s65
    %p67 = scmp.eq.s32.totalorder %s66, 0
    %s69 = sadd.s32 %s68, 1
    %s70 = scalar_select %p67, %s68, %s69
    %p73 = pneg %p67
    %p74 = scmp.eq.s32.totalorder %s9, 1
    %p75 = por %p73, %p74
    %p76 = scmp.ne.s32.totalorder %s68, %s71
    %p77 = scmp.eq.s32.totalorder %s9, 0
    %p78 = por %p76, %p77
    %p79 = scmp.ne.s32.totalorder %s68, %s71
    %p80 = scmp.eq.s32.totalorder %s14, 1
    %p81 = por %p79, %p80
    %p82 = scmp.ne.s32.totalorder %s71, %s72
    %p83 = scmp.eq.s32.totalorder %s14, 0
    %p84 = por %p82, %p83
    %p85 = scmp.ne.s32.totalorder %s71, %s72
    %p86 = scmp.eq.s32.totalorder %s15, 1
    %p87 = por %p85, %p86
    %p89 = scmp.ne.s32.totalorder %s72, %s88
    %p90 = scmp.eq.s32.totalorder %s15, 0
    %p91 = por %p89, %p90
    %s92 = ssub.s32 %s17, %s31
    %p93 = scmp.eq.s32.totalorder %s92, 0
    %s95 = sadd.s32 %s94, 1
    %s96 = scalar_select %p93, %s94, %s95
    %p99 = pneg %p93
    %p100 = scmp.eq.s32.totalorder %s9, 1
    %p101 = por %p99, %p100
    %p102 = scmp.ne.s32.totalorder %s94, %s97
    %p103 = scmp.eq.s32.totalorder %s9, 0
    %p104 = por %p102, %p103
    %p105 = scmp.ne.s32.totalorder %s94, %s97
    %p106 = scmp.eq.s32.totalorder %s14, 1
    %p107 = por %p105, %p106
    %p108 = scmp.ne.s32.totalorder %s97, %s98
    %p109 = scmp.eq.s32.totalorder %s14, 0
    %p110 = por %p108, %p109
    %p111 = scmp.ne.s32.totalorder %s97, %s98
    %p112 = scmp.eq.s32.totalorder %s15, 1
    %p113 = por %p111, %p112
    %p115 = scmp.ne.s32.totalorder %s98, %s114
    %p116 = scmp.eq.s32.totalorder %s15, 0
    %p117 = por %p115, %p116
    %s118 = ssub.s32 %s16, %s35
    %s119 = ssub.s32 %s17, %s31
    %s120 = sor.u32 %s118, %s119
    %p121 = scmp.eq.s32.totalorder %s120, 0
    %s123 = sadd.s32 %s122, 1
    %s124 = scalar_select %p121, %s122, %s123
    %p127 = pneg %p121
    %p128 = scmp.eq.s32.totalorder %s9, 1
    %p129 = por %p127, %p128
    %p130 = scmp.ne.s32.totalorder %s122, %s125
    %p131 = scmp.eq.s32.totalorder %s9, 0
    %p132 = por %p130, %p131
    %p133 = scmp.ne.s32.totalorder %s122, %s125
    %p134 = scmp.eq.s32.totalorder %s14, 1
    %p135 = por %p133, %p134
    %p136 = scmp.ne.s32.totalorder %s125, %s126
    %p137 = scmp.eq.s32.totalorder %s14, 0
    %p138 = por %p136, %p137
    %p139 = scmp.ne.s32.totalorder %s125, %s126
    %p140 = scmp.eq.s32.totalorder %s15, 1
    %p141 = por %p139, %p140
    %p143 = scmp.ne.s32.totalorder %s126, %s142
    %p144 = scmp.eq.s32.totalorder %s15, 0
    %p145 = por %p143, %p144
    %p146 = scmp.le.s32.totalorder 1, %s9
    %p147 = scmp.lt.s32.totalorder %s9, 3
    %p148 = pnand %p146, %p147
    %p149 = pneg %p148
    // Predicated region
    $region9: #{_lambda_.2} parent=5 // pred_check
      _
    $region10: #{_lambda_.2} parent=5 // pred_check_branch
      %151 = sbr.rel (%p148) target = $region12
    $region11: #{_lambda_.2} parent=5 // pred_region
      %s152 = ssub.s32 %s9, 1
      // Predicated region
      $region13: #{_lambda_.2} parent=11 // pred_check
        %p153 = pneg %p84
      $region14: #{_lambda_.2} parent=11 // pred_check_branch
        %155 = sbr.rel (%p153) target = $region16
      $region15: #{_lambda_.2} parent=11 // pred_region
        %s156 = smul.u32 144, %s21
        %p157 = scmp.lt.s32.totalorder %s156, 143
        %s158 = scalar_select %p157, %s156, 143
        %p159 = scmp.lt.s32.totalorder %s20, 0
        %s160 = scalar_select %p159, %s20, 0
        %s161 = sadd.s32 %s160, %s158
        %s162 = smul.addr %s161, 4
        %s163 = scalar_lea.vmem %s1, %s162
        %s164 = smul.u32 144, %s21
      $region16: #{_lambda_.2} parent=11 // pred_fallthru
        _
      // Predicated region
      $region17: #{_lambda_.2} parent=11 // pred_check
        %p165 = pneg %p110
      $region18: #{_lambda_.2} parent=11 // pred_check_branch
        %167 = sbr.rel (%p165) target = $region20
      $region19: #{_lambda_.2} parent=11 // pred_region
        %p168 = scmp.lt.s32.totalorder %s20, 0
        %s169 = scalar_select %p168, %s20, 0
        %s170 = scalar_lea.vmem %s2, %s169
      $region20: #{_lambda_.2} parent=11 // pred_fallthru
        _
    $region12: #{_lambda_.2} parent=5 // pred_fallthru
      _
    %p171 = scmp.lt.s32.totalorder %s9, 2
    // Predicated region
    $region21: #{_lambda_.2} parent=5 // pred_check
      %p172 = pneg %p171
    $region22: #{_lambda_.2} parent=5 // pred_check_branch
      %174 = sbr.rel (%p172) target = $region24
    $region23: #{_lambda_.2} parent=5 // pred_region
      // Predicated region
      $region25: #{_lambda_.2} parent=23 // pred_check
        %p175 = pneg %p50
      $region26: #{_lambda_.2} parent=23 // pred_check_branch
        %177 = sbr.rel (%p175) target = $region28
      $region27: #{_lambda_.2} parent=23 // pred_region
        %s178 = smul.u32 32, %s16
        %s179 = smul.u32 9, %s18
        %p180 = scmp.lt.s32.totalorder %s178, 63
        %s181 = scalar_select %p180, %s178, 63
        %p182 = scmp.lt.s32.totalorder %s179, 8
        %s183 = scalar_select %p182, %s179, 8
        %s184 = smul.addr %s181, 9
        %s185 = sadd.s32 %s183, %s184
        %s186 = smul.addr %s185, 4
        %s187 = scalar_lea.vmem %s0, %s186
        %s188 = smul.u32 32, %s16
        %s189 = smul.u32 9, %s18
      $region28: #{_lambda_.2} parent=23 // pred_fallthru
        _
    $region24: #{_lambda_.2} parent=5 // pred_fallthru
      _
    %p190 = scmp.le.s32.totalorder 1, %s9
    %p191 = scmp.lt.s32.totalorder %s9, 3
    %p192 = pnand %p190, %p191
    %p193 = pneg %p192
    // Predicated region
    $region29: #{_lambda_.2} parent=5 // pred_check
      _
    $region30: #{_lambda_.2} parent=5 // pred_check_branch
      %195 = sbr.rel (%p192) target = $region32
    $region31: #{_lambda_.2} parent=5 // pred_region
      %s196 = ssub.s32 %s9, 1
      %s197 = smul.u32 32, %s19
      %s198 = smul.u32 9, %s21
      %p199 = scmp.lt.s32.totalorder %s197, 63
      %s200 = scalar_select %p199, %s197, 63
      %p201 = scmp.lt.s32.totalorder %s198, 8
      %s202 = scalar_select %p201, %s198, 8
      %s203 = smul.addr %s200, 9
      %s204 = sadd.s32 %s202, %s203
      %s205 = smul.addr %s204, 4
      %s206 = scalar_lea.vmem %s0, %s205
      %p207 = pneg %p56
      %p208 = pneg %p53
      %s209 = smul.u32 144, %s21
      %p210 = scmp.lt.s32.totalorder %s209, 143
      %s211 = scalar_select %p210, %s209, 143
      %p212 = scmp.lt.s32.totalorder %s20, 0
      %s213 = scalar_select %p212, %s20, 0
      %s214 = sadd.s32 %s213, %s211
      %s215 = smul.addr %s214, 4
      %s216 = scalar_lea.vmem %s1, %s215
      %p217 = pneg %p84
      %p218 = pneg %p81
      %p219 = scmp.lt.s32.totalorder %s20, 0
      %s220 = scalar_select %p219, %s20, 0
      %s221 = scalar_lea.vmem %s2, %s220
      %p222 = pneg %p110
      %p223 = pneg %p107
      %p224 = pneg %p138
      %p225 = pneg %p135
      %s226 = smul.u32 32, %s19
      %p227 = scmp.lt.s32.totalorder %s226, 63
      %s228 = scalar_select %p227, %s226, 63
      %p229 = scmp.lt.s32.totalorder %s20, 0
      %s230 = scalar_select %p229, %s20, 0
      %s231 = sadd.s32 %s230, %s228
      %s232 = smul.addr %s231, 4
      %s233 = scalar_lea.vmem %s3, %s232
      %s234 = smul.u32 32, %s19
      %s235 = smul.u32 9, %s21
      %p236 = scmp.lt.s32.totalorder %s234, 63
      %s237 = scalar_select %p236, %s234, 63
      %p238 = scmp.lt.s32.totalorder %s235, 8
      %s239 = scalar_select %p238, %s235, 8
      %s240 = smul.addr %s237, 9
      %s241 = sadd.s32 %s239, %s240
      %s242 = smul.addr %s241, 4
      %s243 = scalar_lea.vmem %s0, %s242
      %s244 = smul.u32 32, %s19
      %s245 = smul.u32 9, %s21
      %s246 = smul.u32 144, %s21
      %p247 = scmp.lt.s32.totalorder %s246, 143
      %s248 = scalar_select %p247, %s246, 143
      %p249 = scmp.lt.s32.totalorder %s20, 0
      %s250 = scalar_select %p249, %s20, 0
      %s251 = sadd.s32 %s250, %s248
      %s252 = smul.addr %s251, 4
      %s253 = scalar_lea.vmem %s1, %s252
      %s254 = smul.u32 144, %s21
      %p255 = scmp.lt.s32.totalorder %s20, 0
      %s256 = scalar_select %p255, %s20, 0
      %s257 = scalar_lea.vmem %s2, %s256
      %s258 = smul.u32 32, %s19
      %p259 = scmp.lt.s32.totalorder %s258, 63
      %s260 = scalar_select %p259, %s258, 63
      %p261 = scmp.lt.s32.totalorder %s20, 0
      %s262 = scalar_select %p261, %s20, 0
      %s263 = sadd.s32 %s262, %s260
      %s264 = smul.addr %s263, 4
      %s265 = scalar_lea.vmem %s3, %s264
      %s266 = smul.u32 32, %s19
      %v268 = vld [vmem:[%s243] sm:$0xff]
      %v269 = vld [vmem:[%s243 + $0x8] sm:$0xff]
      %v270 = vld [vmem:[%s243 + $0x10] sm:$0xff]
      %v271 = vld [vmem:[%s243 + $0x18] sm:$0xff]
      %v272 = vld [vmem:[%s243 + $0x20] sm:$0xf]
      %v273 = vld [vmem:[%s243 + $0x24] sm:$0xff]
      %v274 = vld [vmem:[%s243 + $0x2c] sm:$0xff]
      %v275 = vld [vmem:[%s243 + $0x34] sm:$0xff]
      %v276 = vld [vmem:[%s243 + $0x3c] sm:$0xff]
      %v277 = vld [vmem:[%s243 + $0x44] sm:$0xf]
      %v278 = vld [vmem:[%s243 + $0x48] sm:$0xff]
      %v279 = vld [vmem:[%s243 + $0x50] sm:$0xff]
      %v280 = vld [vmem:[%s243 + $0x58] sm:$0xff]
      %v281 = vld [vmem:[%s243 + $0x60] sm:$0xff]
      %v282 = vld [vmem:[%s243 + $0x68] sm:$0xf]
      %v283 = vld [vmem:[%s243 + $0x6c] sm:$0xff]
      %v284 = vld [vmem:[%s243 + $0x74] sm:$0xff]
      %v285 = vld [vmem:[%s243 + $0x7c] sm:$0xff]
      %v286 = vld [vmem:[%s243 + $0x84] sm:$0xff]
      %v287 = vld [vmem:[%s243 + $0x8c] sm:$0xf]
      %v288 = vld [vmem:[%s243 + $0x90] sm:$0xff]
      %v289 = vld [vmem:[%s243 + $0x98] sm:$0xff]
      %v290 = vld [vmem:[%s243 + $0xa0] sm:$0xff]
      %v291 = vld [vmem:[%s243 + $0xa8] sm:$0xff]
      %v292 = vld [vmem:[%s243 + $0xb0] sm:$0xf]
      %v293 = vld [vmem:[%s243 + $0xb4] sm:$0xff]
      %v294 = vld [vmem:[%s243 + $0xbc] sm:$0xff]
      %v295 = vld [vmem:[%s243 + $0xc4] sm:$0xff]
      %v296 = vld [vmem:[%s243 + $0xcc] sm:$0xff]
      %v297 = vld [vmem:[%s243 + $0xd4] sm:$0xf]
      %v298 = vld [vmem:[%s243 + $0xd8] sm:$0xff]
      %v299 = vld [vmem:[%s243 + $0xe0] sm:$0xff]
      %v300 = vld [vmem:[%s243 + $0xe8] sm:$0xff]
      %v301 = vld [vmem:[%s243 + $0xf0] sm:$0xff]
      %v302 = vld [vmem:[%s243 + $0xf8] sm:$0xf]
      %v303 = vld [vmem:[%s243 + $0xfc] sm:$0xff]
      %v304 = vld [vmem:[%s243 + $0x104] sm:$0xff]
      %v305 = vld [vmem:[%s243 + $0x10c] sm:$0xff]
      %v306 = vld [vmem:[%s243 + $0x114] sm:$0xff]
      %v307 = vld [vmem:[%s243 + $0x11c] sm:$0xf]
      %v308 = vld [vmem:[%s243 + $0x120] sm:$0xff]
      %v309 = vld [vmem:[%s243 + $0x128] sm:$0xff]
      %v310 = vld [vmem:[%s243 + $0x130] sm:$0xff]
      %v311 = vld [vmem:[%s243 + $0x138] sm:$0xff]
      %v312 = vld [vmem:[%s243 + $0x140] sm:$0xf]
      %v313 = vld [vmem:[%s243 + $0x144] sm:$0xff]
      %v314 = vld [vmem:[%s243 + $0x14c] sm:$0xff]
      %v315 = vld [vmem:[%s243 + $0x154] sm:$0xff]
      %v316 = vld [vmem:[%s243 + $0x15c] sm:$0xff]
      %v317 = vld [vmem:[%s243 + $0x164] sm:$0xf]
      %v318 = vld [vmem:[%s243 + $0x168] sm:$0xff]
      %v319 = vld [vmem:[%s243 + $0x170] sm:$0xff]
      %v320 = vld [vmem:[%s243 + $0x178] sm:$0xff]
      %v321 = vld [vmem:[%s243 + $0x180] sm:$0xff]
      %v322 = vld [vmem:[%s243 + $0x188] sm:$0xf]
      %v323 = vld [vmem:[%s243 + $0x18c] sm:$0xff]
      %v324 = vld [vmem:[%s243 + $0x194] sm:$0xff]
      %v325 = vld [vmem:[%s243 + $0x19c] sm:$0xff]
      %v326 = vld [vmem:[%s243 + $0x1a4] sm:$0xff]
      %v327 = vld [vmem:[%s243 + $0x1ac] sm:$0xf]
      %v328 = vld [vmem:[%s243 + $0x1b0] sm:$0xff]
      %v329 = vld [vmem:[%s243 + $0x1b8] sm:$0xff]
      %v330 = vld [vmem:[%s243 + $0x1c0] sm:$0xff]
      %v331 = vld [vmem:[%s243 + $0x1c8] sm:$0xff]
      %v332 = vld [vmem:[%s243 + $0x1d0] sm:$0xf]
      %v333 = vld [vmem:[%s243 + $0x1d4] sm:$0xff]
      %v334 = vld [vmem:[%s243 + $0x1dc] sm:$0xff]
      %v335 = vld [vmem:[%s243 + $0x1e4] sm:$0xff]
      %v336 = vld [vmem:[%s243 + $0x1ec] sm:$0xff]
      %v337 = vld [vmem:[%s243 + $0x1f4] sm:$0xf]
      %v338 = vld [vmem:[%s243 + $0x1f8] sm:$0xff]
      %v339 = vld [vmem:[%s243 + $0x200] sm:$0xff]
      %v340 = vld [vmem:[%s243 + $0x208] sm:$0xff]
      %v341 = vld [vmem:[%s243 + $0x210] sm:$0xff]
      %v342 = vld [vmem:[%s243 + $0x218] sm:$0xf]
      %v343 = vld [vmem:[%s243 + $0x21c] sm:$0xff]
      %v344 = vld [vmem:[%s243 + $0x224] sm:$0xff]
      %v345 = vld [vmem:[%s243 + $0x22c] sm:$0xff]
      %v346 = vld [vmem:[%s243 + $0x234] sm:$0xff]
      %v347 = vld [vmem:[%s243 + $0x23c] sm:$0xf]
      %v348 = vld [vmem:[%s243 + $0x240] sm:$0xff]
      %v349 = vld [vmem:[%s243 + $0x248] sm:$0xff]
      %v350 = vld [vmem:[%s243 + $0x250] sm:$0xff]
      %v351 = vld [vmem:[%s243 + $0x258] sm:$0xff]
      %v352 = vld [vmem:[%s243 + $0x260] sm:$0xf]
      %v353 = vld [vmem:[%s243 + $0x264] sm:$0xff]
      %v354 = vld [vmem:[%s243 + $0x26c] sm:$0xff]
      %v355 = vld [vmem:[%s243 + $0x274] sm:$0xff]
      %v356 = vld [vmem:[%s243 + $0x27c] sm:$0xff]
      %v357 = vld [vmem:[%s243 + $0x284] sm:$0xf]
      %v358 = vld [vmem:[%s243 + $0x288] sm:$0xff]
      %v359 = vld [vmem:[%s243 + $0x290] sm:$0xff]
      %v360 = vld [vmem:[%s243 + $0x298] sm:$0xff]
      %v361 = vld [vmem:[%s243 + $0x2a0] sm:$0xff]
      %v362 = vld [vmem:[%s243 + $0x2a8] sm:$0xf]
      %v363 = vld [vmem:[%s243 + $0x2ac] sm:$0xff]
      %v364 = vld [vmem:[%s243 + $0x2b4] sm:$0xff]
      %v365 = vld [vmem:[%s243 + $0x2bc] sm:$0xff]
      %v366 = vld [vmem:[%s243 + $0x2c4] sm:$0xff]
      %v367 = vld [vmem:[%s243 + $0x2cc] sm:$0xf]
      %v368 = vld [vmem:[%s243 + $0x2d0] sm:$0xff]
      %v369 = vld [vmem:[%s243 + $0x2d8] sm:$0xff]
      %v370 = vld [vmem:[%s243 + $0x2e0] sm:$0xff]
      %v371 = vld [vmem:[%s243 + $0x2e8] sm:$0xff]
      %v372 = vld [vmem:[%s243 + $0x2f0] sm:$0xf]
      %v373 = vld [vmem:[%s243 + $0x2f4] sm:$0xff]
      %v374 = vld [vmem:[%s243 + $0x2fc] sm:$0xff]
      %v375 = vld [vmem:[%s243 + $0x304] sm:$0xff]
      %v376 = vld [vmem:[%s243 + $0x30c] sm:$0xff]
      %v377 = vld [vmem:[%s243 + $0x314] sm:$0xf]
      %v378 = vld [vmem:[%s243 + $0x318] sm:$0xff]
      %v379 = vld [vmem:[%s243 + $0x320] sm:$0xff]
      %v380 = vld [vmem:[%s243 + $0x328] sm:$0xff]
      %v381 = vld [vmem:[%s243 + $0x330] sm:$0xff]
      %v382 = vld [vmem:[%s243 + $0x338] sm:$0xf]
      %v383 = vld [vmem:[%s243 + $0x33c] sm:$0xff]
      %v384 = vld [vmem:[%s243 + $0x344] sm:$0xff]
      %v385 = vld [vmem:[%s243 + $0x34c] sm:$0xff]
      %v386 = vld [vmem:[%s243 + $0x354] sm:$0xff]
      %v387 = vld [vmem:[%s243 + $0x35c] sm:$0xf]
      %v388 = vld [vmem:[%s243 + $0x360] sm:$0xff]
      %v389 = vld [vmem:[%s243 + $0x368] sm:$0xff]
      %v390 = vld [vmem:[%s243 + $0x370] sm:$0xff]
      %v391 = vld [vmem:[%s243 + $0x378] sm:$0xff]
      %v392 = vld [vmem:[%s243 + $0x380] sm:$0xf]
      %v393 = vld [vmem:[%s243 + $0x384] sm:$0xff]
      %v394 = vld [vmem:[%s243 + $0x38c] sm:$0xff]
      %v395 = vld [vmem:[%s243 + $0x394] sm:$0xff]
      %v396 = vld [vmem:[%s243 + $0x39c] sm:$0xff]
      %v397 = vld [vmem:[%s243 + $0x3a4] sm:$0xf]
      %v398 = vld [vmem:[%s243 + $0x3a8] sm:$0xff]
      %v399 = vld [vmem:[%s243 + $0x3b0] sm:$0xff]
      %v400 = vld [vmem:[%s243 + $0x3b8] sm:$0xff]
      %v401 = vld [vmem:[%s243 + $0x3c0] sm:$0xff]
      %v402 = vld [vmem:[%s243 + $0x3c8] sm:$0xf]
      %v403 = vld [vmem:[%s243 + $0x3cc] sm:$0xff]
      %v404 = vld [vmem:[%s243 + $0x3d4] sm:$0xff]
      %v405 = vld [vmem:[%s243 + $0x3dc] sm:$0xff]
      %v406 = vld [vmem:[%s243 + $0x3e4] sm:$0xff]
      %v407 = vld [vmem:[%s243 + $0x3ec] sm:$0xf]
      %v408 = vld [vmem:[%s243 + $0x3f0] sm:$0xff]
      %v409 = vld [vmem:[%s243 + $0x3f8] sm:$0xff]
      %v410 = vld [vmem:[%s243 + $0x400] sm:$0xff]
      %v411 = vld [vmem:[%s243 + $0x408] sm:$0xff]
      %v412 = vld [vmem:[%s243 + $0x410] sm:$0xf]
      %v413 = vld [vmem:[%s243 + $0x414] sm:$0xff]
      %v414 = vld [vmem:[%s243 + $0x41c] sm:$0xff]
      %v415 = vld [vmem:[%s243 + $0x424] sm:$0xff]
      %v416 = vld [vmem:[%s243 + $0x42c] sm:$0xff]
      %v417 = vld [vmem:[%s243 + $0x434] sm:$0xf]
      %v418 = vld [vmem:[%s243 + $0x438] sm:$0xff]
      %v419 = vld [vmem:[%s243 + $0x440] sm:$0xff]
      %v420 = vld [vmem:[%s243 + $0x448] sm:$0xff]
      %v421 = vld [vmem:[%s243 + $0x450] sm:$0xff]
      %v422 = vld [vmem:[%s243 + $0x458] sm:$0xf]
      %v423 = vld [vmem:[%s243 + $0x45c] sm:$0xff]
      %v424 = vld [vmem:[%s243 + $0x464] sm:$0xff]
      %v425 = vld [vmem:[%s243 + $0x46c] sm:$0xff]
      %v426 = vld [vmem:[%s243 + $0x474] sm:$0xff]
      %v427 = vld [vmem:[%s243 + $0x47c] sm:$0xf]
      %v428 = vld [vmem:[%s253] sm:$0xf]
      %v429 = vld [vmem:[%s253 + $0x4] sm:$0xf]
      %v430 = vld [vmem:[%s253 + $0x8] sm:$0xf]
      %v431 = vld [vmem:[%s253 + $0xc] sm:$0xf]
      %v432 = vld [vmem:[%s253 + $0x10] sm:$0xf]
      %v433 = vld [vmem:[%s253 + $0x14] sm:$0xf]
      %v434 = vld [vmem:[%s253 + $0x18] sm:$0xf]
      %v435 = vld [vmem:[%s253 + $0x1c] sm:$0xf]
      %v436 = vld [vmem:[%s253 + $0x20] sm:$0xf]
      %v437 = vld [vmem:[%s253 + $0x24] sm:$0xf]
      %v438 = vld [vmem:[%s253 + $0x28] sm:$0xf]
      %v439 = vld [vmem:[%s253 + $0x2c] sm:$0xf]
      %v440 = vld [vmem:[%s253 + $0x30] sm:$0xf]
      %v441 = vld [vmem:[%s253 + $0x34] sm:$0xf]
      %v442 = vld [vmem:[%s253 + $0x38] sm:$0xf]
      %v443 = vld [vmem:[%s253 + $0x3c] sm:$0xf]
      %v444 = vld [vmem:[%s253 + $0x40] sm:$0xf]
      %v445 = vld [vmem:[%s253 + $0x44] sm:$0xf]
      %v446 = vld [vmem:[%s253 + $0x48] sm:$0xf]
      %v447 = vld [vmem:[%s253 + $0x4c] sm:$0xf]
      %v448 = vld [vmem:[%s253 + $0x50] sm:$0xf]
      %v449 = vld [vmem:[%s253 + $0x54] sm:$0xf]
      %v450 = vld [vmem:[%s253 + $0x58] sm:$0xf]
      %v451 = vld [vmem:[%s253 + $0x5c] sm:$0xf]
      %v452 = vld [vmem:[%s253 + $0x60] sm:$0xf]
      %v453 = vld [vmem:[%s253 + $0x64] sm:$0xf]
      %v454 = vld [vmem:[%s253 + $0x68] sm:$0xf]
      %v455 = vld [vmem:[%s253 + $0x6c] sm:$0xf]
      %v456 = vld [vmem:[%s253 + $0x70] sm:$0xf]
      %v457 = vld [vmem:[%s253 + $0x74] sm:$0xf]
      %v458 = vld [vmem:[%s253 + $0x78] sm:$0xf]
      %v459 = vld [vmem:[%s253 + $0x7c] sm:$0xf]
      %v460 = vld [vmem:[%s253 + $0x80] sm:$0xf]
      %v461 = vld [vmem:[%s253 + $0x84] sm:$0xf]
      %v462 = vld [vmem:[%s253 + $0x88] sm:$0xf]
      %v463 = vld [vmem:[%s253 + $0x8c] sm:$0xf]
      %v464 = vld [vmem:[%s253 + $0x90] sm:$0xf]
      %v465 = vld [vmem:[%s253 + $0x94] sm:$0xf]
      %v466 = vld [vmem:[%s253 + $0x98] sm:$0xf]
      %v467 = vld [vmem:[%s253 + $0x9c] sm:$0xf]
      %v468 = vld [vmem:[%s253 + $0xa0] sm:$0xf]
      %v469 = vld [vmem:[%s253 + $0xa4] sm:$0xf]
      %v470 = vld [vmem:[%s253 + $0xa8] sm:$0xf]
      %v471 = vld [vmem:[%s253 + $0xac] sm:$0xf]
      %v472 = vld [vmem:[%s253 + $0xb0] sm:$0xf]
      %v473 = vld [vmem:[%s253 + $0xb4] sm:$0xf]
      %v474 = vld [vmem:[%s253 + $0xb8] sm:$0xf]
      %v475 = vld [vmem:[%s253 + $0xbc] sm:$0xf]
      %v476 = vld [vmem:[%s253 + $0xc0] sm:$0xf]
      %v477 = vld [vmem:[%s253 + $0xc4] sm:$0xf]
      %v478 = vld [vmem:[%s253 + $0xc8] sm:$0xf]
      %v479 = vld [vmem:[%s253 + $0xcc] sm:$0xf]
      %v480 = vld [vmem:[%s253 + $0xd0] sm:$0xf]
      %v481 = vld [vmem:[%s253 + $0xd4] sm:$0xf]
      %v482 = vld [vmem:[%s253 + $0xd8] sm:$0xf]
      %v483 = vld [vmem:[%s253 + $0xdc] sm:$0xf]
      %v484 = vld [vmem:[%s253 + $0xe0] sm:$0xf]
      %v485 = vld [vmem:[%s253 + $0xe4] sm:$0xf]
      %v486 = vld [vmem:[%s253 + $0xe8] sm:$0xf]
      %v487 = vld [vmem:[%s253 + $0xec] sm:$0xf]
      %v488 = vld [vmem:[%s253 + $0xf0] sm:$0xf]
      %v489 = vld [vmem:[%s253 + $0xf4] sm:$0xf]
      %v490 = vld [vmem:[%s253 + $0xf8] sm:$0xf]
      %v491 = vld [vmem:[%s253 + $0xfc] sm:$0xf]
      %v492 = vld [vmem:[%s253 + $0x100] sm:$0xf]
      %v493 = vld [vmem:[%s253 + $0x104] sm:$0xf]
      %v494 = vld [vmem:[%s253 + $0x108] sm:$0xf]
      %v495 = vld [vmem:[%s253 + $0x10c] sm:$0xf]
      %v496 = vld [vmem:[%s253 + $0x110] sm:$0xf]
      %v497 = vld [vmem:[%s253 + $0x114] sm:$0xf]
      %v498 = vld [vmem:[%s253 + $0x118] sm:$0xf]
      %v499 = vld [vmem:[%s253 + $0x11c] sm:$0xf]
      %v500 = vld [vmem:[%s253 + $0x120] sm:$0xf]
      %v501 = vld [vmem:[%s253 + $0x124] sm:$0xf]
      %v502 = vld [vmem:[%s253 + $0x128] sm:$0xf]
      %v503 = vld [vmem:[%s253 + $0x12c] sm:$0xf]
      %v504 = vld [vmem:[%s253 + $0x130] sm:$0xf]
      %v505 = vld [vmem:[%s253 + $0x134] sm:$0xf]
      %v506 = vld [vmem:[%s253 + $0x138] sm:$0xf]
      %v507 = vld [vmem:[%s253 + $0x13c] sm:$0xf]
      %v508 = vld [vmem:[%s253 + $0x140] sm:$0xf]
      %v509 = vld [vmem:[%s253 + $0x144] sm:$0xf]
      %v510 = vld [vmem:[%s253 + $0x148] sm:$0xf]
      %v511 = vld [vmem:[%s253 + $0x14c] sm:$0xf]
      %v512 = vld [vmem:[%s253 + $0x150] sm:$0xf]
      %v513 = vld [vmem:[%s253 + $0x154] sm:$0xf]
      %v514 = vld [vmem:[%s253 + $0x158] sm:$0xf]
      %v515 = vld [vmem:[%s253 + $0x15c] sm:$0xf]
      %v516 = vld [vmem:[%s253 + $0x160] sm:$0xf]
      %v517 = vld [vmem:[%s253 + $0x164] sm:$0xf]
      %v518 = vld [vmem:[%s253 + $0x168] sm:$0xf]
      %v519 = vld [vmem:[%s253 + $0x16c] sm:$0xf]
      %v520 = vld [vmem:[%s253 + $0x170] sm:$0xf]
      %v521 = vld [vmem:[%s253 + $0x174] sm:$0xf]
      %v522 = vld [vmem:[%s253 + $0x178] sm:$0xf]
      %v523 = vld [vmem:[%s253 + $0x17c] sm:$0xf]
      %v524 = vld [vmem:[%s253 + $0x180] sm:$0xf]
      %v525 = vld [vmem:[%s253 + $0x184] sm:$0xf]
      %v526 = vld [vmem:[%s253 + $0x188] sm:$0xf]
      %v527 = vld [vmem:[%s253 + $0x18c] sm:$0xf]
      %v528 = vld [vmem:[%s253 + $0x190] sm:$0xf]
      %v529 = vld [vmem:[%s253 + $0x194] sm:$0xf]
      %v530 = vld [vmem:[%s253 + $0x198] sm:$0xf]
      %v531 = vld [vmem:[%s253 + $0x19c] sm:$0xf]
      %v532 = vld [vmem:[%s253 + $0x1a0] sm:$0xf]
      %v533 = vld [vmem:[%s253 + $0x1a4] sm:$0xf]
      %v534 = vld [vmem:[%s253 + $0x1a8] sm:$0xf]
      %v535 = vld [vmem:[%s253 + $0x1ac] sm:$0xf]
      %v536 = vld [vmem:[%s253 + $0x1b0] sm:$0xf]
      %v537 = vld [vmem:[%s253 + $0x1b4] sm:$0xf]
      %v538 = vld [vmem:[%s253 + $0x1b8] sm:$0xf]
      %v539 = vld [vmem:[%s253 + $0x1bc] sm:$0xf]
      %v540 = vld [vmem:[%s253 + $0x1c0] sm:$0xf]
      %v541 = vld [vmem:[%s253 + $0x1c4] sm:$0xf]
      %v542 = vld [vmem:[%s253 + $0x1c8] sm:$0xf]
      %v543 = vld [vmem:[%s253 + $0x1cc] sm:$0xf]
      %v544 = vld [vmem:[%s253 + $0x1d0] sm:$0xf]
      %v545 = vld [vmem:[%s253 + $0x1d4] sm:$0xf]
      %v546 = vld [vmem:[%s253 + $0x1d8] sm:$0xf]
      %v547 = vld [vmem:[%s253 + $0x1dc] sm:$0xf]
      %v548 = vld [vmem:[%s253 + $0x1e0] sm:$0xf]
      %v549 = vld [vmem:[%s253 + $0x1e4] sm:$0xf]
      %v550 = vld [vmem:[%s253 + $0x1e8] sm:$0xf]
      %v551 = vld [vmem:[%s253 + $0x1ec] sm:$0xf]
      %v552 = vld [vmem:[%s253 + $0x1f0] sm:$0xf]
      %v553 = vld [vmem:[%s253 + $0x1f4] sm:$0xf]
      %v554 = vld [vmem:[%s253 + $0x1f8] sm:$0xf]
      %v555 = vld [vmem:[%s253 + $0x1fc] sm:$0xf]
      %v556 = vld [vmem:[%s253 + $0x200] sm:$0xf]
      %v557 = vld [vmem:[%s253 + $0x204] sm:$0xf]
      %v558 = vld [vmem:[%s253 + $0x208] sm:$0xf]
      %v559 = vld [vmem:[%s253 + $0x20c] sm:$0xf]
      %v560 = vld [vmem:[%s253 + $0x210] sm:$0xf]
      %v561 = vld [vmem:[%s253 + $0x214] sm:$0xf]
      %v562 = vld [vmem:[%s253 + $0x218] sm:$0xf]
      %v563 = vld [vmem:[%s253 + $0x21c] sm:$0xf]
      %v564 = vld [vmem:[%s253 + $0x220] sm:$0xf]
      %v565 = vld [vmem:[%s253 + $0x224] sm:$0xf]
      %v566 = vld [vmem:[%s253 + $0x228] sm:$0xf]
      %v567 = vld [vmem:[%s253 + $0x22c] sm:$0xf]
      %v568 = vld [vmem:[%s253 + $0x230] sm:$0xf]
      %v569 = vld [vmem:[%s253 + $0x234] sm:$0xf]
      %v570 = vld [vmem:[%s253 + $0x238] sm:$0xf]
      %v571 = vld [vmem:[%s253 + $0x23c] sm:$0xf]
      %v572 = vld [vmem:[%s257] sm:$0x1]
      %v574 = vlaneseq
      %v575 = vshrl.u32 %v574, 7
      %v576 = vsub.s32 0, %v575
      %v577 = vrot.slane %v572, %v576
      %v739 = vunpack.c.l.b16 %v268
      %v740 = vunpack.c.h.b16 %v268
      %v741 = vunpack.c.l.b16 %v269
      %v742 = vunpack.c.h.b16 %v269
      %v743 = vunpack.c.l.b16 %v270
      %v744 = vunpack.c.h.b16 %v270
      %v745 = vunpack.c.l.b16 %v271
      %v746 = vunpack.c.h.b16 %v271
      %v747 = vunpack.c.l.b16 %v272
      %v748 = vunpack.c.l.b16 %v273
      %v749 = vunpack.c.h.b16 %v273
      %v750 = vunpack.c.l.b16 %v274
      %v751 = vunpack.c.h.b16 %v274
      %v752 = vunpack.c.l.b16 %v275
      %v753 = vunpack.c.h.b16 %v275
      %v754 = vunpack.c.l.b16 %v276
      %v755 = vunpack.c.h.b16 %v276
      %v756 = vunpack.c.l.b16 %v277
      %v757 = vunpack.c.l.b16 %v278
      %v758 = vunpack.c.h.b16 %v278
      %v759 = vunpack.c.l.b16 %v279
      %v760 = vunpack.c.h.b16 %v279
      %v761 = vunpack.c.l.b16 %v280
      %v762 = vunpack.c.h.b16 %v280
      %v763 = vunpack.c.l.b16 %v281
      %v764 = vunpack.c.h.b16 %v281
      %v765 = vunpack.c.l.b16 %v282
      %v766 = vunpack.c.l.b16 %v283
      %v767 = vunpack.c.h.b16 %v283
      %v768 = vunpack.c.l.b16 %v284
      %v769 = vunpack.c.h.b16 %v284
      %v770 = vunpack.c.l.b16 %v285
      %v771 = vunpack.c.h.b16 %v285
      %v772 = vunpack.c.l.b16 %v286
      %v773 = vunpack.c.h.b16 %v286
      %v774 = vunpack.c.l.b16 %v287
      %v775 = vunpack.c.l.b16 %v288
      %v776 = vunpack.c.h.b16 %v288
      %v777 = vunpack.c.l.b16 %v289
      %v778 = vunpack.c.h.b16 %v289
      %v779 = vunpack.c.l.b16 %v290
      %v780 = vunpack.c.h.b16 %v290
      %v781 = vunpack.c.l.b16 %v291
      %v782 = vunpack.c.h.b16 %v291
      %v783 = vunpack.c.l.b16 %v292
      %v784 = vunpack.c.l.b16 %v293
      %v785 = vunpack.c.h.b16 %v293
      %v786 = vunpack.c.l.b16 %v294
      %v787 = vunpack.c.h.b16 %v294
      %v788 = vunpack.c.l.b16 %v295
      %v789 = vunpack.c.h.b16 %v295
      %v790 = vunpack.c.l.b16 %v296
      %v791 = vunpack.c.h.b16 %v296
      %v792 = vunpack.c.l.b16 %v297
      %v793 = vunpack.c.l.b16 %v298
      %v794 = vunpack.c.h.b16 %v298
      %v795 = vunpack.c.l.b16 %v299
      %v796 = vunpack.c.h.b16 %v299
      %v797 = vunpack.c.l.b16 %v300
      %v798 = vunpack.c.h.b16 %v300
      %v799 = vunpack.c.l.b16 %v301
      %v800 = vunpack.c.h.b16 %v301
      %v801 = vunpack.c.l.b16 %v302
      %v802 = vunpack.c.l.b16 %v303
      %v803 = vunpack.c.h.b16 %v303
      %v804 = vunpack.c.l.b16 %v304
      %v805 = vunpack.c.h.b16 %v304
      %v806 = vunpack.c.l.b16 %v305
      %v807 = vunpack.c.h.b16 %v305
      %v808 = vunpack.c.l.b16 %v306
      %v809 = vunpack.c.h.b16 %v306
      %v810 = vunpack.c.l.b16 %v307
      %v811 = vunpack.c.l.b16 %v308
      %v812 = vunpack.c.h.b16 %v308
      %v813 = vunpack.c.l.b16 %v309
      %v814 = vunpack.c.h.b16 %v309
      %v815 = vunpack.c.l.b16 %v310
      %v816 = vunpack.c.h.b16 %v310
      %v817 = vunpack.c.l.b16 %v311
      %v818 = vunpack.c.h.b16 %v311
      %v819 = vunpack.c.l.b16 %v312
      %v820 = vunpack.c.l.b16 %v313
      %v821 = vunpack.c.h.b16 %v313
      %v822 = vunpack.c.l.b16 %v314
      %v823 = vunpack.c.h.b16 %v314
      %v824 = vunpack.c.l.b16 %v315
      %v825 = vunpack.c.h.b16 %v315
      %v826 = vunpack.c.l.b16 %v316
      %v827 = vunpack.c.h.b16 %v316
      %v828 = vunpack.c.l.b16 %v317
      %v829 = vunpack.c.l.b16 %v318
      %v830 = vunpack.c.h.b16 %v318
      %v831 = vunpack.c.l.b16 %v319
      %v832 = vunpack.c.h.b16 %v319
      %v833 = vunpack.c.l.b16 %v320
      %v834 = vunpack.c.h.b16 %v320
      %v835 = vunpack.c.l.b16 %v321
      %v836 = vunpack.c.h.b16 %v321
      %v837 = vunpack.c.l.b16 %v322
      %v838 = vunpack.c.l.b16 %v323
      %v839 = vunpack.c.h.b16 %v323
      %v840 = vunpack.c.l.b16 %v324
      %v841 = vunpack.c.h.b16 %v324
      %v842 = vunpack.c.l.b16 %v325
      %v843 = vunpack.c.h.b16 %v325
      %v844 = vunpack.c.l.b16 %v326
      %v845 = vunpack.c.h.b16 %v326
      %v846 = vunpack.c.l.b16 %v327
      %v847 = vunpack.c.l.b16 %v328
      %v848 = vunpack.c.h.b16 %v328
      %v849 = vunpack.c.l.b16 %v329
      %v850 = vunpack.c.h.b16 %v329
      %v851 = vunpack.c.l.b16 %v330
      %v852 = vunpack.c.h.b16 %v330
      %v853 = vunpack.c.l.b16 %v331
      %v854 = vunpack.c.h.b16 %v331
      %v855 = vunpack.c.l.b16 %v332
      %v856 = vunpack.c.l.b16 %v333
      %v857 = vunpack.c.h.b16 %v333
      %v858 = vunpack.c.l.b16 %v334
      %v859 = vunpack.c.h.b16 %v334
      %v860 = vunpack.c.l.b16 %v335
      %v861 = vunpack.c.h.b16 %v335
      %v862 = vunpack.c.l.b16 %v336
      %v863 = vunpack.c.h.b16 %v336
      %v864 = vunpack.c.l.b16 %v337
      %v865 = vunpack.c.l.b16 %v338
      %v866 = vunpack.c.h.b16 %v338
      %v867 = vunpack.c.l.b16 %v339
      %v868 = vunpack.c.h.b16 %v339
      %v869 = vunpack.c.l.b16 %v340
      %v870 = vunpack.c.h.b16 %v340
      %v871 = vunpack.c.l.b16 %v341
      %v872 = vunpack.c.h.b16 %v341
      %v873 = vunpack.c.l.b16 %v342
      %v874 = vunpack.c.l.b16 %v343
      %v875 = vunpack.c.h.b16 %v343
      %v876 = vunpack.c.l.b16 %v344
      %v877 = vunpack.c.h.b16 %v344
      %v878 = vunpack.c.l.b16 %v345
      %v879 = vunpack.c.h.b16 %v345
      %v880 = vunpack.c.l.b16 %v346
      %v881 = vunpack.c.h.b16 %v346
      %v882 = vunpack.c.l.b16 %v347
      %v883 = vunpack.c.l.b16 %v348
      %v884 = vunpack.c.h.b16 %v348
      %v885 = vunpack.c.l.b16 %v349
      %v886 = vunpack.c.h.b16 %v349
      %v887 = vunpack.c.l.b16 %v350
      %v888 = vunpack.c.h.b16 %v350
      %v889 = vunpack.c.l.b16 %v351
      %v890 = vunpack.c.h.b16 %v351
      %v891 = vunpack.c.l.b16 %v352
      %v892 = vunpack.c.l.b16 %v353
      %v893 = vunpack.c.h.b16 %v353
      %v894 = vunpack.c.l.b16 %v354
      %v895 = vunpack.c.h.b16 %v354
      %v896 = vunpack.c.l.b16 %v355
      %v897 = vunpack.c.h.b16 %v355
      %v898 = vunpack.c.l.b16 %v356
      %v899 = vunpack.c.h.b16 %v356
      %v900 = vunpack.c.l.b16 %v357
      %v901 = vunpack.c.l.b16 %v358
      %v902 = vunpack.c.h.b16 %v358
      %v903 = vunpack.c.l.b16 %v359
      %v904 = vunpack.c.h.b16 %v359
      %v905 = vunpack.c.l.b16 %v360
      %v906 = vunpack.c.h.b16 %v360
      %v907 = vunpack.c.l.b16 %v361
      %v908 = vunpack.c.h.b16 %v361
      %v909 = vunpack.c.l.b16 %v362
      %v910 = vunpack.c.l.b16 %v363
      %v911 = vunpack.c.h.b16 %v363
      %v912 = vunpack.c.l.b16 %v364
      %v913 = vunpack.c.h.b16 %v364
      %v914 = vunpack.c.l.b16 %v365
      %v915 = vunpack.c.h.b16 %v365
      %v916 = vunpack.c.l.b16 %v366
      %v917 = vunpack.c.h.b16 %v366
      %v918 = vunpack.c.l.b16 %v367
      %v919 = vunpack.c.l.b16 %v368
      %v920 = vunpack.c.h.b16 %v368
      %v921 = vunpack.c.l.b16 %v369
      %v922 = vunpack.c.h.b16 %v369
      %v923 = vunpack.c.l.b16 %v370
      %v924 = vunpack.c.h.b16 %v370
      %v925 = vunpack.c.l.b16 %v371
      %v926 = vunpack.c.h.b16 %v371
      %v927 = vunpack.c.l.b16 %v372
      %v928 = vunpack.c.l.b16 %v373
      %v929 = vunpack.c.h.b16 %v373
      %v930 = vunpack.c.l.b16 %v374
      %v931 = vunpack.c.h.b16 %v374
      %v932 = vunpack.c.l.b16 %v375
      %v933 = vunpack.c.h.b16 %v375
      %v934 = vunpack.c.l.b16 %v376
      %v935 = vunpack.c.h.b16 %v376
      %v936 = vunpack.c.l.b16 %v377
      %v937 = vunpack.c.l.b16 %v378
      %v938 = vunpack.c.h.b16 %v378
      %v939 = vunpack.c.l.b16 %v379
      %v940 = vunpack.c.h.b16 %v379
      %v941 = vunpack.c.l.b16 %v380
      %v942 = vunpack.c.h.b16 %v380
      %v943 = vunpack.c.l.b16 %v381
      %v944 = vunpack.c.h.b16 %v381
      %v945 = vunpack.c.l.b16 %v382
      %v946 = vunpack.c.l.b16 %v383
      %v947 = vunpack.c.h.b16 %v383
      %v948 = vunpack.c.l.b16 %v384
      %v949 = vunpack.c.h.b16 %v384
      %v950 = vunpack.c.l.b16 %v385
      %v951 = vunpack.c.h.b16 %v385
      %v952 = vunpack.c.l.b16 %v386
      %v953 = vunpack.c.h.b16 %v386
      %v954 = vunpack.c.l.b16 %v387
      %v955 = vunpack.c.l.b16 %v388
      %v956 = vunpack.c.h.b16 %v388
      %v957 = vunpack.c.l.b16 %v389
      %v958 = vunpack.c.h.b16 %v389
      %v959 = vunpack.c.l.b16 %v390
      %v960 = vunpack.c.h.b16 %v390
      %v961 = vunpack.c.l.b16 %v391
      %v962 = vunpack.c.h.b16 %v391
      %v963 = vunpack.c.l.b16 %v392
      %v964 = vunpack.c.l.b16 %v393
      %v965 = vunpack.c.h.b16 %v393
      %v966 = vunpack.c.l.b16 %v394
      %v967 = vunpack.c.h.b16 %v394
      %v968 = vunpack.c.l.b16 %v395
      %v969 = vunpack.c.h.b16 %v395
      %v970 = vunpack.c.l.b16 %v396
      %v971 = vunpack.c.h.b16 %v396
      %v972 = vunpack.c.l.b16 %v397
      %v973 = vunpack.c.l.b16 %v398
      %v974 = vunpack.c.h.b16 %v398
      %v975 = vunpack.c.l.b16 %v399
      %v976 = vunpack.c.h.b16 %v399
      %v977 = vunpack.c.l.b16 %v400
      %v978 = vunpack.c.h.b16 %v400
      %v979 = vunpack.c.l.b16 %v401
      %v980 = vunpack.c.h.b16 %v401
      %v981 = vunpack.c.l.b16 %v402
      %v982 = vunpack.c.l.b16 %v403
      %v983 = vunpack.c.h.b16 %v403
      %v984 = vunpack.c.l.b16 %v404
      %v985 = vunpack.c.h.b16 %v404
      %v986 = vunpack.c.l.b16 %v405
      %v987 = vunpack.c.h.b16 %v405
      %v988 = vunpack.c.l.b16 %v406
      %v989 = vunpack.c.h.b16 %v406
      %v990 = vunpack.c.l.b16 %v407
      %v991 = vunpack.c.l.b16 %v408
      %v992 = vunpack.c.h.b16 %v408
      %v993 = vunpack.c.l.b16 %v409
      %v994 = vunpack.c.h.b16 %v409
      %v995 = vunpack.c.l.b16 %v410
      %v996 = vunpack.c.h.b16 %v410
      %v997 = vunpack.c.l.b16 %v411
      %v998 = vunpack.c.h.b16 %v411
      %v999 = vunpack.c.l.b16 %v412
      %v1000 = vunpack.c.l.b16 %v413
      %v1001 = vunpack.c.h.b16 %v413
      %v1002 = vunpack.c.l.b16 %v414
      %v1003 = vunpack.c.h.b16 %v414
      %v1004 = vunpack.c.l.b16 %v415
      %v1005 = vunpack.c.h.b16 %v415
      %v1006 = vunpack.c.l.b16 %v416
      %v1007 = vunpack.c.h.b16 %v416
      %v1008 = vunpack.c.l.b16 %v417
      %v1009 = vunpack.c.l.b16 %v418
      %v1010 = vunpack.c.h.b16 %v418
      %v1011 = vunpack.c.l.b16 %v419
      %v1012 = vunpack.c.h.b16 %v419
      %v1013 = vunpack.c.l.b16 %v420
      %v1014 = vunpack.c.h.b16 %v420
      %v1015 = vunpack.c.l.b16 %v421
      %v1016 = vunpack.c.h.b16 %v421
      %v1017 = vunpack.c.l.b16 %v422
      %v1018 = vunpack.c.l.b16 %v423
      %v1019 = vunpack.c.h.b16 %v423
      %v1020 = vunpack.c.l.b16 %v424
      %v1021 = vunpack.c.h.b16 %v424
      %v1022 = vunpack.c.l.b16 %v425
      %v1023 = vunpack.c.h.b16 %v425
      %v1024 = vunpack.c.l.b16 %v426
      %v1025 = vunpack.c.h.b16 %v426
      %v1026 = vunpack.c.l.b16 %v427
      %v1027 = vpack.c.b16 %v748, %v739
      %v1028 = vpack.c.b16 %v749, %v740
      %v1029 = vpack.c.b16 %v750, %v741
      %v1030 = vpack.c.b16 %v751, %v742
      %v1031 = vpack.c.b16 %v752, %v743
      %v1032 = vpack.c.b16 %v753, %v744
      %v1033 = vpack.c.b16 %v754, %v745
      %v1034 = vpack.c.b16 %v755, %v746
      %v1035 = vpack.c.b16 %v756, %v747
      %v1036 = vpack.c.b16 %v766, %v757
      %v1037 = vpack.c.b16 %v767, %v758
      %v1038 = vpack.c.b16 %v768, %v759
      %v1039 = vpack.c.b16 %v769, %v760
      %v1040 = vpack.c.b16 %v770, %v761
      %v1041 = vpack.c.b16 %v771, %v762
      %v1042 = vpack.c.b16 %v772, %v763
      %v1043 = vpack.c.b16 %v773, %v764
      %v1044 = vpack.c.b16 %v774, %v765
      %v1045 = vpack.c.b16 %v784, %v775
      %v1046 = vpack.c.b16 %v785, %v776
      %v1047 = vpack.c.b16 %v786, %v777
      %v1048 = vpack.c.b16 %v787, %v778
      %v1049 = vpack.c.b16 %v788, %v779
      %v1050 = vpack.c.b16 %v789, %v780
      %v1051 = vpack.c.b16 %v790, %v781
      %v1052 = vpack.c.b16 %v791, %v782
      %v1053 = vpack.c.b16 %v792, %v783
      %v1054 = vpack.c.b16 %v802, %v793
      %v1055 = vpack.c.b16 %v803, %v794
      %v1056 = vpack.c.b16 %v804, %v795
      %v1057 = vpack.c.b16 %v805, %v796
      %v1058 = vpack.c.b16 %v806, %v797
      %v1059 = vpack.c.b16 %v807, %v798
      %v1060 = vpack.c.b16 %v808, %v799
      %v1061 = vpack.c.b16 %v809, %v800
      %v1062 = vpack.c.b16 %v810, %v801
      %v1063 = vpack.c.b16 %v820, %v811
      %v1064 = vpack.c.b16 %v821, %v812
      %v1065 = vpack.c.b16 %v822, %v813
      %v1066 = vpack.c.b16 %v823, %v814
      %v1067 = vpack.c.b16 %v824, %v815
      %v1068 = vpack.c.b16 %v825, %v816
      %v1069 = vpack.c.b16 %v826, %v817
      %v1070 = vpack.c.b16 %v827, %v818
      %v1071 = vpack.c.b16 %v828, %v819
      %v1072 = vpack.c.b16 %v838, %v829
      %v1073 = vpack.c.b16 %v839, %v830
      %v1074 = vpack.c.b16 %v840, %v831
      %v1075 = vpack.c.b16 %v841, %v832
      %v1076 = vpack.c.b16 %v842, %v833
      %v1077 = vpack.c.b16 %v843, %v834
      %v1078 = vpack.c.b16 %v844, %v835
      %v1079 = vpack.c.b16 %v845, %v836
      %v1080 = vpack.c.b16 %v846, %v837
      %v1081 = vpack.c.b16 %v856, %v847
      %v1082 = vpack.c.b16 %v857, %v848
      %v1083 = vpack.c.b16 %v858, %v849
      %v1084 = vpack.c.b16 %v859, %v850
      %v1085 = vpack.c.b16 %v860, %v851
      %v1086 = vpack.c.b16 %v861, %v852
      %v1087 = vpack.c.b16 %v862, %v853
      %v1088 = vpack.c.b16 %v863, %v854
      %v1089 = vpack.c.b16 %v864, %v855
      %v1090 = vpack.c.b16 %v874, %v865
      %v1091 = vpack.c.b16 %v875, %v866
      %v1092 = vpack.c.b16 %v876, %v867
      %v1093 = vpack.c.b16 %v877, %v868
      %v1094 = vpack.c.b16 %v878, %v869
      %v1095 = vpack.c.b16 %v879, %v870
      %v1096 = vpack.c.b16 %v880, %v871
      %v1097 = vpack.c.b16 %v881, %v872
      %v1098 = vpack.c.b16 %v882, %v873
      %v1099 = vpack.c.b16 %v892, %v883
      %v1100 = vpack.c.b16 %v893, %v884
      %v1101 = vpack.c.b16 %v894, %v885
      %v1102 = vpack.c.b16 %v895, %v886
      %v1103 = vpack.c.b16 %v896, %v887
      %v1104 = vpack.c.b16 %v897, %v888
      %v1105 = vpack.c.b16 %v898, %v889
      %v1106 = vpack.c.b16 %v899, %v890
      %v1107 = vpack.c.b16 %v900, %v891
      %v1108 = vpack.c.b16 %v910, %v901
      %v1109 = vpack.c.b16 %v911, %v902
      %v1110 = vpack.c.b16 %v912, %v903
      %v1111 = vpack.c.b16 %v913, %v904
      %v1112 = vpack.c.b16 %v914, %v905
      %v1113 = vpack.c.b16 %v915, %v906
      %v1114 = vpack.c.b16 %v916, %v907
      %v1115 = vpack.c.b16 %v917, %v908
      %v1116 = vpack.c.b16 %v918, %v909
      %v1117 = vpack.c.b16 %v928, %v919
      %v1118 = vpack.c.b16 %v929, %v920
      %v1119 = vpack.c.b16 %v930, %v921
      %v1120 = vpack.c.b16 %v931, %v922
      %v1121 = vpack.c.b16 %v932, %v923
      %v1122 = vpack.c.b16 %v933, %v924
      %v1123 = vpack.c.b16 %v934, %v925
      %v1124 = vpack.c.b16 %v935, %v926
      %v1125 = vpack.c.b16 %v936, %v927
      %v1126 = vpack.c.b16 %v946, %v937
      %v1127 = vpack.c.b16 %v947, %v938
      %v1128 = vpack.c.b16 %v948, %v939
      %v1129 = vpack.c.b16 %v949, %v940
      %v1130 = vpack.c.b16 %v950, %v941
      %v1131 = vpack.c.b16 %v951, %v942
      %v1132 = vpack.c.b16 %v952, %v943
      %v1133 = vpack.c.b16 %v953, %v944
      %v1134 = vpack.c.b16 %v954, %v945
      %v1135 = vpack.c.b16 %v964, %v955
      %v1136 = vpack.c.b16 %v965, %v956
      %v1137 = vpack.c.b16 %v966, %v957
      %v1138 = vpack.c.b16 %v967, %v958
      %v1139 = vpack.c.b16 %v968, %v959
      %v1140 = vpack.c.b16 %v969, %v960
      %v1141 = vpack.c.b16 %v970, %v961
      %v1142 = vpack.c.b16 %v971, %v962
      %v1143 = vpack.c.b16 %v972, %v963
      %v1144 = vpack.c.b16 %v982, %v973
      %v1145 = vpack.c.b16 %v983, %v974
      %v1146 = vpack.c.b16 %v984, %v975
      %v1147 = vpack.c.b16 %v985, %v976
      %v1148 = vpack.c.b16 %v986, %v977
      %v1149 = vpack.c.b16 %v987, %v978
      %v1150 = vpack.c.b16 %v988, %v979
      %v1151 = vpack.c.b16 %v989, %v980
      %v1152 = vpack.c.b16 %v990, %v981
      %v1153 = vpack.c.b16 %v1000, %v991
      %v1154 = vpack.c.b16 %v1001, %v992
      %v1155 = vpack.c.b16 %v1002, %v993
      %v1156 = vpack.c.b16 %v1003, %v994
      %v1157 = vpack.c.b16 %v1004, %v995
      %v1158 = vpack.c.b16 %v1005, %v996
      %v1159 = vpack.c.b16 %v1006, %v997
      %v1160 = vpack.c.b16 %v1007, %v998
      %v1161 = vpack.c.b16 %v1008, %v999
      %v1162 = vpack.c.b16 %v1018, %v1009
      %v1163 = vpack.c.b16 %v1019, %v1010
      %v1164 = vpack.c.b16 %v1020, %v1011
      %v1165 = vpack.c.b16 %v1021, %v1012
      %v1166 = vpack.c.b16 %v1022, %v1013
      %v1167 = vpack.c.b16 %v1023, %v1014
      %v1168 = vpack.c.b16 %v1024, %v1015
      %v1169 = vpack.c.b16 %v1025, %v1016
      %v1170 = vpack.c.b16 %v1026, %v1017
      %v1459 = vunpack.c.l.b16 %v428
      %v1460 = vunpack.c.l.b16 %v429
      %v1461 = vunpack.c.l.b16 %v430
      %v1462 = vunpack.c.l.b16 %v431
      %v1463 = vunpack.c.l.b16 %v432
      %v1464 = vunpack.c.l.b16 %v433
      %v1465 = vunpack.c.l.b16 %v434
      %v1466 = vunpack.c.l.b16 %v435
      %v1467 = vunpack.c.l.b16 %v436
      %v1468 = vunpack.c.l.b16 %v437
      %v1469 = vunpack.c.l.b16 %v438
      %v1470 = vunpack.c.l.b16 %v439
      %v1471 = vunpack.c.l.b16 %v440
      %v1472 = vunpack.c.l.b16 %v441
      %v1473 = vunpack.c.l.b16 %v442
      %v1474 = vunpack.c.l.b16 %v443
      %v1475 = vunpack.c.l.b16 %v444
      %v1476 = vunpack.c.l.b16 %v445
      %v1477 = vunpack.c.l.b16 %v446
      %v1478 = vunpack.c.l.b16 %v447
      %v1479 = vunpack.c.l.b16 %v448
      %v1480 = vunpack.c.l.b16 %v449
      %v1481 = vunpack.c.l.b16 %v450
      %v1482 = vunpack.c.l.b16 %v451
      %v1483 = vunpack.c.l.b16 %v452
      %v1484 = vunpack.c.l.b16 %v453
      %v1485 = vunpack.c.l.b16 %v454
      %v1486 = vunpack.c.l.b16 %v455
      %v1487 = vunpack.c.l.b16 %v456
      %v1488 = vunpack.c.l.b16 %v457
      %v1489 = vunpack.c.l.b16 %v458
      %v1490 = vunpack.c.l.b16 %v459
      %v1491 = vunpack.c.l.b16 %v460
      %v1492 = vunpack.c.l.b16 %v461
      %v1493 = vunpack.c.l.b16 %v462
      %v1494 = vunpack.c.l.b16 %v463
      %v1495 = vunpack.c.l.b16 %v464
      %v1496 = vunpack.c.l.b16 %v465
      %v1497 = vunpack.c.l.b16 %v466
      %v1498 = vunpack.c.l.b16 %v467
      %v1499 = vunpack.c.l.b16 %v468
      %v1500 = vunpack.c.l.b16 %v469
      %v1501 = vunpack.c.l.b16 %v470
      %v1502 = vunpack.c.l.b16 %v471
      %v1503 = vunpack.c.l.b16 %v472
      %v1504 = vunpack.c.l.b16 %v473
      %v1505 = vunpack.c.l.b16 %v474
      %v1506 = vunpack.c.l.b16 %v475
      %v1507 = vunpack.c.l.b16 %v476
      %v1508 = vunpack.c.l.b16 %v477
      %v1509 = vunpack.c.l.b16 %v478
      %v1510 = vunpack.c.l.b16 %v479
      %v1511 = vunpack.c.l.b16 %v480
      %v1512 = vunpack.c.l.b16 %v481
      %v1513 = vunpack.c.l.b16 %v482
      %v1514 = vunpack.c.l.b16 %v483
      %v1515 = vunpack.c.l.b16 %v484
      %v1516 = vunpack.c.l.b16 %v485
      %v1517 = vunpack.c.l.b16 %v486
      %v1518 = vunpack.c.l.b16 %v487
      %v1519 = vunpack.c.l.b16 %v488
      %v1520 = vunpack.c.l.b16 %v489
      %v1521 = vunpack.c.l.b16 %v490
      %v1522 = vunpack.c.l.b16 %v491
      %v1523 = vunpack.c.l.b16 %v492
      %v1524 = vunpack.c.l.b16 %v493
      %v1525 = vunpack.c.l.b16 %v494
      %v1526 = vunpack.c.l.b16 %v495
      %v1527 = vunpack.c.l.b16 %v496
      %v1528 = vunpack.c.l.b16 %v497
      %v1529 = vunpack.c.l.b16 %v498
      %v1530 = vunpack.c.l.b16 %v499
      %v1531 = vunpack.c.l.b16 %v500
      %v1532 = vunpack.c.l.b16 %v501
      %v1533 = vunpack.c.l.b16 %v502
      %v1534 = vunpack.c.l.b16 %v503
      %v1535 = vunpack.c.l.b16 %v504
      %v1536 = vunpack.c.l.b16 %v505
      %v1537 = vunpack.c.l.b16 %v506
      %v1538 = vunpack.c.l.b16 %v507
      %v1539 = vunpack.c.l.b16 %v508
      %v1540 = vunpack.c.l.b16 %v509
      %v1541 = vunpack.c.l.b16 %v510
      %v1542 = vunpack.c.l.b16 %v511
      %v1543 = vunpack.c.l.b16 %v512
      %v1544 = vunpack.c.l.b16 %v513
      %v1545 = vunpack.c.l.b16 %v514
      %v1546 = vunpack.c.l.b16 %v515
      %v1547 = vunpack.c.l.b16 %v516
      %v1548 = vunpack.c.l.b16 %v517
      %v1549 = vunpack.c.l.b16 %v518
      %v1550 = vunpack.c.l.b16 %v519
      %v1551 = vunpack.c.l.b16 %v520
      %v1552 = vunpack.c.l.b16 %v521
      %v1553 = vunpack.c.l.b16 %v522
      %v1554 = vunpack.c.l.b16 %v523
      %v1555 = vunpack.c.l.b16 %v524
      %v1556 = vunpack.c.l.b16 %v525
      %v1557 = vunpack.c.l.b16 %v526
      %v1558 = vunpack.c.l.b16 %v527
      %v1559 = vunpack.c.l.b16 %v528
      %v1560 = vunpack.c.l.b16 %v529
      %v1561 = vunpack.c.l.b16 %v530
      %v1562 = vunpack.c.l.b16 %v531
      %v1563 = vunpack.c.l.b16 %v532
      %v1564 = vunpack.c.l.b16 %v533
      %v1565 = vunpack.c.l.b16 %v534
      %v1566 = vunpack.c.l.b16 %v535
      %v1567 = vunpack.c.l.b16 %v536
      %v1568 = vunpack.c.l.b16 %v537
      %v1569 = vunpack.c.l.b16 %v538
      %v1570 = vunpack.c.l.b16 %v539
      %v1571 = vunpack.c.l.b16 %v540
      %v1572 = vunpack.c.l.b16 %v541
      %v1573 = vunpack.c.l.b16 %v542
      %v1574 = vunpack.c.l.b16 %v543
      %v1575 = vunpack.c.l.b16 %v544
      %v1576 = vunpack.c.l.b16 %v545
      %v1577 = vunpack.c.l.b16 %v546
      %v1578 = vunpack.c.l.b16 %v547
      %v1579 = vunpack.c.l.b16 %v548
      %v1580 = vunpack.c.l.b16 %v549
      %v1581 = vunpack.c.l.b16 %v550
      %v1582 = vunpack.c.l.b16 %v551
      %v1583 = vunpack.c.l.b16 %v552
      %v1584 = vunpack.c.l.b16 %v553
      %v1585 = vunpack.c.l.b16 %v554
      %v1586 = vunpack.c.l.b16 %v555
      %v1587 = vunpack.c.l.b16 %v556
      %v1588 = vunpack.c.l.b16 %v557
      %v1589 = vunpack.c.l.b16 %v558
      %v1590 = vunpack.c.l.b16 %v559
      %v1591 = vunpack.c.l.b16 %v560
      %v1592 = vunpack.c.l.b16 %v561
      %v1593 = vunpack.c.l.b16 %v562
      %v1594 = vunpack.c.l.b16 %v563
      %v1595 = vunpack.c.l.b16 %v564
      %v1596 = vunpack.c.l.b16 %v565
      %v1597 = vunpack.c.l.b16 %v566
      %v1598 = vunpack.c.l.b16 %v567
      %v1599 = vunpack.c.l.b16 %v568
      %v1600 = vunpack.c.l.b16 %v569
      %v1601 = vunpack.c.l.b16 %v570
      %v1602 = vunpack.c.l.b16 %v571
      %v1603 = vpack.c.b16 %v1460, %v1459
      %v1604 = vpack.c.b16 %v1462, %v1461
      %v1605 = vpack.c.b16 %v1464, %v1463
      %v1606 = vpack.c.b16 %v1466, %v1465
      %v1607 = vpack.c.b16 %v1468, %v1467
      %v1608 = vpack.c.b16 %v1470, %v1469
      %v1609 = vpack.c.b16 %v1472, %v1471
      %v1610 = vpack.c.b16 %v1474, %v1473
      %v1611 = vpack.c.b16 %v1476, %v1475
      %v1612 = vpack.c.b16 %v1478, %v1477
      %v1613 = vpack.c.b16 %v1480, %v1479
      %v1614 = vpack.c.b16 %v1482, %v1481
      %v1615 = vpack.c.b16 %v1484, %v1483
      %v1616 = vpack.c.b16 %v1486, %v1485
      %v1617 = vpack.c.b16 %v1488, %v1487
      %v1618 = vpack.c.b16 %v1490, %v1489
      %v1619 = vpack.c.b16 %v1492, %v1491
      %v1620 = vpack.c.b16 %v1494, %v1493
      %v1621 = vpack.c.b16 %v1496, %v1495
      %v1622 = vpack.c.b16 %v1498, %v1497
      %v1623 = vpack.c.b16 %v1500, %v1499
      %v1624 = vpack.c.b16 %v1502, %v1501
      %v1625 = vpack.c.b16 %v1504, %v1503
      %v1626 = vpack.c.b16 %v1506, %v1505
      %v1627 = vpack.c.b16 %v1508, %v1507
      %v1628 = vpack.c.b16 %v1510, %v1509
      %v1629 = vpack.c.b16 %v1512, %v1511
      %v1630 = vpack.c.b16 %v1514, %v1513
      %v1631 = vpack.c.b16 %v1516, %v1515
      %v1632 = vpack.c.b16 %v1518, %v1517
      %v1633 = vpack.c.b16 %v1520, %v1519
      %v1634 = vpack.c.b16 %v1522, %v1521
      %v1635 = vpack.c.b16 %v1524, %v1523
      %v1636 = vpack.c.b16 %v1526, %v1525
      %v1637 = vpack.c.b16 %v1528, %v1527
      %v1638 = vpack.c.b16 %v1530, %v1529
      %v1639 = vpack.c.b16 %v1532, %v1531
      %v1640 = vpack.c.b16 %v1534, %v1533
      %v1641 = vpack.c.b16 %v1536, %v1535
      %v1642 = vpack.c.b16 %v1538, %v1537
      %v1643 = vpack.c.b16 %v1540, %v1539
      %v1644 = vpack.c.b16 %v1542, %v1541
      %v1645 = vpack.c.b16 %v1544, %v1543
      %v1646 = vpack.c.b16 %v1546, %v1545
      %v1647 = vpack.c.b16 %v1548, %v1547
      %v1648 = vpack.c.b16 %v1550, %v1549
      %v1649 = vpack.c.b16 %v1552, %v1551
      %v1650 = vpack.c.b16 %v1554, %v1553
      %v1651 = vpack.c.b16 %v1556, %v1555
      %v1652 = vpack.c.b16 %v1558, %v1557
      %v1653 = vpack.c.b16 %v1560, %v1559
      %v1654 = vpack.c.b16 %v1562, %v1561
      %v1655 = vpack.c.b16 %v1564, %v1563
      %v1656 = vpack.c.b16 %v1566, %v1565
      %v1657 = vpack.c.b16 %v1568, %v1567
      %v1658 = vpack.c.b16 %v1570, %v1569
      %v1659 = vpack.c.b16 %v1572, %v1571
      %v1660 = vpack.c.b16 %v1574, %v1573
      %v1661 = vpack.c.b16 %v1576, %v1575
      %v1662 = vpack.c.b16 %v1578, %v1577
      %v1663 = vpack.c.b16 %v1580, %v1579
      %v1664 = vpack.c.b16 %v1582, %v1581
      %v1665 = vpack.c.b16 %v1584, %v1583
      %v1666 = vpack.c.b16 %v1586, %v1585
      %v1667 = vpack.c.b16 %v1588, %v1587
      %v1668 = vpack.c.b16 %v1590, %v1589
      %v1669 = vpack.c.b16 %v1592, %v1591
      %v1670 = vpack.c.b16 %v1594, %v1593
      %v1671 = vpack.c.b16 %v1596, %v1595
      %v1672 = vpack.c.b16 %v1598, %v1597
      %v1673 = vpack.c.b16 %v1600, %v1599
      %v1674 = vpack.c.b16 %v1602, %v1601
      %1747 = vmatprep.subr.bf16.mxu0 0
      %1748 = vmatpush1.bf16.msra.mxu0 %v1610
      %1749 = vmatprep.subr.bf16.mxu0 0
      %1750 = vmatpush1.bf16.msra.mxu0 %v1609
      %1751 = vmatprep.subr.bf16.mxu0 0
      %1752 = vmatpush1.bf16.msra.mxu0 %v1608
      %1753 = vmatprep.subr.bf16.mxu0 0
      %1754 = vmatpush1.bf16.msra.mxu0 %v1607
      %1755 = vmatprep.subr.bf16.mxu0 0
      %1756 = vmatpush1.bf16.msra.mxu0 %v1606
      %1757 = vmatprep.subr.bf16.mxu0 0
      %1758 = vmatpush1.bf16.msra.mxu0 %v1605
      %1759 = vmatprep.subr.bf16.mxu0 0
      %1760 = vmatpush1.bf16.msra.mxu0 %v1604
      %1761 = vmatprep.subr.bf16.mxu0 0
      %1762 = vmatpush1.bf16.msra.mxu0 %v1603
      %1763 = vmatprep.subr.bf16.mxu0 0
      %1764 = vmatpush2.bf16.msra.mxu0 %v1618
      %1765 = vmatprep.subr.bf16.mxu0 0
      %1766 = vmatpush2.bf16.msra.mxu0 %v1617
      %1767 = vmatprep.subr.bf16.mxu0 0
      %1768 = vmatpush2.bf16.msra.mxu0 %v1616
      %1769 = vmatprep.subr.bf16.mxu0 0
      %1770 = vmatpush2.bf16.msra.mxu0 %v1615
      %1771 = vmatprep.subr.bf16.mxu0 0
      %1772 = vmatpush2.bf16.msra.mxu0 %v1614
      %1773 = vmatprep.subr.bf16.mxu0 0
      %1774 = vmatpush2.bf16.msra.mxu0 %v1613
      %1775 = vmatprep.subr.bf16.mxu0 0
      %1776 = vmatpush2.bf16.msra.mxu0 %v1612
      %1777 = vmatprep.subr.bf16.mxu0 0
      %1778 = vmatpush2.bf16.msra.mxu0 %v1611
      %1779 = vmatprep.mubr.bf16.mxu0 %v1028
      %1780 = vmatmul.mubr.bf16.gmra.mxu0 %v1027
      %v1781 = vpop.f32.mrf.mxu0
      %v1782 = vadd.f32 %v577, %v1781
      %v1783 = vpop.f32.mrf.mxu0
      %v1784 = vpop.f32.mrf.mxu0
      %v1785 = vadd.f32 %v577, %v1784
      %v1786 = vpop.f32.mrf.mxu0
      %1787 = vmatprep.mubr.bf16.mxu0 %v1037
      %1788 = vmatmul.mubr.bf16.gmra.mxu0 %v1036
      %v1789 = vpop.f32.mrf.mxu0
      %v1790 = vadd.f32 %v577, %v1789
      %v1791 = vpop.f32.mrf.mxu0
      %v1792 = vpop.f32.mrf.mxu0
      %v1793 = vadd.f32 %v577, %v1792
      %v1794 = vpop.f32.mrf.mxu0
      %1795 = vmatprep.mubr.bf16.mxu0 %v1046
      %1796 = vmatmul.mubr.bf16.gmra.mxu0 %v1045
      %v1797 = vpop.f32.mrf.mxu0
      %v1798 = vadd.f32 %v577, %v1797
      %v1799 = vpop.f32.mrf.mxu0
      %v1800 = vpop.f32.mrf.mxu0
      %v1801 = vadd.f32 %v577, %v1800
      %v1802 = vpop.f32.mrf.mxu0
      %1803 = vmatprep.mubr.bf16.mxu0 %v1055
      %1804 = vmatmul.mubr.bf16.gmra.mxu0 %v1054
      %v1805 = vpop.f32.mrf.mxu0
      %v1806 = vadd.f32 %v577, %v1805
      %v1807 = vpop.f32.mrf.mxu0
      %v1808 = vpop.f32.mrf.mxu0
      %v1809 = vadd.f32 %v577, %v1808
      %v1810 = vpop.f32.mrf.mxu0
      %1811 = vmatprep.mubr.bf16.mxu0 %v1064
      %1812 = vmatmul.mubr.bf16.gmra.mxu0 %v1063
      %v1813 = vpop.f32.mrf.mxu0
      %v1814 = vadd.f32 %v577, %v1813
      %v1815 = vpop.f32.mrf.mxu0
      %v1816 = vpop.f32.mrf.mxu0
      %v1817 = vadd.f32 %v577, %v1816
      %v1818 = vpop.f32.mrf.mxu0
      %1819 = vmatprep.mubr.bf16.mxu0 %v1073
      %1820 = vmatmul.mubr.bf16.gmra.mxu0 %v1072
      %v1821 = vpop.f32.mrf.mxu0
      %v1822 = vadd.f32 %v577, %v1821
      %v1823 = vpop.f32.mrf.mxu0
      %v1824 = vpop.f32.mrf.mxu0
      %v1825 = vadd.f32 %v577, %v1824
      %v1826 = vpop.f32.mrf.mxu0
      %1827 = vmatprep.mubr.bf16.mxu0 %v1082
      %1828 = vmatmul.mubr.bf16.gmra.mxu0 %v1081
      %v1829 = vpop.f32.mrf.mxu0
      %v1830 = vadd.f32 %v577, %v1829
      %v1831 = vpop.f32.mrf.mxu0
      %v1832 = vpop.f32.mrf.mxu0
      %v1833 = vadd.f32 %v577, %v1832
      %v1834 = vpop.f32.mrf.mxu0
      %1835 = vmatprep.mubr.bf16.mxu0 %v1091
      %1836 = vmatmul.mubr.bf16.gmra.mxu0 %v1090
      %v1837 = vpop.f32.mrf.mxu0
      %v1838 = vadd.f32 %v577, %v1837
      %v1839 = vpop.f32.mrf.mxu0
      %v1840 = vpop.f32.mrf.mxu0
      %v1841 = vadd.f32 %v577, %v1840
      %v1842 = vpop.f32.mrf.mxu0
      %1843 = vmatprep.mubr.bf16.mxu0 %v1100
      %1844 = vmatmul.mubr.bf16.gmra.mxu0 %v1099
      %v1845 = vpop.f32.mrf.mxu0
      %v1846 = vadd.f32 %v577, %v1845
      %v1847 = vpop.f32.mrf.mxu0
      %v1848 = vpop.f32.mrf.mxu0
      %v1849 = vadd.f32 %v577, %v1848
      %v1850 = vpop.f32.mrf.mxu0
      %1851 = vmatprep.mubr.bf16.mxu0 %v1109
      %1852 = vmatmul.mubr.bf16.gmra.mxu0 %v1108
      %v1853 = vpop.f32.mrf.mxu0
      %v1854 = vadd.f32 %v577, %v1853
      %v1855 = vpop.f32.mrf.mxu0
      %v1856 = vpop.f32.mrf.mxu0
      %v1857 = vadd.f32 %v577, %v1856
      %v1858 = vpop.f32.mrf.mxu0
      %1859 = vmatprep.mubr.bf16.mxu0 %v1118
      %1860 = vmatmul.mubr.bf16.gmra.mxu0 %v1117
      %v1861 = vpop.f32.mrf.mxu0
      %v1862 = vadd.f32 %v577, %v1861
      %v1863 = vpop.f32.mrf.mxu0
      %v1864 = vpop.f32.mrf.mxu0
      %v1865 = vadd.f32 %v577, %v1864
      %v1866 = vpop.f32.mrf.mxu0
      %1867 = vmatprep.mubr.bf16.mxu0 %v1127
      %1868 = vmatmul.mubr.bf16.gmra.mxu0 %v1126
      %v1869 = vpop.f32.mrf.mxu0
      %v1870 = vadd.f32 %v577, %v1869
      %v1871 = vpop.f32.mrf.mxu0
      %v1872 = vpop.f32.mrf.mxu0
      %v1873 = vadd.f32 %v577, %v1872
      %v1874 = vpop.f32.mrf.mxu0
      %1875 = vmatprep.mubr.bf16.mxu0 %v1136
      %1876 = vmatmul.mubr.bf16.gmra.mxu0 %v1135
      %v1877 = vpop.f32.mrf.mxu0
      %v1878 = vadd.f32 %v577, %v1877
      %v1879 = vpop.f32.mrf.mxu0
      %v1880 = vpop.f32.mrf.mxu0
      %v1881 = vadd.f32 %v577, %v1880
      %v1882 = vpop.f32.mrf.mxu0
      %1883 = vmatprep.mubr.bf16.mxu0 %v1145
      %1884 = vmatmul.mubr.bf16.gmra.mxu0 %v1144
      %v1885 = vpop.f32.mrf.mxu0
      %v1886 = vadd.f32 %v577, %v1885
      %v1887 = vpop.f32.mrf.mxu0
      %v1888 = vpop.f32.mrf.mxu0
      %v1889 = vadd.f32 %v577, %v1888
      %v1890 = vpop.f32.mrf.mxu0
      %1891 = vmatprep.mubr.bf16.mxu0 %v1154
      %1892 = vmatmul.mubr.bf16.gmra.mxu0 %v1153
      %v1893 = vpop.f32.mrf.mxu0
      %v1894 = vadd.f32 %v577, %v1893
      %v1895 = vpop.f32.mrf.mxu0
      %v1896 = vpop.f32.mrf.mxu0
      %v1897 = vadd.f32 %v577, %v1896
      %v1898 = vpop.f32.mrf.mxu0
      %1899 = vmatprep.mubr.bf16.mxu0 %v1163
      %1900 = vmatmul.mubr.bf16.gmra.mxu0 %v1162
      %v1901 = vpop.f32.mrf.mxu0
      %v1902 = vadd.f32 %v577, %v1901
      %v1903 = vpop.f32.mrf.mxu0
      %v1904 = vpop.f32.mrf.mxu0
      %v1905 = vadd.f32 %v577, %v1904
      %v1906 = vpop.f32.mrf.mxu0
      %1907 = vdwg.mxu0
      %1908 = vmatprep.subr.bf16.mxu0 0
      %1909 = vmatpush1.bf16.msra.mxu0 %v1626
      %1910 = vmatprep.subr.bf16.mxu0 0
      %1911 = vmatpush1.bf16.msra.mxu0 %v1625
      %1912 = vmatprep.subr.bf16.mxu0 0
      %1913 = vmatpush1.bf16.msra.mxu0 %v1624
      %1914 = vmatprep.subr.bf16.mxu0 0
      %1915 = vmatpush1.bf16.msra.mxu0 %v1623
      %1916 = vmatprep.subr.bf16.mxu0 0
      %1917 = vmatpush1.bf16.msra.mxu0 %v1622
      %1918 = vmatprep.subr.bf16.mxu0 0
      %1919 = vmatpush1.bf16.msra.mxu0 %v1621
      %1920 = vmatprep.subr.bf16.mxu0 0
      %1921 = vmatpush1.bf16.msra.mxu0 %v1620
      %1922 = vmatprep.subr.bf16.mxu0 0
      %1923 = vmatpush1.bf16.msra.mxu0 %v1619
      %1924 = vmatprep.subr.bf16.mxu0 0
      %1925 = vmatpush2.bf16.msra.mxu0 %v1634
      %1926 = vmatprep.subr.bf16.mxu0 0
      %1927 = vmatpush2.bf16.msra.mxu0 %v1633
      %1928 = vmatprep.subr.bf16.mxu0 0
      %1929 = vmatpush2.bf16.msra.mxu0 %v1632
      %1930 = vmatprep.subr.bf16.mxu0 0
      %1931 = vmatpush2.bf16.msra.mxu0 %v1631
      %1932 = vmatprep.subr.bf16.mxu0 0
      %1933 = vmatpush2.bf16.msra.mxu0 %v1630
      %1934 = vmatprep.subr.bf16.mxu0 0
      %1935 = vmatpush2.bf16.msra.mxu0 %v1629
      %1936 = vmatprep.subr.bf16.mxu0 0
      %1937 = vmatpush2.bf16.msra.mxu0 %v1628
      %1938 = vmatprep.subr.bf16.mxu0 0
      %1939 = vmatpush2.bf16.msra.mxu0 %v1627
      %1940 = vmatprep.mubr.bf16.mxu0 %v1030
      %1941 = vmatmul.mubr.bf16.gmra.mxu0 %v1029
      %v1942 = vpop.f32.mrf.mxu0
      %v1943 = vadd.f32 %v1782, %v1942
      %v1944 = vpop.f32.mrf.mxu0
      %v1945 = vpop.f32.mrf.mxu0
      %v1946 = vadd.f32 %v1785, %v1945
      %v1947 = vpop.f32.mrf.mxu0
      %1948 = vmatprep.mubr.bf16.mxu0 %v1039
      %1949 = vmatmul.mubr.bf16.gmra.mxu0 %v1038
      %v1950 = vpop.f32.mrf.mxu0
      %v1951 = vadd.f32 %v1790, %v1950
      %v1952 = vpop.f32.mrf.mxu0
      %v1953 = vpop.f32.mrf.mxu0
      %v1954 = vadd.f32 %v1793, %v1953
      %v1955 = vpop.f32.mrf.mxu0
      %1956 = vmatprep.mubr.bf16.mxu0 %v1048
      %1957 = vmatmul.mubr.bf16.gmra.mxu0 %v1047
      %v1958 = vpop.f32.mrf.mxu0
      %v1959 = vadd.f32 %v1798, %v1958
      %v1960 = vpop.f32.mrf.mxu0
      %v1961 = vpop.f32.mrf.mxu0
      %v1962 = vadd.f32 %v1801, %v1961
      %v1963 = vpop.f32.mrf.mxu0
      %1964 = vmatprep.mubr.bf16.mxu0 %v1057
      %1965 = vmatmul.mubr.bf16.gmra.mxu0 %v1056
      %v1966 = vpop.f32.mrf.mxu0
      %v1967 = vadd.f32 %v1806, %v1966
      %v1968 = vpop.f32.mrf.mxu0
      %v1969 = vpop.f32.mrf.mxu0
      %v1970 = vadd.f32 %v1809, %v1969
      %v1971 = vpop.f32.mrf.mxu0
      %1972 = vmatprep.mubr.bf16.mxu0 %v1066
      %1973 = vmatmul.mubr.bf16.gmra.mxu0 %v1065
      %v1974 = vpop.f32.mrf.mxu0
      %v1975 = vadd.f32 %v1814, %v1974
      %v1976 = vpop.f32.mrf.mxu0
      %v1977 = vpop.f32.mrf.mxu0
      %v1978 = vadd.f32 %v1817, %v1977
      %v1979 = vpop.f32.mrf.mxu0
      %1980 = vmatprep.mubr.bf16.mxu0 %v1075
      %1981 = vmatmul.mubr.bf16.gmra.mxu0 %v1074
      %v1982 = vpop.f32.mrf.mxu0
      %v1983 = vadd.f32 %v1822, %v1982
      %v1984 = vpop.f32.mrf.mxu0
      %v1985 = vpop.f32.mrf.mxu0
      %v1986 = vadd.f32 %v1825, %v1985
      %v1987 = vpop.f32.mrf.mxu0
      %1988 = vmatprep.mubr.bf16.mxu0 %v1084
      %1989 = vmatmul.mubr.bf16.gmra.mxu0 %v1083
      %v1990 = vpop.f32.mrf.mxu0
      %v1991 = vadd.f32 %v1830, %v1990
      %v1992 = vpop.f32.mrf.mxu0
      %v1993 = vpop.f32.mrf.mxu0
      %v1994 = vadd.f32 %v1833, %v1993
      %v1995 = vpop.f32.mrf.mxu0
      %1996 = vmatprep.mubr.bf16.mxu0 %v1093
      %1997 = vmatmul.mubr.bf16.gmra.mxu0 %v1092
      %v1998 = vpop.f32.mrf.mxu0
      %v1999 = vadd.f32 %v1838, %v1998
      %v2000 = vpop.f32.mrf.mxu0
      %v2001 = vpop.f32.mrf.mxu0
      %v2002 = vadd.f32 %v1841, %v2001
      %v2003 = vpop.f32.mrf.mxu0
      %2004 = vmatprep.mubr.bf16.mxu0 %v1102
      %2005 = vmatmul.mubr.bf16.gmra.mxu0 %v1101
      %v2006 = vpop.f32.mrf.mxu0
      %v2007 = vadd.f32 %v1846, %v2006
      %v2008 = vpop.f32.mrf.mxu0
      %v2009 = vpop.f32.mrf.mxu0
      %v2010 = vadd.f32 %v1849, %v2009
      %v2011 = vpop.f32.mrf.mxu0
      %2012 = vmatprep.mubr.bf16.mxu0 %v1111
      %2013 = vmatmul.mubr.bf16.gmra.mxu0 %v1110
      %v2014 = vpop.f32.mrf.mxu0
      %v2015 = vadd.f32 %v1854, %v2014
      %v2016 = vpop.f32.mrf.mxu0
      %v2017 = vpop.f32.mrf.mxu0
      %v2018 = vadd.f32 %v1857, %v2017
      %v2019 = vpop.f32.mrf.mxu0
      %2020 = vmatprep.mubr.bf16.mxu0 %v1120
      %2021 = vmatmul.mubr.bf16.gmra.mxu0 %v1119
      %v2022 = vpop.f32.mrf.mxu0
      %v2023 = vadd.f32 %v1862, %v2022
      %v2024 = vpop.f32.mrf.mxu0
      %v2025 = vpop.f32.mrf.mxu0
      %v2026 = vadd.f32 %v1865, %v2025
      %v2027 = vpop.f32.mrf.mxu0
      %2028 = vmatprep.mubr.bf16.mxu0 %v1129
      %2029 = vmatmul.mubr.bf16.gmra.mxu0 %v1128
      %v2030 = vpop.f32.mrf.mxu0
      %v2031 = vadd.f32 %v1870, %v2030
      %v2032 = vpop.f32.mrf.mxu0
      %v2033 = vpop.f32.mrf.mxu0
      %v2034 = vadd.f32 %v1873, %v2033
      %v2035 = vpop.f32.mrf.mxu0
      %2036 = vmatprep.mubr.bf16.mxu0 %v1138
      %2037 = vmatmul.mubr.bf16.gmra.mxu0 %v1137
      %v2038 = vpop.f32.mrf.mxu0
      %v2039 = vadd.f32 %v1878, %v2038
      %v2040 = vpop.f32.mrf.mxu0
      %v2041 = vpop.f32.mrf.mxu0
      %v2042 = vadd.f32 %v1881, %v2041
      %v2043 = vpop.f32.mrf.mxu0
      %2044 = vmatprep.mubr.bf16.mxu0 %v1147
      %2045 = vmatmul.mubr.bf16.gmra.mxu0 %v1146
      %v2046 = vpop.f32.mrf.mxu0
      %v2047 = vadd.f32 %v1886, %v2046
      %v2048 = vpop.f32.mrf.mxu0
      %v2049 = vpop.f32.mrf.mxu0
      %v2050 = vadd.f32 %v1889, %v2049
      %v2051 = vpop.f32.mrf.mxu0
      %2052 = vmatprep.mubr.bf16.mxu0 %v1156
      %2053 = vmatmul.mubr.bf16.gmra.mxu0 %v1155
      %v2054 = vpop.f32.mrf.mxu0
      %v2055 = vadd.f32 %v1894, %v2054
      %v2056 = vpop.f32.mrf.mxu0
      %v2057 = vpop.f32.mrf.mxu0
      %v2058 = vadd.f32 %v1897, %v2057
      %v2059 = vpop.f32.mrf.mxu0
      %2060 = vmatprep.mubr.bf16.mxu0 %v1165
      %2061 = vmatmul.mubr.bf16.gmra.mxu0 %v1164
      %v2062 = vpop.f32.mrf.mxu0
      %v2063 = vadd.f32 %v1902, %v2062
      %v2064 = vpop.f32.mrf.mxu0
      %v2065 = vpop.f32.mrf.mxu0
      %v2066 = vadd.f32 %v1905, %v2065
      %v2067 = vpop.f32.mrf.mxu0
      %2068 = vdwg.mxu0
      %2069 = vmatprep.subr.bf16.mxu0 0
      %2070 = vmatpush1.bf16.msra.mxu0 %v1642
      %2071 = vmatprep.subr.bf16.mxu0 0
      %2072 = vmatpush1.bf16.msra.mxu0 %v1641
      %2073 = vmatprep.subr.bf16.mxu0 0
      %2074 = vmatpush1.bf16.msra.mxu0 %v1640
      %2075 = vmatprep.subr.bf16.mxu0 0
      %2076 = vmatpush1.bf16.msra.mxu0 %v1639
      %2077 = vmatprep.subr.bf16.mxu0 0
      %2078 = vmatpush1.bf16.msra.mxu0 %v1638
      %2079 = vmatprep.subr.bf16.mxu0 0
      %2080 = vmatpush1.bf16.msra.mxu0 %v1637
      %2081 = vmatprep.subr.bf16.mxu0 0
      %2082 = vmatpush1.bf16.msra.mxu0 %v1636
      %2083 = vmatprep.subr.bf16.mxu0 0
      %2084 = vmatpush1.bf16.msra.mxu0 %v1635
      %2085 = vmatprep.subr.bf16.mxu0 0
      %2086 = vmatpush2.bf16.msra.mxu0 %v1650
      %2087 = vmatprep.subr.bf16.mxu0 0
      %2088 = vmatpush2.bf16.msra.mxu0 %v1649
      %2089 = vmatprep.subr.bf16.mxu0 0
      %2090 = vmatpush2.bf16.msra.mxu0 %v1648
      %2091 = vmatprep.subr.bf16.mxu0 0
      %2092 = vmatpush2.bf16.msra.mxu0 %v1647
      %2093 = vmatprep.subr.bf16.mxu0 0
      %2094 = vmatpush2.bf16.msra.mxu0 %v1646
      %2095 = vmatprep.subr.bf16.mxu0 0
      %2096 = vmatpush2.bf16.msra.mxu0 %v1645
      %2097 = vmatprep.subr.bf16.mxu0 0
      %2098 = vmatpush2.bf16.msra.mxu0 %v1644
      %2099 = vmatprep.subr.bf16.mxu0 0
      %2100 = vmatpush2.bf16.msra.mxu0 %v1643
      %2101 = vmatprep.mubr.bf16.mxu0 %v1032
      %2102 = vmatmul.mubr.bf16.gmra.mxu0 %v1031
      %v2103 = vpop.f32.mrf.mxu0
      %v2104 = vadd.f32 %v1943, %v2103
      %v2105 = vpop.f32.mrf.mxu0
      %v2106 = vpop.f32.mrf.mxu0
      %v2107 = vadd.f32 %v1946, %v2106
      %v2108 = vpop.f32.mrf.mxu0
      %2109 = vmatprep.mubr.bf16.mxu0 %v1041
      %2110 = vmatmul.mubr.bf16.gmra.mxu0 %v1040
      %v2111 = vpop.f32.mrf.mxu0
      %v2112 = vadd.f32 %v1951, %v2111
      %v2113 = vpop.f32.mrf.mxu0
      %v2114 = vpop.f32.mrf.mxu0
      %v2115 = vadd.f32 %v1954, %v2114
      %v2116 = vpop.f32.mrf.mxu0
      %2117 = vmatprep.mubr.bf16.mxu0 %v1050
      %2118 = vmatmul.mubr.bf16.gmra.mxu0 %v1049
      %v2119 = vpop.f32.mrf.mxu0
      %v2120 = vadd.f32 %v1959, %v2119
      %v2121 = vpop.f32.mrf.mxu0
      %v2122 = vpop.f32.mrf.mxu0
      %v2123 = vadd.f32 %v1962, %v2122
      %v2124 = vpop.f32.mrf.mxu0
      %2125 = vmatprep.mubr.bf16.mxu0 %v1059
      %2126 = vmatmul.mubr.bf16.gmra.mxu0 %v1058
      %v2127 = vpop.f32.mrf.mxu0
      %v2128 = vadd.f32 %v1967, %v2127
      %v2129 = vpop.f32.mrf.mxu0
      %v2130 = vpop.f32.mrf.mxu0
      %v2131 = vadd.f32 %v1970, %v2130
      %v2132 = vpop.f32.mrf.mxu0
      %2133 = vmatprep.mubr.bf16.mxu0 %v1068
      %2134 = vmatmul.mubr.bf16.gmra.mxu0 %v1067
      %v2135 = vpop.f32.mrf.mxu0
      %v2136 = vadd.f32 %v1975, %v2135
      %v2137 = vpop.f32.mrf.mxu0
      %v2138 = vpop.f32.mrf.mxu0
      %v2139 = vadd.f32 %v1978, %v2138
      %v2140 = vpop.f32.mrf.mxu0
      %2141 = vmatprep.mubr.bf16.mxu0 %v1077
      %2142 = vmatmul.mubr.bf16.gmra.mxu0 %v1076
      %v2143 = vpop.f32.mrf.mxu0
      %v2144 = vadd.f32 %v1983, %v2143
      %v2145 = vpop.f32.mrf.mxu0
      %v2146 = vpop.f32.mrf.mxu0
      %v2147 = vadd.f32 %v1986, %v2146
      %v2148 = vpop.f32.mrf.mxu0
      %2149 = vmatprep.mubr.bf16.mxu0 %v1086
      %2150 = vmatmul.mubr.bf16.gmra.mxu0 %v1085
      %v2151 = vpop.f32.mrf.mxu0
      %v2152 = vadd.f32 %v1991, %v2151
      %v2153 = vpop.f32.mrf.mxu0
      %v2154 = vpop.f32.mrf.mxu0
      %v2155 = vadd.f32 %v1994, %v2154
      %v2156 = vpop.f32.mrf.mxu0
      %2157 = vmatprep.mubr.bf16.mxu0 %v1095
      %2158 = vmatmul.mubr.bf16.gmra.mxu0 %v1094
      %v2159 = vpop.f32.mrf.mxu0
      %v2160 = vadd.f32 %v1999, %v2159
      %v2161 = vpop.f32.mrf.mxu0
      %v2162 = vpop.f32.mrf.mxu0
      %v2163 = vadd.f32 %v2002, %v2162
      %v2164 = vpop.f32.mrf.mxu0
      %2165 = vmatprep.mubr.bf16.mxu0 %v1104
      %2166 = vmatmul.mubr.bf16.gmra.mxu0 %v1103
      %v2167 = vpop.f32.mrf.mxu0
      %v2168 = vadd.f32 %v2007, %v2167
      %v2169 = vpop.f32.mrf.mxu0
      %v2170 = vpop.f32.mrf.mxu0
      %v2171 = vadd.f32 %v2010, %v2170
      %v2172 = vpop.f32.mrf.mxu0
      %2173 = vmatprep.mubr.bf16.mxu0 %v1113
      %2174 = vmatmul.mubr.bf16.gmra.mxu0 %v1112
      %v2175 = vpop.f32.mrf.mxu0
      %v2176 = vadd.f32 %v2015, %v2175
      %v2177 = vpop.f32.mrf.mxu0
      %v2178 = vpop.f32.mrf.mxu0
      %v2179 = vadd.f32 %v2018, %v2178
      %v2180 = vpop.f32.mrf.mxu0
      %2181 = vmatprep.mubr.bf16.mxu0 %v1122
      %2182 = vmatmul.mubr.bf16.gmra.mxu0 %v1121
      %v2183 = vpop.f32.mrf.mxu0
      %v2184 = vadd.f32 %v2023, %v2183
      %v2185 = vpop.f32.mrf.mxu0
      %v2186 = vpop.f32.mrf.mxu0
      %v2187 = vadd.f32 %v2026, %v2186
      %v2188 = vpop.f32.mrf.mxu0
      %2189 = vmatprep.mubr.bf16.mxu0 %v1131
      %2190 = vmatmul.mubr.bf16.gmra.mxu0 %v1130
      %v2191 = vpop.f32.mrf.mxu0
      %v2192 = vadd.f32 %v2031, %v2191
      %v2193 = vpop.f32.mrf.mxu0
      %v2194 = vpop.f32.mrf.mxu0
      %v2195 = vadd.f32 %v2034, %v2194
      %v2196 = vpop.f32.mrf.mxu0
      %2197 = vmatprep.mubr.bf16.mxu0 %v1140
      %2198 = vmatmul.mubr.bf16.gmra.mxu0 %v1139
      %v2199 = vpop.f32.mrf.mxu0
      %v2200 = vadd.f32 %v2039, %v2199
      %v2201 = vpop.f32.mrf.mxu0
      %v2202 = vpop.f32.mrf.mxu0
      %v2203 = vadd.f32 %v2042, %v2202
      %v2204 = vpop.f32.mrf.mxu0
      %2205 = vmatprep.mubr.bf16.mxu0 %v1149
      %2206 = vmatmul.mubr.bf16.gmra.mxu0 %v1148
      %v2207 = vpop.f32.mrf.mxu0
      %v2208 = vadd.f32 %v2047, %v2207
      %v2209 = vpop.f32.mrf.mxu0
      %v2210 = vpop.f32.mrf.mxu0
      %v2211 = vadd.f32 %v2050, %v2210
      %v2212 = vpop.f32.mrf.mxu0
      %2213 = vmatprep.mubr.bf16.mxu0 %v1158
      %2214 = vmatmul.mubr.bf16.gmra.mxu0 %v1157
      %v2215 = vpop.f32.mrf.mxu0
      %v2216 = vadd.f32 %v2055, %v2215
      %v2217 = vpop.f32.mrf.mxu0
      %v2218 = vpop.f32.mrf.mxu0
      %v2219 = vadd.f32 %v2058, %v2218
      %v2220 = vpop.f32.mrf.mxu0
      %2221 = vmatprep.mubr.bf16.mxu0 %v1167
      %2222 = vmatmul.mubr.bf16.gmra.mxu0 %v1166
      %v2223 = vpop.f32.mrf.mxu0
      %v2224 = vadd.f32 %v2063, %v2223
      %v2225 = vpop.f32.mrf.mxu0
      %v2226 = vpop.f32.mrf.mxu0
      %v2227 = vadd.f32 %v2066, %v2226
      %v2228 = vpop.f32.mrf.mxu0
      %2229 = vdwg.mxu0
      %2230 = vmatprep.subr.bf16.mxu0 0
      %2231 = vmatpush1.bf16.msra.mxu0 %v1658
      %2232 = vmatprep.subr.bf16.mxu0 0
      %2233 = vmatpush1.bf16.msra.mxu0 %v1657
      %2234 = vmatprep.subr.bf16.mxu0 0
      %2235 = vmatpush1.bf16.msra.mxu0 %v1656
      %2236 = vmatprep.subr.bf16.mxu0 0
      %2237 = vmatpush1.bf16.msra.mxu0 %v1655
      %2238 = vmatprep.subr.bf16.mxu0 0
      %2239 = vmatpush1.bf16.msra.mxu0 %v1654
      %2240 = vmatprep.subr.bf16.mxu0 0
      %2241 = vmatpush1.bf16.msra.mxu0 %v1653
      %2242 = vmatprep.subr.bf16.mxu0 0
      %2243 = vmatpush1.bf16.msra.mxu0 %v1652
      %2244 = vmatprep.subr.bf16.mxu0 0
      %2245 = vmatpush1.bf16.msra.mxu0 %v1651
      %2246 = vmatprep.subr.bf16.mxu0 0
      %2247 = vmatpush2.bf16.msra.mxu0 %v1666
      %2248 = vmatprep.subr.bf16.mxu0 0
      %2249 = vmatpush2.bf16.msra.mxu0 %v1665
      %2250 = vmatprep.subr.bf16.mxu0 0
      %2251 = vmatpush2.bf16.msra.mxu0 %v1664
      %2252 = vmatprep.subr.bf16.mxu0 0
      %2253 = vmatpush2.bf16.msra.mxu0 %v1663
      %2254 = vmatprep.subr.bf16.mxu0 0
      %2255 = vmatpush2.bf16.msra.mxu0 %v1662
      %2256 = vmatprep.subr.bf16.mxu0 0
      %2257 = vmatpush2.bf16.msra.mxu0 %v1661
      %2258 = vmatprep.subr.bf16.mxu0 0
      %2259 = vmatpush2.bf16.msra.mxu0 %v1660
      %2260 = vmatprep.subr.bf16.mxu0 0
      %2261 = vmatpush2.bf16.msra.mxu0 %v1659
      %2262 = vmatprep.mubr.bf16.mxu0 %v1034
      %2263 = vmatmul.mubr.bf16.gmra.mxu0 %v1033
      %v2264 = vpop.f32.mrf.mxu0
      %v2265 = vadd.f32 %v2104, %v2264
      %v2266 = vpop.f32.mrf.mxu0
      %v2267 = vpop.f32.mrf.mxu0
      %v2268 = vadd.f32 %v2107, %v2267
      %v2269 = vpop.f32.mrf.mxu0
      %2270 = vmatprep.mubr.bf16.mxu0 %v1043
      %2271 = vmatmul.mubr.bf16.gmra.mxu0 %v1042
      %v2272 = vpop.f32.mrf.mxu0
      %v2273 = vadd.f32 %v2112, %v2272
      %v2274 = vpop.f32.mrf.mxu0
      %v2275 = vpop.f32.mrf.mxu0
      %v2276 = vadd.f32 %v2115, %v2275
      %v2277 = vpop.f32.mrf.mxu0
      %2278 = vmatprep.mubr.bf16.mxu0 %v1052
      %2279 = vmatmul.mubr.bf16.gmra.mxu0 %v1051
      %v2280 = vpop.f32.mrf.mxu0
      %v2281 = vadd.f32 %v2120, %v2280
      %v2282 = vpop.f32.mrf.mxu0
      %v2283 = vpop.f32.mrf.mxu0
      %v2284 = vadd.f32 %v2123, %v2283
      %v2285 = vpop.f32.mrf.mxu0
      %2286 = vmatprep.mubr.bf16.mxu0 %v1061
      %2287 = vmatmul.mubr.bf16.gmra.mxu0 %v1060
      %v2288 = vpop.f32.mrf.mxu0
      %v2289 = vadd.f32 %v2128, %v2288
      %v2290 = vpop.f32.mrf.mxu0
      %v2291 = vpop.f32.mrf.mxu0
      %v2292 = vadd.f32 %v2131, %v2291
      %v2293 = vpop.f32.mrf.mxu0
      %2294 = vmatprep.mubr.bf16.mxu0 %v1070
      %2295 = vmatmul.mubr.bf16.gmra.mxu0 %v1069
      %v2296 = vpop.f32.mrf.mxu0
      %v2297 = vadd.f32 %v2136, %v2296
      %v2298 = vpop.f32.mrf.mxu0
      %v2299 = vpop.f32.mrf.mxu0
      %v2300 = vadd.f32 %v2139, %v2299
      %v2301 = vpop.f32.mrf.mxu0
      %2302 = vmatprep.mubr.bf16.mxu0 %v1079
      %2303 = vmatmul.mubr.bf16.gmra.mxu0 %v1078
      %v2304 = vpop.f32.mrf.mxu0
      %v2305 = vadd.f32 %v2144, %v2304
      %v2306 = vpop.f32.mrf.mxu0
      %v2307 = vpop.f32.mrf.mxu0
      %v2308 = vadd.f32 %v2147, %v2307
      %v2309 = vpop.f32.mrf.mxu0
      %2310 = vmatprep.mubr.bf16.mxu0 %v1088
      %2311 = vmatmul.mubr.bf16.gmra.mxu0 %v1087
      %v2312 = vpop.f32.mrf.mxu0
      %v2313 = vadd.f32 %v2152, %v2312
      %v2314 = vpop.f32.mrf.mxu0
      %v2315 = vpop.f32.mrf.mxu0
      %v2316 = vadd.f32 %v2155, %v2315
      %v2317 = vpop.f32.mrf.mxu0
      %2318 = vmatprep.mubr.bf16.mxu0 %v1097
      %2319 = vmatmul.mubr.bf16.gmra.mxu0 %v1096
      %v2320 = vpop.f32.mrf.mxu0
      %v2321 = vadd.f32 %v2160, %v2320
      %v2322 = vpop.f32.mrf.mxu0
      %v2323 = vpop.f32.mrf.mxu0
      %v2324 = vadd.f32 %v2163, %v2323
      %v2325 = vpop.f32.mrf.mxu0
      %2326 = vmatprep.mubr.bf16.mxu0 %v1106
      %2327 = vmatmul.mubr.bf16.gmra.mxu0 %v1105
      %v2328 = vpop.f32.mrf.mxu0
      %v2329 = vadd.f32 %v2168, %v2328
      %v2330 = vpop.f32.mrf.mxu0
      %v2331 = vpop.f32.mrf.mxu0
      %v2332 = vadd.f32 %v2171, %v2331
      %v2333 = vpop.f32.mrf.mxu0
      %2334 = vmatprep.mubr.bf16.mxu0 %v1115
      %2335 = vmatmul.mubr.bf16.gmra.mxu0 %v1114
      %v2336 = vpop.f32.mrf.mxu0
      %v2337 = vadd.f32 %v2176, %v2336
      %v2338 = vpop.f32.mrf.mxu0
      %v2339 = vpop.f32.mrf.mxu0
      %v2340 = vadd.f32 %v2179, %v2339
      %v2341 = vpop.f32.mrf.mxu0
      %2342 = vmatprep.mubr.bf16.mxu0 %v1124
      %2343 = vmatmul.mubr.bf16.gmra.mxu0 %v1123
      %v2344 = vpop.f32.mrf.mxu0
      %v2345 = vadd.f32 %v2184, %v2344
      %v2346 = vpop.f32.mrf.mxu0
      %v2347 = vpop.f32.mrf.mxu0
      %v2348 = vadd.f32 %v2187, %v2347
      %v2349 = vpop.f32.mrf.mxu0
      %2350 = vmatprep.mubr.bf16.mxu0 %v1133
      %2351 = vmatmul.mubr.bf16.gmra.mxu0 %v1132
      %v2352 = vpop.f32.mrf.mxu0
      %v2353 = vadd.f32 %v2192, %v2352
      %v2354 = vpop.f32.mrf.mxu0
      %v2355 = vpop.f32.mrf.mxu0
      %v2356 = vadd.f32 %v2195, %v2355
      %v2357 = vpop.f32.mrf.mxu0
      %2358 = vmatprep.mubr.bf16.mxu0 %v1142
      %2359 = vmatmul.mubr.bf16.gmra.mxu0 %v1141
      %v2360 = vpop.f32.mrf.mxu0
      %v2361 = vadd.f32 %v2200, %v2360
      %v2362 = vpop.f32.mrf.mxu0
      %v2363 = vpop.f32.mrf.mxu0
      %v2364 = vadd.f32 %v2203, %v2363
      %v2365 = vpop.f32.mrf.mxu0
      %2366 = vmatprep.mubr.bf16.mxu0 %v1151
      %2367 = vmatmul.mubr.bf16.gmra.mxu0 %v1150
      %v2368 = vpop.f32.mrf.mxu0
      %v2369 = vadd.f32 %v2208, %v2368
      %v2370 = vpop.f32.mrf.mxu0
      %v2371 = vpop.f32.mrf.mxu0
      %v2372 = vadd.f32 %v2211, %v2371
      %v2373 = vpop.f32.mrf.mxu0
      %2374 = vmatprep.mubr.bf16.mxu0 %v1160
      %2375 = vmatmul.mubr.bf16.gmra.mxu0 %v1159
      %v2376 = vpop.f32.mrf.mxu0
      %v2377 = vadd.f32 %v2216, %v2376
      %v2378 = vpop.f32.mrf.mxu0
      %v2379 = vpop.f32.mrf.mxu0
      %v2380 = vadd.f32 %v2219, %v2379
      %v2381 = vpop.f32.mrf.mxu0
      %2382 = vmatprep.mubr.bf16.mxu0 %v1169
      %2383 = vmatmul.mubr.bf16.gmra.mxu0 %v1168
      %v2384 = vpop.f32.mrf.mxu0
      %v2385 = vadd.f32 %v2224, %v2384
      %v2386 = vpop.f32.mrf.mxu0
      %v2387 = vpop.f32.mrf.mxu0
      %v2388 = vadd.f32 %v2227, %v2387
      %v2389 = vpop.f32.mrf.mxu0
      %2390 = vdwg.mxu0
      %2391 = vmatprep.subr.bf16.mxu0 0
      %2392 = vmatpush1.bf16.msra.mxu0 %v1674
      %2393 = vmatprep.subr.bf16.mxu0 0
      %2394 = vmatpush1.bf16.msra.mxu0 %v1673
      %2395 = vmatprep.subr.bf16.mxu0 0
      %2396 = vmatpush1.bf16.msra.mxu0 %v1672
      %2397 = vmatprep.subr.bf16.mxu0 0
      %2398 = vmatpush1.bf16.msra.mxu0 %v1671
      %2399 = vmatprep.subr.bf16.mxu0 0
      %2400 = vmatpush1.bf16.msra.mxu0 %v1670
      %2401 = vmatprep.subr.bf16.mxu0 0
      %2402 = vmatpush1.bf16.msra.mxu0 %v1669
      %2403 = vmatprep.subr.bf16.mxu0 0
      %2404 = vmatpush1.bf16.msra.mxu0 %v1668
      %2405 = vmatprep.subr.bf16.mxu0 0
      %2406 = vmatpush1.bf16.msra.mxu0 %v1667
      %2407 = vmatprep.subr.bf16.mxu0 0
      %2408 = vmatpush2.bf16.msra.mxu0 0
      %2409 = vmatprep.subr.bf16.mxu0 0
      %2410 = vmatpush2.bf16.msra.mxu0 0
      %2411 = vmatprep.subr.bf16.mxu0 0
      %2412 = vmatpush2.bf16.msra.mxu0 0
      %2413 = vmatprep.subr.bf16.mxu0 0
      %2414 = vmatpush2.bf16.msra.mxu0 0
      %2415 = vmatprep.subr.bf16.mxu0 0
      %2416 = vmatpush2.bf16.msra.mxu0 0
      %2417 = vmatprep.subr.bf16.mxu0 0
      %2418 = vmatpush2.bf16.msra.mxu0 0
      %2419 = vmatprep.subr.bf16.mxu0 0
      %2420 = vmatpush2.bf16.msra.mxu0 0
      %2421 = vmatprep.subr.bf16.mxu0 0
      %2422 = vmatpush2.bf16.msra.mxu0 0
      %2423 = vmatprep.mubr.bf16.mxu0 0
      %2424 = vmatmul.mubr.bf16.gmra.mxu0 %v1035
      %v2425 = vpop.f32.mrf.mxu0
      %v2426 = vadd.f32 %v2265, %v2425
      %v2427 = vpop.f32.mrf.mxu0
      %v2428 = vpop.f32.mrf.mxu0
      %v2429 = vadd.f32 %v2268, %v2428
      %v2430 = vpop.f32.mrf.mxu0
      %2431 = vmatprep.mubr.bf16.mxu0 0
      %2432 = vmatmul.mubr.bf16.gmra.mxu0 %v1044
      %v2433 = vpop.f32.mrf.mxu0
      %v2434 = vadd.f32 %v2273, %v2433
      %v2435 = vpop.f32.mrf.mxu0
      %v2436 = vpop.f32.mrf.mxu0
      %v2437 = vadd.f32 %v2276, %v2436
      %v2438 = vpop.f32.mrf.mxu0
      %2439 = vmatprep.mubr.bf16.mxu0 0
      %2440 = vmatmul.mubr.bf16.gmra.mxu0 %v1053
      %v2441 = vpop.f32.mrf.mxu0
      %v2442 = vadd.f32 %v2281, %v2441
      %v2443 = vpop.f32.mrf.mxu0
      %v2444 = vpop.f32.mrf.mxu0
      %v2445 = vadd.f32 %v2284, %v2444
      %v2446 = vpop.f32.mrf.mxu0
      %2447 = vmatprep.mubr.bf16.mxu0 0
      %2448 = vmatmul.mubr.bf16.gmra.mxu0 %v1062
      %v2449 = vpop.f32.mrf.mxu0
      %v2450 = vadd.f32 %v2289, %v2449
      %v2451 = vpop.f32.mrf.mxu0
      %v2452 = vpop.f32.mrf.mxu0
      %v2453 = vadd.f32 %v2292, %v2452
      %v2454 = vpop.f32.mrf.mxu0
      %2455 = vmatprep.mubr.bf16.mxu0 0
      %2456 = vmatmul.mubr.bf16.gmra.mxu0 %v1071
      %v2457 = vpop.f32.mrf.mxu0
      %v2458 = vadd.f32 %v2297, %v2457
      %v2459 = vpop.f32.mrf.mxu0
      %v2460 = vpop.f32.mrf.mxu0
      %v2461 = vadd.f32 %v2300, %v2460
      %v2462 = vpop.f32.mrf.mxu0
      %2463 = vmatprep.mubr.bf16.mxu0 0
      %2464 = vmatmul.mubr.bf16.gmra.mxu0 %v1080
      %v2465 = vpop.f32.mrf.mxu0
      %v2466 = vadd.f32 %v2305, %v2465
      %v2467 = vpop.f32.mrf.mxu0
      %v2468 = vpop.f32.mrf.mxu0
      %v2469 = vadd.f32 %v2308, %v2468
      %v2470 = vpop.f32.mrf.mxu0
      %2471 = vmatprep.mubr.bf16.mxu0 0
      %2472 = vmatmul.mubr.bf16.gmra.mxu0 %v1089
      %v2473 = vpop.f32.mrf.mxu0
      %v2474 = vadd.f32 %v2313, %v2473
      %v2475 = vpop.f32.mrf.mxu0
      %v2476 = vpop.f32.mrf.mxu0
      %v2477 = vadd.f32 %v2316, %v2476
      %v2478 = vpop.f32.mrf.mxu0
      %2479 = vmatprep.mubr.bf16.mxu0 0
      %2480 = vmatmul.mubr.bf16.gmra.mxu0 %v1098
      %v2481 = vpop.f32.mrf.mxu0
      %v2482 = vadd.f32 %v2321, %v2481
      %v2483 = vpop.f32.mrf.mxu0
      %v2484 = vpop.f32.mrf.mxu0
      %v2485 = vadd.f32 %v2324, %v2484
      %v2486 = vpop.f32.mrf.mxu0
      %2487 = vmatprep.mubr.bf16.mxu0 0
      %2488 = vmatmul.mubr.bf16.gmra.mxu0 %v1107
      %v2489 = vpop.f32.mrf.mxu0
      %v2490 = vadd.f32 %v2329, %v2489
      %v2491 = vpop.f32.mrf.mxu0
      %v2492 = vpop.f32.mrf.mxu0
      %v2493 = vadd.f32 %v2332, %v2492
      %v2494 = vpop.f32.mrf.mxu0
      %2495 = vmatprep.mubr.bf16.mxu0 0
      %2496 = vmatmul.mubr.bf16.gmra.mxu0 %v1116
      %v2497 = vpop.f32.mrf.mxu0
      %v2498 = vadd.f32 %v2337, %v2497
      %v2499 = vpop.f32.mrf.mxu0
      %v2500 = vpop.f32.mrf.mxu0
      %v2501 = vadd.f32 %v2340, %v2500
      %v2502 = vpop.f32.mrf.mxu0
      %2503 = vmatprep.mubr.bf16.mxu0 0
      %2504 = vmatmul.mubr.bf16.gmra.mxu0 %v1125
      %v2505 = vpop.f32.mrf.mxu0
      %v2506 = vadd.f32 %v2345, %v2505
      %v2507 = vpop.f32.mrf.mxu0
      %v2508 = vpop.f32.mrf.mxu0
      %v2509 = vadd.f32 %v2348, %v2508
      %v2510 = vpop.f32.mrf.mxu0
      %2511 = vmatprep.mubr.bf16.mxu0 0
      %2512 = vmatmul.mubr.bf16.gmra.mxu0 %v1134
      %v2513 = vpop.f32.mrf.mxu0
      %v2514 = vadd.f32 %v2353, %v2513
      %v2515 = vpop.f32.mrf.mxu0
      %v2516 = vpop.f32.mrf.mxu0
      %v2517 = vadd.f32 %v2356, %v2516
      %v2518 = vpop.f32.mrf.mxu0
      %2519 = vmatprep.mubr.bf16.mxu0 0
      %2520 = vmatmul.mubr.bf16.gmra.mxu0 %v1143
      %v2521 = vpop.f32.mrf.mxu0
      %v2522 = vadd.f32 %v2361, %v2521
      %v2523 = vpop.f32.mrf.mxu0
      %v2524 = vpop.f32.mrf.mxu0
      %v2525 = vadd.f32 %v2364, %v2524
      %v2526 = vpop.f32.mrf.mxu0
      %2527 = vmatprep.mubr.bf16.mxu0 0
      %2528 = vmatmul.mubr.bf16.gmra.mxu0 %v1152
      %v2529 = vpop.f32.mrf.mxu0
      %v2530 = vadd.f32 %v2369, %v2529
      %v2531 = vpop.f32.mrf.mxu0
      %v2532 = vpop.f32.mrf.mxu0
      %v2533 = vadd.f32 %v2372, %v2532
      %v2534 = vpop.f32.mrf.mxu0
      %2535 = vmatprep.mubr.bf16.mxu0 0
      %2536 = vmatmul.mubr.bf16.gmra.mxu0 %v1161
      %v2537 = vpop.f32.mrf.mxu0
      %v2538 = vadd.f32 %v2377, %v2537
      %v2539 = vpop.f32.mrf.mxu0
      %v2540 = vpop.f32.mrf.mxu0
      %v2541 = vadd.f32 %v2380, %v2540
      %v2542 = vpop.f32.mrf.mxu0
      %2543 = vmatprep.mubr.bf16.mxu0 0
      %2544 = vmatmul.mubr.bf16.gmra.mxu0 %v1170
      %v2545 = vpop.f32.mrf.mxu0
      %v2546 = vadd.f32 %v2385, %v2545
      %v2547 = vpop.f32.mrf.mxu0
      %v2548 = vpop.f32.mrf.mxu0
      %v2549 = vadd.f32 %v2388, %v2548
      %v2550 = vpop.f32.mrf.mxu0
      %2551 = vdwg.mxu0
      %v2552 = vmax.f32 %v2426, 0.0
      %v2553 = vmax.f32 %v2429, 0.0
      %v2554 = vmax.f32 %v2434, 0.0
      %v2555 = vmax.f32 %v2437, 0.0
      %v2556 = vmax.f32 %v2442, 0.0
      %v2557 = vmax.f32 %v2445, 0.0
      %v2558 = vmax.f32 %v2450, 0.0
      %v2559 = vmax.f32 %v2453, 0.0
      %v2560 = vmax.f32 %v2458, 0.0
      %v2561 = vmax.f32 %v2461, 0.0
      %v2562 = vmax.f32 %v2466, 0.0
      %v2563 = vmax.f32 %v2469, 0.0
      %v2564 = vmax.f32 %v2474, 0.0
      %v2565 = vmax.f32 %v2477, 0.0
      %v2566 = vmax.f32 %v2482, 0.0
      %v2567 = vmax.f32 %v2485, 0.0
      %v2568 = vmax.f32 %v2490, 0.0
      %v2569 = vmax.f32 %v2493, 0.0
      %v2570 = vmax.f32 %v2498, 0.0
      %v2571 = vmax.f32 %v2501, 0.0
      %v2572 = vmax.f32 %v2506, 0.0
      %v2573 = vmax.f32 %v2509, 0.0
      %v2574 = vmax.f32 %v2514, 0.0
      %v2575 = vmax.f32 %v2517, 0.0
      %v2576 = vmax.f32 %v2522, 0.0
      %v2577 = vmax.f32 %v2525, 0.0
      %v2578 = vmax.f32 %v2530, 0.0
      %v2579 = vmax.f32 %v2533, 0.0
      %v2580 = vmax.f32 %v2538, 0.0
      %v2581 = vmax.f32 %v2541, 0.0
      %v2582 = vmax.f32 %v2546, 0.0
      %v2583 = vmax.f32 %v2549, 0.0
      %v2584 = vpack.c.bf16 %v2553, %v2552
      %v2585 = vpack.c.bf16 %v2555, %v2554
      %v2586 = vpack.c.bf16 %v2557, %v2556
      %v2587 = vpack.c.bf16 %v2559, %v2558
      %v2588 = vpack.c.bf16 %v2561, %v2560
      %v2589 = vpack.c.bf16 %v2563, %v2562
      %v2590 = vpack.c.bf16 %v2565, %v2564
      %v2591 = vpack.c.bf16 %v2567, %v2566
      %v2592 = vpack.c.bf16 %v2569, %v2568
      %v2593 = vpack.c.bf16 %v2571, %v2570
      %v2594 = vpack.c.bf16 %v2573, %v2572
      %v2595 = vpack.c.bf16 %v2575, %v2574
      %v2596 = vpack.c.bf16 %v2577, %v2576
      %v2597 = vpack.c.bf16 %v2579, %v2578
      %v2598 = vpack.c.bf16 %v2581, %v2580
      %v2599 = vpack.c.bf16 %v2583, %v2582
      %v2616 = vunpack.c.l.b16 %v2584
      %v2617 = vunpack.c.h.b16 %v2584
      %v2618 = vunpack.c.l.b16 %v2585
      %v2619 = vunpack.c.h.b16 %v2585
      %v2620 = vunpack.c.l.b16 %v2586
      %v2621 = vunpack.c.h.b16 %v2586
      %v2622 = vunpack.c.l.b16 %v2587
      %v2623 = vunpack.c.h.b16 %v2587
      %v2624 = vunpack.c.l.b16 %v2588
      %v2625 = vunpack.c.h.b16 %v2588
      %v2626 = vunpack.c.l.b16 %v2589
      %v2627 = vunpack.c.h.b16 %v2589
      %v2628 = vunpack.c.l.b16 %v2590
      %v2629 = vunpack.c.h.b16 %v2590
      %v2630 = vunpack.c.l.b16 %v2591
      %v2631 = vunpack.c.h.b16 %v2591
      %v2632 = vunpack.c.l.b16 %v2592
      %v2633 = vunpack.c.h.b16 %v2592
      %v2634 = vunpack.c.l.b16 %v2593
      %v2635 = vunpack.c.h.b16 %v2593
      %v2636 = vunpack.c.l.b16 %v2594
      %v2637 = vunpack.c.h.b16 %v2594
      %v2638 = vunpack.c.l.b16 %v2595
      %v2639 = vunpack.c.h.b16 %v2595
      %v2640 = vunpack.c.l.b16 %v2596
      %v2641 = vunpack.c.h.b16 %v2596
      %v2642 = vunpack.c.l.b16 %v2597
      %v2643 = vunpack.c.h.b16 %v2597
      %v2644 = vunpack.c.l.b16 %v2598
      %v2645 = vunpack.c.h.b16 %v2598
      %v2646 = vunpack.c.l.b16 %v2599
      %v2647 = vunpack.c.h.b16 %v2599
      %v2648 = vpack.c.b16 %v2616, %v2616
      %v2649 = vpack.c.b16 %v2617, %v2617
      %v2650 = vpack.c.b16 %v2618, %v2618
      %v2651 = vpack.c.b16 %v2619, %v2619
      %v2652 = vpack.c.b16 %v2620, %v2620
      %v2653 = vpack.c.b16 %v2621, %v2621
      %v2654 = vpack.c.b16 %v2622, %v2622
      %v2655 = vpack.c.b16 %v2623, %v2623
      %v2656 = vpack.c.b16 %v2624, %v2624
      %v2657 = vpack.c.b16 %v2625, %v2625
      %v2658 = vpack.c.b16 %v2626, %v2626
      %v2659 = vpack.c.b16 %v2627, %v2627
      %v2660 = vpack.c.b16 %v2628, %v2628
      %v2661 = vpack.c.b16 %v2629, %v2629
      %v2662 = vpack.c.b16 %v2630, %v2630
      %v2663 = vpack.c.b16 %v2631, %v2631
      %v2664 = vpack.c.b16 %v2632, %v2632
      %v2665 = vpack.c.b16 %v2633, %v2633
      %v2666 = vpack.c.b16 %v2634, %v2634
      %v2667 = vpack.c.b16 %v2635, %v2635
      %v2668 = vpack.c.b16 %v2636, %v2636
      %v2669 = vpack.c.b16 %v2637, %v2637
      %v2670 = vpack.c.b16 %v2638, %v2638
      %v2671 = vpack.c.b16 %v2639, %v2639
      %v2672 = vpack.c.b16 %v2640, %v2640
      %v2673 = vpack.c.b16 %v2641, %v2641
      %v2674 = vpack.c.b16 %v2642, %v2642
      %v2675 = vpack.c.b16 %v2643, %v2643
      %v2676 = vpack.c.b16 %v2644, %v2644
      %v2677 = vpack.c.b16 %v2645, %v2645
      %v2678 = vpack.c.b16 %v2646, %v2646
      %v2679 = vpack.c.b16 %v2647, %v2647
      %2712 = vst [vmem:[%s265] sm:$0xf] %v2648
      %2713 = vst [vmem:[%s265 + $0x4] sm:$0xf] %v2649
      %2714 = vst [vmem:[%s265 + $0x8] sm:$0xf] %v2650
      %2715 = vst [vmem:[%s265 + $0xc] sm:$0xf] %v2651
      %2716 = vst [vmem:[%s265 + $0x10] sm:$0xf] %v2652
      %2717 = vst [vmem:[%s265 + $0x14] sm:$0xf] %v2653
      %2718 = vst [vmem:[%s265 + $0x18] sm:$0xf] %v2654
      %2719 = vst [vmem:[%s265 + $0x1c] sm:$0xf] %v2655
      %2720 = vst [vmem:[%s265 + $0x20] sm:$0xf] %v2656
      %2721 = vst [vmem:[%s265 + $0x24] sm:$0xf] %v2657
      %2722 = vst [vmem:[%s265 + $0x28] sm:$0xf] %v2658
      %2723 = vst [vmem:[%s265 + $0x2c] sm:$0xf] %v2659
      %2724 = vst [vmem:[%s265 + $0x30] sm:$0xf] %v2660
      %2725 = vst [vmem:[%s265 + $0x34] sm:$0xf] %v2661
      %2726 = vst [vmem:[%s265 + $0x38] sm:$0xf] %v2662
      %2727 = vst [vmem:[%s265 + $0x3c] sm:$0xf] %v2663
      %2728 = vst [vmem:[%s265 + $0x40] sm:$0xf] %v2664
      %2729 = vst [vmem:[%s265 + $0x44] sm:$0xf] %v2665
      %2730 = vst [vmem:[%s265 + $0x48] sm:$0xf] %v2666
      %2731 = vst [vmem:[%s265 + $0x4c] sm:$0xf] %v2667
      %2732 = vst [vmem:[%s265 + $0x50] sm:$0xf] %v2668
      %2733 = vst [vmem:[%s265 + $0x54] sm:$0xf] %v2669
      %2734 = vst [vmem:[%s265 + $0x58] sm:$0xf] %v2670
      %2735 = vst [vmem:[%s265 + $0x5c] sm:$0xf] %v2671
      %2736 = vst [vmem:[%s265 + $0x60] sm:$0xf] %v2672
      %2737 = vst [vmem:[%s265 + $0x64] sm:$0xf] %v2673
      %2738 = vst [vmem:[%s265 + $0x68] sm:$0xf] %v2674
      %2739 = vst [vmem:[%s265 + $0x6c] sm:$0xf] %v2675
      %2740 = vst [vmem:[%s265 + $0x70] sm:$0xf] %v2676
      %2741 = vst [vmem:[%s265 + $0x74] sm:$0xf] %v2677
      %2742 = vst [vmem:[%s265 + $0x78] sm:$0xf] %v2678
      %2743 = vst [vmem:[%s265 + $0x7c] sm:$0xf] %v2679
      %s2744 = smul.u32 32, %s19
      %p2745 = scmp.lt.s32.totalorder %s2744, 63
      %s2746 = scalar_select %p2745, %s2744, 63
      %p2747 = scmp.lt.s32.totalorder %s20, 0
      %s2748 = scalar_select %p2747, %s20, 0
      %s2749 = sadd.s32 %s2748, %s2746
      %s2750 = smul.addr %s2749, 4
      %s2751 = scalar_lea.vmem %s3, %s2750
      // Predicated region
      $region33: #{_lambda_.2} parent=31 // pred_check
        %p2752 = pneg %p135
      $region34: #{_lambda_.2} parent=31 // pred_check_branch
        %2754 = sbr.rel (%p2752) target = $region36
      $region35: #{_lambda_.2} parent=31 // pred_region
        %s2755 = smul.u32 32, %s19
      $region36: #{_lambda_.2} parent=31 // pred_fallthru
        _
    $region32: #{_lambda_.2} parent=5 // pred_fallthru
      _
    %p2756 = scmp.le.s32.totalorder 2, %s9
    // Predicated region
    $region37: #{_lambda_.2} parent=5 // pred_check
      %p2757 = pneg %p2756
    $region38: #{_lambda_.2} parent=5 // pred_check_branch
      %2759 = sbr.rel (%p2757) target = $region40
    $region39: #{_lambda_.2} parent=5 // pred_region
      %s2760 = ssub.s32 %s9, 2
      // Predicated region
      $region41: #{_lambda_.2} parent=39 // pred_check
        %p2761 = pneg %p141
      $region42: #{_lambda_.2} parent=39 // pred_check_branch
        %2763 = sbr.rel (%p2761) target = $region44
      $region43: #{_lambda_.2} parent=39 // pred_region
        %s2764 = smul.u32 32, %s22
        %p2765 = scmp.lt.s32.totalorder %s2764, 63
        %s2766 = scalar_select %p2765, %s2764, 63
        %p2767 = scmp.lt.s32.totalorder %s23, 0
        %s2768 = scalar_select %p2767, %s23, 0
        %s2769 = sadd.s32 %s2768, %s2766
        %s2770 = smul.addr %s2769, 4
        %s2771 = scalar_lea.vmem %s3, %s2770
      $region44: #{_lambda_.2} parent=39 // pred_fallthru
        _
    $region40: #{_lambda_.2} parent=5 // pred_fallthru
      _
  $region6: #{_lambda_.2} parent=0 // loop_footer
    %s13 = sadd.s32 1, %s9
  $region7: #{_lambda_.2} parent=0 // loop_footer_branch
    %8 = sbr.rel target = $region3
  $region8: #{_lambda_.2} parent=0 // loop_exit
    _

</llo_original>
